<compile_context>
chip_gen: v5e
topology: v5e:2x2
jax: 0.10.0
libtpu: 0.0.40
codegen_flags: <defaults>
</compile_context>

<pallas_src>
import functools
import math

import jax
import jax.numpy as jnp
from jax.experimental import pallas as pl
from jax.experimental.pallas import tpu as pltpu


# ----------------------------------------------------------------------------
# Kernel 1: horizontal branch
#   x(+pos_h) -> grouped 3x3 conv (proj_h) -> fuse_h(cat[x_h, x]) -> pre-BN y
#   plus per-sample channel sum / sumsq for the BatchNorm statistics.
#   Layout: rows = h, lanes = (c, w).
# ----------------------------------------------------------------------------
def _branch_h_kernel(xc_ref, posh_ref, r1_ref, b1_ref, wf_ref,
                     y_ref, s1_ref, s2_ref, pad_ref, *, S, CS, Nb):
    # zero only the two halo rows (cheap; data rows are fully rewritten below)
    zrow = jnp.zeros((Nb, 1, CS), jnp.float32)
    pad_ref[:, 0:1, :] = zrow
    pad_ref[:, S + 1:S + 2, :] = zrow

    x = xc_ref[...]                                   # (Nb, S, CS) f32
    t = x + posh_ref[...]                             # conv input: x + pos_h
    pad_ref[:, 1:S + 1, :] = t                        # per-sample halo pad

    up = pad_ref[:, 0:S, :]                           # input row h-1 (zero halo)
    down = pad_ref[:, 2:S + 2, :]                     # input row h+1 (zero halo)

    # grouped 3x3 conv == ONE (Nb*S, 3*CS) x (3*CS, CS) bf16 matmul against
    # block-diagonal weights (conv over c1 and the group dim folded into lanes)
    lhs = jnp.concatenate([up, t, down], axis=-1)     # (Nb, S, 3*CS)
    lhs = lhs.reshape(Nb * S, 3 * CS).astype(jnp.bfloat16)
    acc = jnp.dot(lhs, r1_ref[...], preferred_element_type=jnp.float32)
    acc = acc + b1_ref[...]                           # conv bias (f32)

    # fuse_h(cat([x_h, x])) as ONE (Nb*S, 2*CS) x (2*CS, CS) bf16 matmul
    fuse_lhs = jnp.concatenate(
        [acc.astype(jnp.bfloat16),
         x.reshape(Nb * S, CS).astype(jnp.bfloat16)], axis=-1)
    y = jnp.dot(fuse_lhs, wf_ref[...], preferred_element_type=jnp.float32)
    y3 = y.reshape(Nb, S, CS)

    y_ref[...] = y3.astype(y_ref.dtype)               # pre-BN activations (bf16)
    s1_ref[...] = jnp.sum(y3, axis=1, keepdims=True)          # f32 sums over h
    s2_ref[...] = jnp.sum(y3 * y3, axis=1, keepdims=True)     # f32 sumsq over h


def branch_h(xc, posh, r1, b1, wf, *, S, CS, Nb):
    Np = xc.shape[0]
    assert Np % Nb == 0
    kernel = functools.partial(_branch_h_kernel, S=S, CS=CS, Nb=Nb)
    return pl.pallas_call(
        kernel,
        out_shape=(jax.ShapeDtypeStruct((Np, S, CS), jnp.bfloat16),
                   jax.ShapeDtypeStruct((Np, 1, CS), jnp.float32),
                   jax.ShapeDtypeStruct((Np, 1, CS), jnp.float32)),
        grid=(Np // Nb,),
        in_specs=[
            pl.BlockSpec((Nb, S, CS), lambda n: (n, 0, 0)),
            pl.BlockSpec((S, CS), lambda n: (0, 0)),
            pl.BlockSpec((3 * CS, CS), lambda n: (0, 0)),
            pl.BlockSpec((1, CS), lambda n: (0, 0)),
            pl.BlockSpec((2 * CS, CS), lambda n: (0, 0)),
        ],
        out_specs=(
            pl.BlockSpec((Nb, S, CS), lambda n: (n, 0, 0)),
            pl.BlockSpec((Nb, 1, CS), lambda n: (n, 0, 0)),
            pl.BlockSpec((Nb, 1, CS), lambda n: (n, 0, 0)),
        ),
        scratch_shapes=[pltpu.VMEM((Nb, S + 2, CS), jnp.float32)],
        compiler_params=pltpu.CompilerParams(
            dimension_semantics=("parallel",),
            vmem_limit_bytes=32 * 1024 * 1024),
    )(xc, posh, r1, b1, wf)


# ----------------------------------------------------------------------------
# Kernel 2: vertical branch
#   BN (precomputed batch stats) + exact GELU + pos_w -> grouped 3x3 conv
#   (proj_w) -> fuse_w(cat[x, x_w]).
#   Layout: rows = w, lanes = (c, h).
# ----------------------------------------------------------------------------
def _branch_w_kernel(yt_ref, xf_ref, scale_ref, shift_ref, posw_ref,
                     r2_ref, b2_ref, wf_ref, o_ref, pad_ref, *, S, CS, Nb):
    zrow = jnp.zeros((Nb, 1, CS), jnp.float32)
    pad_ref[:, 0:1, :] = zrow
    pad_ref[:, S + 1:S + 2, :] = zrow

    y = yt_ref[...].astype(jnp.float32)               # (Nb, S, CS) pre-BN
    xn = y * scale_ref[...] + shift_ref[...]          # BatchNorm (batch stats)
    xg = 0.5 * xn * (1.0 + jax.lax.erf(xn * (1.0 / math.sqrt(2.0))))  # exact GELU
    t = xg + posw_ref[...]                            # + pos_w
    pad_ref[:, 1:S + 1, :] = t

    up = pad_ref[:, 0:S, :]
    down = pad_ref[:, 2:S + 2, :]
    lhs = jnp.concatenate([up, t, down], axis=-1)
    lhs = lhs.reshape(Nb * S, 3 * CS).astype(jnp.bfloat16)
    acc = jnp.dot(lhs, r2_ref[...], preferred_element_type=jnp.float32)
    acc = acc + b2_ref[...]

    # fuse_w(cat([x, x_w])) as ONE matmul (x first in the cat, per the module)
    fuse_lhs = jnp.concatenate(
        [xf_ref[...].reshape(Nb * S, CS).astype(jnp.bfloat16),
         acc.astype(jnp.bfloat16)], axis=-1)
    o = jnp.dot(fuse_lhs, wf_ref[...], preferred_element_type=jnp.float32)
    o_ref[...] = o.reshape(Nb, S, CS).astype(o_ref.dtype)


def branch_w(yt, xf, scale_row, shift_row, posw, r2, b2, wf, *, S, CS, Nb):
    Np = yt.shape[0]
    assert Np % Nb == 0
    kernel = functools.partial(_branch_w_kernel, S=S, CS=CS, Nb=Nb)
    return pl.pallas_call(
        kernel,
        out_shape=jax.ShapeDtypeStruct((Np, S, CS), jnp.float32),
        grid=(Np // Nb,),
        in_specs=[
            pl.BlockSpec((Nb, S, CS), lambda n: (n, 0, 0)),
            pl.BlockSpec((Nb, S, CS), lambda n: (n, 0, 0)),
            pl.BlockSpec((1, CS), lambda n: (0, 0)),
            pl.BlockSpec((1, CS), lambda n: (0, 0)),
            pl.BlockSpec((S, CS), lambda n: (0, 0)),
            pl.BlockSpec((3 * CS, CS), lambda n: (0, 0)),
            pl.BlockSpec((1, CS), lambda n: (0, 0)),
            pl.BlockSpec((2 * CS, CS), lambda n: (0, 0)),
        ],
        out_specs=pl.BlockSpec((Nb, S, CS), lambda n: (n, 0, 0)),
        scratch_shapes=[pltpu.VMEM((Nb, S + 2, CS), jnp.float32)],
        compiler_params=pltpu.CompilerParams(
            dimension_semantics=("parallel",),
            vmem_limit_bytes=32 * 1024 * 1024),
    )(yt, xf, scale_row, shift_row, posw, r2, b2, wf)


# ----------------------------------------------------------------------------
# Parameters (deterministic, synthetic — PyTorch-native layouts).
# ----------------------------------------------------------------------------
def init_params(key, channels, H, W):
    Cs = channels // 4
    ks = jax.random.split(key, 8)
    p = {}
    p["emb_h"] = 0.02 * jax.random.truncated_normal(
        ks[0], -2.0, 2.0, (2 * H + 1, channels), jnp.float32)
    p["emb_w"] = 0.02 * jax.random.truncated_normal(
        ks[1], -2.0, 2.0, (2 * W + 1, channels), jnp.float32)
    # proj_h: Conv2d(H*Cs, Cs*H, 3x3, groups=Cs) -> weight [Cs*H, H, 3, 3]
    p["proj_h_w"] = 0.05 * jax.random.normal(ks[2], (Cs * H, H, 3, 3), jnp.float32)
    p["proj_h_b"] = 0.05 * jax.random.normal(ks[3], (Cs * H,), jnp.float32)
    # proj_w: Conv2d(W*Cs, Cs*W, 3x3, groups=Cs) -> weight [Cs*W, W, 3, 3]
    p["proj_w_w"] = 0.05 * jax.random.normal(ks[4], (Cs * W, W, 3, 3), jnp.float32)
    p["proj_w_b"] = 0.05 * jax.random.normal(ks[5], (Cs * W,), jnp.float32)
    # fuse_h / fuse_w: Conv2d(2C, C, 1x1, bias=False)
    p["fuse_h_w"] = 0.05 * jax.random.normal(ks[6], (channels, 2 * channels), jnp.float32)
    p["fuse_w_w"] = 0.05 * jax.random.normal(ks[7], (channels, 2 * channels), jnp.float32)
    return p


def relative_position(table, length_q, length_k, max_rel):
    rq = jnp.arange(length_q)
    rk = jnp.arange(length_k)
    dist = rk[None, :] - rq[:, None]
    idx = jnp.clip(dist, -max_rel, max_rel) + max_rel
    return table[idx]                     # [length_q, length_k, C]


def prepare_params(p, channels, H, W):
    """One-time conversion of PyTorch-layout weights into the kernel layouts."""
    assert H == W, "module's reshape/conv logic requires H == W"
    C = channels
    Cs = C // 4                 # groups (self.C)
    C1 = C // Cs                # == 4
    G = Cs
    S = H
    CS = C * S

    def conv_rhs(w, b, cin_g, cout_g):
        # w: (G*cout_g, cin_g, 3, 3) PyTorch grouped-conv weight
        wg = w.reshape(G, cout_g, cin_g, 3, 3)                    # [g,o,i,ky,kx]
        d = jnp.arange(C1)[:, None] - jnp.arange(C1)[None, :] + 1  # c1_in-c1_out+1
        valid = ((d >= 0) & (d <= 2)).astype(jnp.float32)
        dh = jax.nn.one_hot(jnp.clip(d, 0, 2), 3, dtype=jnp.float32) * valid[..., None]
        # r[kx, (c1_in,g,i), (c1_out,g,o)]  (implicit zero pad along c1)
        r = jnp.einsum("aby,goiyx,gh->xagibho",
                       dh, wg, jnp.eye(G, dtype=jnp.float32))
        r = r.reshape(3, C1 * G * cin_g, C1 * G * cout_g)
        bias = jnp.tile(b.reshape(1, G * cout_g), (C1, 1)).reshape(1, C1 * G * cout_g)
        return r, bias

    def fuse_block(wpart):
        # M[(c, s), (c_out, s')] = delta(s, s') * wpart[c_out, c]
        return jnp.einsum("oc,wv->cwov", wpart,
                          jnp.eye(S, dtype=jnp.float32)).reshape(C * S, C * S)

    r1, b1 = conv_rhs(p["proj_h_w"], p["proj_h_b"], W, H)
    r2, b2 = conv_rhs(p["proj_w_w"], p["proj_w_b"], H, W)

    wfh = jnp.concatenate([fuse_block(p["fuse_h_w"][:, :C]),
                           fuse_block(p["fuse_h_w"][:, C:])], axis=0)
    wfw = jnp.concatenate([fuse_block(p["fuse_w_w"][:, :C]),
                           fuse_block(p["fuse_w_w"][:, C:])], axis=0)

    emb_h = relative_position(p["emb_h"], H, W, H)      # [H, W, C]
    emb_w = relative_position(p["emb_w"], H, W, W)      # [H, W, C]
    posh = jnp.transpose(emb_h, (0, 2, 1)).reshape(S, CS)   # [h, (c, w)]
    posw = jnp.transpose(emb_w, (1, 2, 0)).reshape(S, CS)   # [w, (c, h)]

    return {
        # 3x3-tap weights stacked along K for the single K=3*CS dot (bf16)
        "r1": r1.reshape(3 * CS, CS).astype(jnp.bfloat16),
        "r2": r2.reshape(3 * CS, CS).astype(jnp.bfloat16),
        "b1": b1, "b2": b2,                                  # f32 bias rows
        "wfh": wfh.astype(jnp.bfloat16),
        "wfw": wfw.astype(jnp.bfloat16),
        "posh": posh, "posw": posw,                          # f32 pos embeddings
    }


# ----------------------------------------------------------------------------
# GMM forward: 2 Pallas launches + a few tiny XLA reshapes/transposes.
# ----------------------------------------------------------------------------
def gmm_forward(prep, x, *, channels, H, W, batch_block=16):
    N, C, Hx, Wx = x.shape
    assert (C, Hx, Wx) == (channels, H, W)
    assert H == W
    S = H
    CS = C * S

    # samples per grid step (M = Nb*S rows per MXU matmul); pad N up to a
    # multiple of Nb (padded samples are excluded from BN stats and sliced off)
    Nb = min(batch_block, N)
    Np = ((N + Nb - 1) // Nb) * Nb

    # layout prep of the NCHW input (tiny, start-of-graph only)
    xc = jnp.transpose(x, (0, 2, 1, 3)).reshape(N, S, CS)   # [n, h, (c, w)]
    xf = jnp.transpose(x, (0, 3, 1, 2)).reshape(N, S, CS)   # [n, w, (c, h)]
    if Np != N:
        zpad = jnp.zeros((Np - N, S, CS), x.dtype)
        xc = jnp.concatenate([xc, zpad], axis=0)
        xf = jnp.concatenate([xf, zpad], axis=0)

    # ---- branch H: pos_h add + proj_h + fuse_h + BN partial stats ----
    y_pre, s1, s2 = branch_h(xc, prep["posh"], prep["r1"], prep["b1"],
                             prep["wfh"], S=S, CS=CS, Nb=Nb)

    # ---- BatchNorm batch statistics over (N, H, W), training mode ----
    cnt = N * H * W
    ssum = s1[:N].reshape(N, C, W).sum(axis=(0, 2))
    ssq = s2[:N].reshape(N, C, W).sum(axis=(0, 2))
    mean = ssum / cnt
    var = jnp.maximum(ssq / cnt - mean * mean, 0.0)   # biased batch variance
    scale = jax.lax.rsqrt(var + 1e-5)                 # gamma = 1
    shift = -mean * scale                             # beta = 0
    scale_row = jnp.repeat(scale, S).reshape(1, CS)   # expanded to (c, h) lanes
    shift_row = jnp.repeat(shift, S).reshape(1, CS)

    # re-layout pre-BN activations (bf16): [n,h,(c,w)] -> [n,w,(c,h)]
    yt = jnp.transpose(y_pre.reshape(Np, S, C, S), (0, 3, 2, 1)).reshape(Np, S, CS)

    # ---- branch W: BN apply + GELU + pos_w + proj_w + fuse_w ----
    out = branch_w(yt, xf, scale_row, shift_row, prep["posw"],
                   prep["r2"], prep["b2"], prep["wfw"], S=S, CS=CS, Nb=Nb)

    # [n, w, (c, h)] -> NCHW (drop batch padding)
    out = out[:N]
    return jnp.transpose(out.reshape(N, S, C, S), (0, 2, 3, 1))


if __name__ == "__main__":
    N, C, H, W = 2, 16, 16, 16        # channels divisible by patch=4, H == W
    key = jax.random.PRNGKey(0)
    kp, kx = jax.random.split(key)
    raw_params = init_params(kp, C, H, W)
    prep = prepare_params(raw_params, C, H, W)     # one-time weight re-layout
    x = jax.random.normal(kx, (N, C, H, W), jnp.float32)

    fwd = jax.jit(functools.partial(gmm_forward, channels=C, H=H, W=W))
    out = fwd(prep, x)
    jax.block_until_ready(out)
    assert out.shape == (N, C, H, W) and out.dtype == jnp.float32
    assert bool(jnp.all(jnp.isfinite(out)))
    print("KERNEL_OK")
</pallas_src>

<mosaic_0001>
module attributes {stable_mosaic.version = 11 : i64} {
  func.func @_branch_h_kernel(%arg0: i32, %arg1: memref<2x16x256xf32, #tpu.memory_space<vmem>>, %arg2: memref<16x256xf32, #tpu.memory_space<vmem>>, %arg3: memref<768x256xbf16, #tpu.memory_space<vmem>>, %arg4: memref<1x256xf32, #tpu.memory_space<vmem>>, %arg5: memref<512x256xbf16, #tpu.memory_space<vmem>>, %arg6: memref<2x16x256xbf16, #tpu.memory_space<vmem>>, %arg7: memref<2x1x256xf32, #tpu.memory_space<vmem>>, %arg8: memref<2x1x256xf32, #tpu.memory_space<vmem>>, %arg9: memref<2x18x256xf32, #tpu.memory_space<vmem>>) attributes {dimension_semantics = [#tpu.dimension_semantics<parallel>], iteration_bounds = array<i64: 1>, scalar_prefetch = 0 : i64, scratch_operands = 1 : i64, tpu.core_type = #tpu.core_type<tc>, window_params = [{transform_indices = @transform_0, window_bounds = array<i64: 2, 16, 256>}, {pipeline_mode = #tpu.pipeline_mode<synchronous>, transform_indices = @transform_1, window_bounds = array<i64: 16, 256>}, {pipeline_mode = #tpu.pipeline_mode<synchronous>, transform_indices = @transform_2, window_bounds = array<i64: 768, 256>}, {pipeline_mode = #tpu.pipeline_mode<synchronous>, transform_indices = @transform_3, window_bounds = array<i64: 1, 256>}, {pipeline_mode = #tpu.pipeline_mode<synchronous>, transform_indices = @transform_4, window_bounds = array<i64: 512, 256>}, {transform_indices = @transform_5, window_bounds = array<i64: 2, 16, 256>}, {transform_indices = @transform_6, window_bounds = array<i64: 2, 1, 256>}, {transform_indices = @transform_7, window_bounds = array<i64: 2, 1, 256>}]} {
    %cst = arith.constant 0.000000e+00 : f32
    %0 = vector.broadcast %cst : f32 to vector<2x1x256xf32>
    %c0 = arith.constant 0 : index
    %c0_0 = arith.constant 0 : index
    %c0_1 = arith.constant 0 : index
    %1 = vector.load %arg9[%c0, %c0_0, %c0_1] : memref<2x18x256xf32, #tpu.memory_space<vmem>>, vector<2x1x256xf32>
    tpu.vector_store %arg9[%c0, %c0_0, %c0_1], %0 {strides = array<i32>} : memref<2x18x256xf32, #tpu.memory_space<vmem>>, vector<2x1x256xf32>,
    %c0_2 = arith.constant 0 : index
    %c17 = arith.constant 17 : index
    %c0_3 = arith.constant 0 : index
    %2 = vector.load %arg9[%c0_2, %c17, %c0_3] : memref<2x18x256xf32, #tpu.memory_space<vmem>>, vector<2x1x256xf32>
    tpu.vector_store %arg9[%c0_2, %c17, %c0_3], %0 {strides = array<i32>} : memref<2x18x256xf32, #tpu.memory_space<vmem>>, vector<2x1x256xf32>,
    %c0_4 = arith.constant 0 : index
    %c0_5 = arith.constant 0 : index
    %c0_6 = arith.constant 0 : index
    %3 = vector.load %arg1[%c0_4, %c0_5, %c0_6] : memref<2x16x256xf32, #tpu.memory_space<vmem>>, vector<2x16x256xf32>
    %c0_7 = arith.constant 0 : index
    %c0_8 = arith.constant 0 : index
    %4 = vector.load %arg2[%c0_7, %c0_8] : memref<16x256xf32, #tpu.memory_space<vmem>>, vector<16x256xf32>
    %5 = vector.shape_cast %4 : vector<16x256xf32> to vector<1x16x256xf32>
    %6 = vector.broadcast %5 : vector<1x16x256xf32> to vector<2x16x256xf32>
    %7 = arith.addf %3, %6 : vector<2x16x256xf32>
    %c0_9 = arith.constant 0 : index
    %c1 = arith.constant 1 : index
    %c0_10 = arith.constant 0 : index
    %8 = vector.load %arg9[%c0_9, %c1, %c0_10] : memref<2x18x256xf32, #tpu.memory_space<vmem>>, vector<2x16x256xf32>
    tpu.vector_store %arg9[%c0_9, %c1, %c0_10], %7 {strides = array<i32>} : memref<2x18x256xf32, #tpu.memory_space<vmem>>, vector<2x16x256xf32>,
    %c0_11 = arith.constant 0 : index
    %c0_12 = arith.constant 0 : index
    %c0_13 = arith.constant 0 : index
    %9 = vector.load %arg9[%c0_11, %c0_12, %c0_13] : memref<2x18x256xf32, #tpu.memory_space<vmem>>, vector<2x16x256xf32>
    %c0_14 = arith.constant 0 : index
    %c2 = arith.constant 2 : index
    %c0_15 = arith.constant 0 : index
    %10 = vector.load %arg9[%c0_14, %c2, %c0_15] : memref<2x18x256xf32, #tpu.memory_space<vmem>>, vector<2x16x256xf32>
    %11 = tpu.concatenate %9, %7, %10 in 2 : vector<2x16x256xf32>, vector<2x16x256xf32>, vector<2x16x256xf32> -> vector<2x16x768xf32>
    %12 = vector.shape_cast %11 : vector<2x16x768xf32> to vector<32x768xf32>
    %13 = arith.truncf %12 : vector<32x768xf32> to vector<32x768xbf16>
    %c0_16 = arith.constant 0 : index
    %c0_17 = arith.constant 0 : index
    %14 = vector.load %arg3[%c0_16, %c0_17] : memref<768x256xbf16, #tpu.memory_space<vmem>>, vector<768x256xbf16>
    %cst_18 = arith.constant dense<0.000000e+00> : vector<32x256xf32>
    %15 = tpu.matmul %13, %14, %cst_18 {dimension_numbers = #tpu.dot_dimension_numbers<[1], [0], [0], [1], [0, 0, 1, 1], [], []>} : vector<32x768xbf16>, vector<768x256xbf16>, vector<32x256xf32> -> vector<32x256xf32>
    %c0_19 = arith.constant 0 : index
    %c0_20 = arith.constant 0 : index
    %16 = vector.load %arg4[%c0_19, %c0_20] : memref<1x256xf32, #tpu.memory_space<vmem>>, vector<1x256xf32>
    %17 = vector.broadcast %16 : vector<1x256xf32> to vector<32x256xf32>
    %18 = arith.addf %15, %17 : vector<32x256xf32>
    %19 = arith.truncf %18 : vector<32x256xf32> to vector<32x256xbf16>
    %20 = vector.shape_cast %3 : vector<2x16x256xf32> to vector<32x256xf32>
    %21 = arith.truncf %20 : vector<32x256xf32> to vector<32x256xbf16>
    %22 = tpu.concatenate %19, %21 in 1 : vector<32x256xbf16>, vector<32x256xbf16> -> vector<32x512xbf16>
    %c0_21 = arith.constant 0 : index
    %c0_22 = arith.constant 0 : index
    %23 = vector.load %arg5[%c0_21, %c0_22] : memref<512x256xbf16, #tpu.memory_space<vmem>>, vector<512x256xbf16>
    %cst_23 = arith.constant dense<0.000000e+00> : vector<32x256xf32>
    %24 = tpu.matmul %22, %23, %cst_23 {dimension_numbers = #tpu.dot_dimension_numbers<[1], [0], [0], [1], [0, 0, 1, 1], [], []>} : vector<32x512xbf16>, vector<512x256xbf16>, vector<32x256xf32> -> vector<32x256xf32>
    %25 = vector.shape_cast %24 : vector<32x256xf32> to vector<2x16x256xf32>
    %26 = arith.truncf %25 : vector<2x16x256xf32> to vector<2x16x256xbf16>
    %c0_24 = arith.constant 0 : index
    %c0_25 = arith.constant 0 : index
    %c0_26 = arith.constant 0 : index
    %27 = vector.load %arg6[%c0_24, %c0_25, %c0_26] : memref<2x16x256xbf16, #tpu.memory_space<vmem>>, vector<2x16x256xbf16>
    tpu.vector_store %arg6[%c0_24, %c0_25, %c0_26], %26 {strides = array<i32>} : memref<2x16x256xbf16, #tpu.memory_space<vmem>>, vector<2x16x256xbf16>,
    %cst_27 = arith.constant dense<0.000000e+00> : vector<2x256xf32>
    %28 = vector.multi_reduction <add>, %25, %cst_27 [1] : vector<2x16x256xf32> to vector<2x256xf32>
    %29 = vector.shape_cast %28 : vector<2x256xf32> to vector<2x1x256xf32>
    %c0_28 = arith.constant 0 : index
    %c0_29 = arith.constant 0 : index
    %c0_30 = arith.constant 0 : index
    %30 = vector.load %arg7[%c0_28, %c0_29, %c0_30] : memref<2x1x256xf32, #tpu.memory_space<vmem>>, vector<2x1x256xf32>
    tpu.vector_store %arg7[%c0_28, %c0_29, %c0_30], %29 {strides = array<i32>} : memref<2x1x256xf32, #tpu.memory_space<vmem>>, vector<2x1x256xf32>,
    %31 = arith.mulf %25, %25 : vector<2x16x256xf32>
    %cst_31 = arith.constant dense<0.000000e+00> : vector<2x256xf32>
    %32 = vector.multi_reduction <add>, %31, %cst_31 [1] : vector<2x16x256xf32> to vector<2x256xf32>
    %33 = vector.shape_cast %32 : vector<2x256xf32> to vector<2x1x256xf32>
    %c0_32 = arith.constant 0 : index
    %c0_33 = arith.constant 0 : index
    %c0_34 = arith.constant 0 : index
    %34 = vector.load %arg8[%c0_32, %c0_33, %c0_34] : memref<2x1x256xf32, #tpu.memory_space<vmem>>, vector<2x1x256xf32>
    tpu.vector_store %arg8[%c0_32, %c0_33, %c0_34], %33 {strides = array<i32>} : memref<2x1x256xf32, #tpu.memory_space<vmem>>, vector<2x1x256xf32>,
    return
  }
  func.func @transform_0(%arg0: i32) -> (i32, i32, i32) {
    %c0_i32 = arith.constant 0 : i32
    %c0_i32_0 = arith.constant 0 : i32
    %c0_i32_1 = arith.constant 0 : i32
    return %arg0, %c0_i32, %c0_i32_0 : i32, i32, i32
  }
  func.func @transform_1(%arg0: i32) -> (i32, i32) {
    %c0_i32 = arith.constant 0 : i32
    %c0_i32_0 = arith.constant 0 : i32
    %c0_i32_1 = arith.constant 0 : i32
    return %c0_i32, %c0_i32_0 : i32, i32
  }
  func.func @transform_2(%arg0: i32) -> (i32, i32) {
    %c0_i32 = arith.constant 0 : i32
    %c0_i32_0 = arith.constant 0 : i32
    %c0_i32_1 = arith.constant 0 : i32
    return %c0_i32, %c0_i32_0 : i32, i32
  }
  func.func @transform_3(%arg0: i32) -> (i32, i32) {
    %c0_i32 = arith.constant 0 : i32
    %c0_i32_0 = arith.constant 0 : i32
    %c0_i32_1 = arith.constant 0 : i32
    return %c0_i32, %c0_i32_0 : i32, i32
  }
  func.func @transform_4(%arg0: i32) -> (i32, i32) {
    %c0_i32 = arith.constant 0 : i32
    %c0_i32_0 = arith.constant 0 : i32
    %c0_i32_1 = arith.constant 0 : i32
    return %c0_i32, %c0_i32_0 : i32, i32
  }
  func.func @transform_5(%arg0: i32) -> (i32, i32, i32) {
    %c0_i32 = arith.constant 0 : i32
    %c0_i32_0 = arith.constant 0 : i32
    %c0_i32_1 = arith.constant 0 : i32
    return %arg0, %c0_i32, %c0_i32_0 : i32, i32, i32
  }
  func.func @transform_6(%arg0: i32) -> (i32, i32, i32) {
    %c0_i32 = arith.constant 0 : i32
    %c0_i32_0 = arith.constant 0 : i32
    %c0_i32_1 = arith.constant 0 : i32
    return %arg0, %c0_i32, %c0_i32_0 : i32, i32, i32
  }
  func.func @transform_7(%arg0: i32) -> (i32, i32, i32) {
    %c0_i32 = arith.constant 0 : i32
    %c0_i32_0 = arith.constant 0 : i32
    %c0_i32_1 = arith.constant 0 : i32
    return %arg0, %c0_i32, %c0_i32_0 : i32, i32, i32
  }
}

module attributes {stable_mosaic.version = 11 : i64} {
  func.func @_branch_w_kernel(%arg0: i32, %arg1: memref<2x16x256xbf16, #tpu.memory_space<vmem>>, %arg2: memref<2x16x256xf32, #tpu.memory_space<vmem>>, %arg3: memref<1x256xf32, #tpu.memory_space<vmem>>, %arg4: memref<1x256xf32, #tpu.memory_space<vmem>>, %arg5: memref<16x256xf32, #tpu.memory_space<vmem>>, %arg6: memref<768x256xbf16, #tpu.memory_space<vmem>>, %arg7: memref<1x256xf32, #tpu.memory_space<vmem>>, %arg8: memref<512x256xbf16, #tpu.memory_space<vmem>>, %arg9: memref<2x16x256xf32, #tpu.memory_space<vmem>>, %arg10: memref<2x18x256xf32, #tpu.memory_space<vmem>>) attributes {dimension_semantics = [#tpu.dimension_semantics<parallel>], iteration_bounds = array<i64: 1>, scalar_prefetch = 0 : i64, scratch_operands = 1 : i64, tpu.core_type = #tpu.core_type<tc>, window_params = [{transform_indices = @transform_0, window_bounds = array<i64: 2, 16, 256>}, {transform_indices = @transform_1, window_bounds = array<i64: 2, 16, 256>}, {pipeline_mode = #tpu.pipeline_mode<synchronous>, transform_indices = @transform_2, window_bounds = array<i64: 1, 256>}, {pipeline_mode = #tpu.pipeline_mode<synchronous>, transform_indices = @transform_3, window_bounds = array<i64: 1, 256>}, {pipeline_mode = #tpu.pipeline_mode<synchronous>, transform_indices = @transform_4, window_bounds = array<i64: 16, 256>}, {pipeline_mode = #tpu.pipeline_mode<synchronous>, transform_indices = @transform_5, window_bounds = array<i64: 768, 256>}, {pipeline_mode = #tpu.pipeline_mode<synchronous>, transform_indices = @transform_6, window_bounds = array<i64: 1, 256>}, {pipeline_mode = #tpu.pipeline_mode<synchronous>, transform_indices = @transform_7, window_bounds = array<i64: 512, 256>}, {transform_indices = @transform_8, window_bounds = array<i64: 2, 16, 256>}]} {
    %cst = arith.constant 0.000000e+00 : f32
    %0 = vector.broadcast %cst : f32 to vector<2x1x256xf32>
    %c0 = arith.constant 0 : index
    %c0_0 = arith.constant 0 : index
    %c0_1 = arith.constant 0 : index
    %1 = vector.load %arg10[%c0, %c0_0, %c0_1] : memref<2x18x256xf32, #tpu.memory_space<vmem>>, vector<2x1x256xf32>
    tpu.vector_store %arg10[%c0, %c0_0, %c0_1], %0 {strides = array<i32>} : memref<2x18x256xf32, #tpu.memory_space<vmem>>, vector<2x1x256xf32>,
    %c0_2 = arith.constant 0 : index
    %c17 = arith.constant 17 : index
    %c0_3 = arith.constant 0 : index
    %2 = vector.load %arg10[%c0_2, %c17, %c0_3] : memref<2x18x256xf32, #tpu.memory_space<vmem>>, vector<2x1x256xf32>
    tpu.vector_store %arg10[%c0_2, %c17, %c0_3], %0 {strides = array<i32>} : memref<2x18x256xf32, #tpu.memory_space<vmem>>, vector<2x1x256xf32>,
    %c0_4 = arith.constant 0 : index
    %c0_5 = arith.constant 0 : index
    %c0_6 = arith.constant 0 : index
    %3 = vector.load %arg1[%c0_4, %c0_5, %c0_6] : memref<2x16x256xbf16, #tpu.memory_space<vmem>>, vector<2x16x256xbf16>
    %4 = arith.extf %3 : vector<2x16x256xbf16> to vector<2x16x256xf32>
    %c0_7 = arith.constant 0 : index
    %c0_8 = arith.constant 0 : index
    %5 = vector.load %arg3[%c0_7, %c0_8] : memref<1x256xf32, #tpu.memory_space<vmem>>, vector<1x256xf32>
    %6 = vector.shape_cast %5 : vector<1x256xf32> to vector<1x1x256xf32>
    %7 = vector.broadcast %6 : vector<1x1x256xf32> to vector<2x16x256xf32>
    %8 = arith.mulf %4, %7 : vector<2x16x256xf32>
    %c0_9 = arith.constant 0 : index
    %c0_10 = arith.constant 0 : index
    %9 = vector.load %arg4[%c0_9, %c0_10] : memref<1x256xf32, #tpu.memory_space<vmem>>, vector<1x256xf32>
    %10 = vector.shape_cast %9 : vector<1x256xf32> to vector<1x1x256xf32>
    %11 = vector.broadcast %10 : vector<1x1x256xf32> to vector<2x16x256xf32>
    %12 = arith.addf %8, %11 : vector<2x16x256xf32>
    %cst_11 = arith.constant 5.000000e-01 : f32
    %13 = vector.broadcast %cst_11 : f32 to vector<2x16x256xf32>
    %14 = arith.mulf %13, %12 : vector<2x16x256xf32>
    %cst_12 = arith.constant 0.707106769 : f32
    %15 = vector.broadcast %cst_12 : f32 to vector<2x16x256xf32>
    %16 = arith.mulf %12, %15 : vector<2x16x256xf32>
    %17 = math.erf %16 : vector<2x16x256xf32>
    %cst_13 = arith.constant 1.000000e+00 : f32
    %18 = vector.broadcast %cst_13 : f32 to vector<2x16x256xf32>
    %19 = arith.addf %18, %17 : vector<2x16x256xf32>
    %20 = arith.mulf %14, %19 : vector<2x16x256xf32>
    %c0_14 = arith.constant 0 : index
    %c0_15 = arith.constant 0 : index
    %21 = vector.load %arg5[%c0_14, %c0_15] : memref<16x256xf32, #tpu.memory_space<vmem>>, vector<16x256xf32>
    %22 = vector.shape_cast %21 : vector<16x256xf32> to vector<1x16x256xf32>
    %23 = vector.broadcast %22 : vector<1x16x256xf32> to vector<2x16x256xf32>
    %24 = arith.addf %20, %23 : vector<2x16x256xf32>
    %c0_16 = arith.constant 0 : index
    %c1 = arith.constant 1 : index
    %c0_17 = arith.constant 0 : index
    %25 = vector.load %arg10[%c0_16, %c1, %c0_17] : memref<2x18x256xf32, #tpu.memory_space<vmem>>, vector<2x16x256xf32>
    tpu.vector_store %arg10[%c0_16, %c1, %c0_17], %24 {strides = array<i32>} : memref<2x18x256xf32, #tpu.memory_space<vmem>>, vector<2x16x256xf32>,
    %c0_18 = arith.constant 0 : index
    %c0_19 = arith.constant 0 : index
    %c0_20 = arith.constant 0 : index
    %26 = vector.load %arg10[%c0_18, %c0_19, %c0_20] : memref<2x18x256xf32, #tpu.memory_space<vmem>>, vector<2x16x256xf32>
    %c0_21 = arith.constant 0 : index
    %c2 = arith.constant 2 : index
    %c0_22 = arith.constant 0 : index
    %27 = vector.load %arg10[%c0_21, %c2, %c0_22] : memref<2x18x256xf32, #tpu.memory_space<vmem>>, vector<2x16x256xf32>
    %28 = tpu.concatenate %26, %24, %27 in 2 : vector<2x16x256xf32>, vector<2x16x256xf32>, vector<2x16x256xf32> -> vector<2x16x768xf32>
    %29 = vector.shape_cast %28 : vector<2x16x768xf32> to vector<32x768xf32>
    %30 = arith.truncf %29 : vector<32x768xf32> to vector<32x768xbf16>
    %c0_23 = arith.constant 0 : index
    %c0_24 = arith.constant 0 : index
    %31 = vector.load %arg6[%c0_23, %c0_24] : memref<768x256xbf16, #tpu.memory_space<vmem>>, vector<768x256xbf16>
    %cst_25 = arith.constant dense<0.000000e+00> : vector<32x256xf32>
    %32 = tpu.matmul %30, %31, %cst_25 {dimension_numbers = #tpu.dot_dimension_numbers<[1], [0], [0], [1], [0, 0, 1, 1], [], []>} : vector<32x768xbf16>, vector<768x256xbf16>, vector<32x256xf32> -> vector<32x256xf32>
    %c0_26 = arith.constant 0 : index
    %c0_27 = arith.constant 0 : index
    %33 = vector.load %arg7[%c0_26, %c0_27] : memref<1x256xf32, #tpu.memory_space<vmem>>, vector<1x256xf32>
    %34 = vector.broadcast %33 : vector<1x256xf32> to vector<32x256xf32>
    %35 = arith.addf %32, %34 : vector<32x256xf32>
    %c0_28 = arith.constant 0 : index
    %c0_29 = arith.constant 0 : index
    %c0_30 = arith.constant 0 : index
    %36 = vector.load %arg2[%c0_28, %c0_29, %c0_30] : memref<2x16x256xf32, #tpu.memory_space<vmem>>, vector<2x16x256xf32>
    %37 = vector.shape_cast %36 : vector<2x16x256xf32> to vector<32x256xf32>
    %38 = arith.truncf %37 : vector<32x256xf32> to vector<32x256xbf16>
    %39 = arith.truncf %35 : vector<32x256xf32> to vector<32x256xbf16>
    %40 = tpu.concatenate %38, %39 in 1 : vector<32x256xbf16>, vector<32x256xbf16> -> vector<32x512xbf16>
    %c0_31 = arith.constant 0 : index
    %c0_32 = arith.constant 0 : index
    %41 = vector.load %arg8[%c0_31, %c0_32] : memref<512x256xbf16, #tpu.memory_space<vmem>>, vector<512x256xbf16>
    %cst_33 = arith.constant dense<0.000000e+00> : vector<32x256xf32>
    %42 = tpu.matmul %40, %41, %cst_33 {dimension_numbers = #tpu.dot_dimension_numbers<[1], [0], [0], [1], [0, 0, 1, 1], [], []>} : vector<32x512xbf16>, vector<512x256xbf16>, vector<32x256xf32> -> vector<32x256xf32>
    %43 = vector.shape_cast %42 : vector<32x256xf32> to vector<2x16x256xf32>
    %c0_34 = arith.constant 0 : index
    %c0_35 = arith.constant 0 : index
    %c0_36 = arith.constant 0 : index
    %44 = vector.load %arg9[%c0_34, %c0_35, %c0_36] : memref<2x16x256xf32, #tpu.memory_space<vmem>>, vector<2x16x256xf32>
    tpu.vector_store %arg9[%c0_34, %c0_35, %c0_36], %43 {strides = array<i32>} : memref<2x16x256xf32, #tpu.memory_space<vmem>>, vector<2x16x256xf32>,
    return
  }
  func.func @transform_0(%arg0: i32) -> (i32, i32, i32) {
    %c0_i32 = arith.constant 0 : i32
    %c0_i32_0 = arith.constant 0 : i32
    %c0_i32_1 = arith.constant 0 : i32
    return %arg0, %c0_i32, %c0_i32_0 : i32, i32, i32
  }
  func.func @transform_1(%arg0: i32) -> (i32, i32, i32) {
    %c0_i32 = arith.constant 0 : i32
    %c0_i32_0 = arith.constant 0 : i32
    %c0_i32_1 = arith.constant 0 : i32
    return %arg0, %c0_i32, %c0_i32_0 : i32, i32, i32
  }
  func.func @transform_2(%arg0: i32) -> (i32, i32) {
    %c0_i32 = arith.constant 0 : i32
    %c0_i32_0 = arith.constant 0 : i32
    %c0_i32_1 = arith.constant 0 : i32
    return %c0_i32, %c0_i32_0 : i32, i32
  }
  func.func @transform_3(%arg0: i32) -> (i32, i32) {
    %c0_i32 = arith.constant 0 : i32
    %c0_i32_0 = arith.constant 0 : i32
    %c0_i32_1 = arith.constant 0 : i32
    return %c0_i32, %c0_i32_0 : i32, i32
  }
  func.func @transform_4(%arg0: i32) -> (i32, i32) {
    %c0_i32 = arith.constant 0 : i32
    %c0_i32_0 = arith.constant 0 : i32
    %c0_i32_1 = arith.constant 0 : i32
    return %c0_i32, %c0_i32_0 : i32, i32
  }
  func.func @transform_5(%arg0: i32) -> (i32, i32) {
    %c0_i32 = arith.constant 0 : i32
    %c0_i32_0 = arith.constant 0 : i32
    %c0_i32_1 = arith.constant 0 : i32
    return %c0_i32, %c0_i32_0 : i32, i32
  }
  func.func @transform_6(%arg0: i32) -> (i32, i32) {
    %c0_i32 = arith.constant 0 : i32
    %c0_i32_0 = arith.constant 0 : i32
    %c0_i32_1 = arith.constant 0 : i32
    return %c0_i32, %c0_i32_0 : i32, i32
  }
  func.func @transform_7(%arg0: i32) -> (i32, i32) {
    %c0_i32 = arith.constant 0 : i32
    %c0_i32_0 = arith.constant 0 : i32
    %c0_i32_1 = arith.constant 0 : i32
    return %c0_i32, %c0_i32_0 : i32, i32
  }
  func.func @transform_8(%arg0: i32) -> (i32, i32, i32) {
    %c0_i32 = arith.constant 0 : i32
    %c0_i32_0 = arith.constant 0 : i32
    %c0_i32_1 = arith.constant 0 : i32
    return %arg0, %c0_i32, %c0_i32_0 : i32, i32, i32
  }
}

</mosaic_0001>

<llo_original>
// kernel: gmm_forward.2
$region0: #{gmm_forward.2}
  #allocation0 [shape = 'u32[]', space=smem, size = 0x4, offset = 0x4, fixed_abs, tag = 'smem constant byte address 0x4 - core index']
  #allocation1 [shape = 'u32[72,128]{1,0:T(1,128)}', space=vmem, size = 0x9000, scoped, tag = 'internal scratch']
  #allocation2 [shape = 'f32[2,18,256]{2,1,0:T(8,128)}', space=vmem, size = 0xc000, scoped, tag = 'scratch operand']
  %s0 = inlined_call_operand.vmem [shape: f32[2,16,256], index: 0, kind: input, shape index: {}]
  %s1 = inlined_call_operand.vmem [shape: f32[16,256], index: 1, kind: input, shape index: {}]
  %s2 = inlined_call_operand.vmem [shape: bf16[768,256], index: 2, kind: input, shape index: {}]
  %s3 = inlined_call_operand.vmem [shape: f32[1,256], index: 3, kind: input, shape index: {}]
  %s4 = inlined_call_operand.vmem [shape: bf16[512,256], index: 4, kind: input, shape index: {}]
  %s5 = inlined_call_operand.vmem [shape: bf16[2,16,256], index: 5, kind: output, shape index: {0}]
  %s6 = inlined_call_operand.vmem [shape: f32[2,1,256], index: 6, kind: output, shape index: {1}]
  %s7 = inlined_call_operand.vmem [shape: f32[2,1,256], index: 7, kind: output, shape index: {2}]
  %8 = xla_tuple %s5, %s6, %s7
  %s9 = sld [smem:[#allocation0]]
  $region46: #{gmm_forward.2} parent=0
    _
  %s11 = ssub.s32 1, %s9
  %s12 = scalar_select 0, %s11, %s9
  // Predicated region
  $region2: #{gmm_forward.2} parent=0 // pred_check
    _
  $region3: #{gmm_forward.2} parent=0 // pred_check_branch
    %14 = sbr.rel (0) target = $region5
  $region4: #{gmm_forward.2} parent=0 // pred_region
    _
  $region5: #{gmm_forward.2} parent=0 // pred_fallthru
    _
  // Predicated region
  $region6: #{gmm_forward.2} parent=0 // pred_check
    _
  $region7: #{gmm_forward.2} parent=0 // pred_check_branch
    %16 = sbr.rel (0) target = $region9
  $region8: #{gmm_forward.2} parent=0 // pred_region
    _
  $region9: #{gmm_forward.2} parent=0 // pred_fallthru
    _
  // Predicated region
  $region10: #{gmm_forward.2} parent=0 // pred_check
    _
  $region11: #{gmm_forward.2} parent=0 // pred_check_branch
    %18 = sbr.rel (0) target = $region13
  $region12: #{gmm_forward.2} parent=0 // pred_region
    _
  $region13: #{gmm_forward.2} parent=0 // pred_fallthru
    _
  // Predicated region
  $region14: #{gmm_forward.2} parent=0 // pred_check
    _
  $region15: #{gmm_forward.2} parent=0 // pred_check_branch
    %20 = sbr.rel (0) target = $region17
  $region16: #{gmm_forward.2} parent=0 // pred_region
    _
  $region17: #{gmm_forward.2} parent=0 // pred_fallthru
    _
  // Predicated region
  $region18: #{gmm_forward.2} parent=0 // pred_check
    _
  $region19: #{gmm_forward.2} parent=0 // pred_check_branch
    %22 = sbr.rel (0) target = $region21
  $region20: #{gmm_forward.2} parent=0 // pred_region
    _
  $region21: #{gmm_forward.2} parent=0 // pred_fallthru
    _
  %v23 = vlaneseq
  %vm24 = vcmp.ge.s32.totalorder %v23, 0
  %vm25 = vcmp.lt.s32.totalorder %v23, 256
  %vm26 = vmand %vm24, %vm25
  %27 = vst.msk [vmem:[#allocation2] ss:$8 sm:$0x3] %vm26, 0.0
  %28 = vst.msk [vmem:[#allocation2] ss:$8 sm:$0x0] %vm26, 0.0
  %s29 = scalar_lea.vmem [#allocation2], 48
  %30 = vst.msk [vmem:[%s29] ss:$8 sm:$0x3] %vm26, 0.0
  %31 = vst.msk [vmem:[%s29] ss:$8 sm:$0x0] %vm26, 0.0
  %s32 = scalar_lea.vmem [#allocation2], 33
  %33 = vst.msk [vmem:[%s32] ss:$8 sm:$0x3] %vm26, 0.0
  %34 = vst.msk [vmem:[%s32] ss:$8 sm:$0x0] %vm26, 0.0
  %s35 = scalar_lea.vmem [#allocation2], 81
  %36 = vst.msk [vmem:[%s35] ss:$8 sm:$0x3] %vm26, 0.0
  %37 = vst.msk [vmem:[%s35] ss:$8 sm:$0x0] %vm26, 0.0
  %v38 = vld [vmem:[%s0] sm:$0xff]
  %v39 = vld [vmem:[%s0 + $0x8] sm:$0xff]
  %v40 = vld [vmem:[%s0 + $0x10] sm:$0xff]
  %v41 = vld [vmem:[%s0 + $0x18] sm:$0xff]
  %v42 = vld [vmem:[%s0 + $0x20] sm:$0xff]
  %v43 = vld [vmem:[%s0 + $0x28] sm:$0xff]
  %v44 = vld [vmem:[%s0 + $0x30] sm:$0xff]
  %v45 = vld [vmem:[%s0 + $0x38] sm:$0xff]
  %v46 = vld [vmem:[%s1] sm:$0xff]
  %v47 = vld [vmem:[%s1 + $0x8] sm:$0xff]
  %v48 = vld [vmem:[%s1 + $0x10] sm:$0xff]
  %v49 = vld [vmem:[%s1 + $0x18] sm:$0xff]
  %v50 = vadd.f32 %v38, %v46
  %v51 = vadd.f32 %v39, %v47
  %v52 = vadd.f32 %v40, %v48
  %v53 = vadd.f32 %v41, %v49
  %v54 = vadd.f32 %v42, %v46
  %v55 = vadd.f32 %v43, %v47
  %v56 = vadd.f32 %v44, %v48
  %v57 = vadd.f32 %v45, %v49
  %vm66 = vcmask 1040384
  %v67 = vrot.slane %v50, 7
  %v68 = vrot.slane %v51, 7
  %v69 = vrot.slane %v52, 7
  %v70 = vsel %vm66, %v67, %v69
  %v71 = vrot.slane %v53, 7
  %v72 = vsel %vm66, %v68, %v71
  %v73 = vrot.slane %v54, 7
  %v74 = vrot.slane %v55, 7
  %v75 = vrot.slane %v56, 7
  %v76 = vsel %vm66, %v73, %v75
  %v77 = vrot.slane %v57, 7
  %v78 = vsel %vm66, %v74, %v77
  %91 = vst [vmem:[#allocation2] sm:$0xfe] %v67
  %92 = vst [vmem:[#allocation2 + $0x8] sm:$0xfe] %v68
  %93 = vst [vmem:[#allocation2 + $0x10] sm:$0xff] %v70
  %94 = vst [vmem:[#allocation2 + $0x18] sm:$0xff] %v72
  %95 = vst [vmem:[#allocation2 + $0x20] sm:$0x1] %v69
  %96 = vst [vmem:[#allocation2 + $0x28] sm:$0x1] %v71
  %97 = vst [vmem:[#allocation2 + $0x30] sm:$0xfe] %v73
  %98 = vst [vmem:[#allocation2 + $0x38] sm:$0xfe] %v74
  %99 = vst [vmem:[#allocation2 + $0x40] sm:$0xff] %v76
  %100 = vst [vmem:[#allocation2 + $0x48] sm:$0xff] %v78
  %101 = vst [vmem:[#allocation2 + $0x50] sm:$0x1] %v75
  %102 = vst [vmem:[#allocation2 + $0x58] sm:$0x1] %v77
  %v103 = vld [vmem:[#allocation2] sm:$0xff]
  %v104 = vld [vmem:[#allocation2 + $0x8] sm:$0xff]
  %v105 = vld [vmem:[#allocation2 + $0x10] sm:$0xff]
  %v106 = vld [vmem:[#allocation2 + $0x18] sm:$0xff]
  %v107 = vld [vmem:[#allocation2 + $0x30] sm:$0xff]
  %v108 = vld [vmem:[#allocation2 + $0x38] sm:$0xff]
  %v109 = vld [vmem:[#allocation2 + $0x40] sm:$0xff]
  %v110 = vld [vmem:[#allocation2 + $0x48] sm:$0xff]
  %v111 = vld [vmem:[#allocation2] sm:$0xfc]
  %v112 = vld [vmem:[#allocation2 + $0x8] sm:$0xfc]
  %v113 = vld [vmem:[#allocation2 + $0x20] sm:$0x3]
  %v114 = vld [vmem:[#allocation2 + $0x28] sm:$0x3]
  %v115 = vld [vmem:[#allocation2 + $0x30] sm:$0xfc]
  %v116 = vld [vmem:[#allocation2 + $0x38] sm:$0xfc]
  %v117 = vld [vmem:[#allocation2 + $0x50] sm:$0x3]
  %v118 = vld [vmem:[#allocation2 + $0x58] sm:$0x3]
  %vm131 = vcmask 1045504
  %v132 = vrot.slane %v111, 2
  %v133 = vrot.slane %v105, 2
  %v134 = vsel %vm131, %v132, %v133
  %v135 = vrot.slane %v112, 2
  %v136 = vrot.slane %v106, 2
  %v137 = vsel %vm131, %v135, %v136
  %v138 = vrot.slane %v113, 2
  %v139 = vsel %vm131, %v133, %v138
  %v140 = vrot.slane %v114, 2
  %v141 = vsel %vm131, %v136, %v140
  %v142 = vrot.slane %v115, 2
  %v143 = vrot.slane %v109, 2
  %v144 = vsel %vm131, %v142, %v143
  %v145 = vrot.slane %v116, 2
  %v146 = vrot.slane %v110, 2
  %v147 = vsel %vm131, %v145, %v146
  %v148 = vrot.slane %v117, 2
  %v149 = vsel %vm131, %v143, %v148
  %v150 = vrot.slane %v118, 2
  %v151 = vsel %vm131, %v146, %v150
  %v160 = vpack.c.bf16 %v105, %v103
  %v161 = vpack.c.bf16 %v106, %v104
  %v162 = vpack.c.bf16 %v52, %v50
  %v163 = vpack.c.bf16 %v53, %v51
  %v164 = vpack.c.bf16 %v139, %v134
  %v165 = vpack.c.bf16 %v141, %v137
  %v166 = vpack.c.bf16 %v109, %v107
  %v167 = vpack.c.bf16 %v110, %v108
  %v168 = vpack.c.bf16 %v56, %v54
  %v169 = vpack.c.bf16 %v57, %v55
  %v170 = vpack.c.bf16 %v149, %v144
  %v171 = vpack.c.bf16 %v151, %v147
  %v172 = vld [vmem:[%s2] sm:$0xff]
  %v173 = vld [vmem:[%s2 + $0x8] sm:$0xff]
  %v174 = vld [vmem:[%s2 + $0x10] sm:$0xff]
  %v175 = vld [vmem:[%s2 + $0x18] sm:$0xff]
  %v176 = vld [vmem:[%s2 + $0x20] sm:$0xff]
  %v177 = vld [vmem:[%s2 + $0x28] sm:$0xff]
  %v178 = vld [vmem:[%s2 + $0x30] sm:$0xff]
  %v179 = vld [vmem:[%s2 + $0x38] sm:$0xff]
  %v180 = vld [vmem:[%s2 + $0x40] sm:$0xff]
  %v181 = vld [vmem:[%s2 + $0x48] sm:$0xff]
  %v182 = vld [vmem:[%s2 + $0x50] sm:$0xff]
  %v183 = vld [vmem:[%s2 + $0x58] sm:$0xff]
  %v184 = vld [vmem:[%s2 + $0x60] sm:$0xff]
  %v185 = vld [vmem:[%s2 + $0x68] sm:$0xff]
  %v186 = vld [vmem:[%s2 + $0x70] sm:$0xff]
  %v187 = vld [vmem:[%s2 + $0x78] sm:$0xff]
  %v188 = vld [vmem:[%s2 + $0x80] sm:$0xff]
  %v189 = vld [vmem:[%s2 + $0x88] sm:$0xff]
  %v190 = vld [vmem:[%s2 + $0x90] sm:$0xff]
  %v191 = vld [vmem:[%s2 + $0x98] sm:$0xff]
  %v192 = vld [vmem:[%s2 + $0xa0] sm:$0xff]
  %v193 = vld [vmem:[%s2 + $0xa8] sm:$0xff]
  %v194 = vld [vmem:[%s2 + $0xb0] sm:$0xff]
  %v195 = vld [vmem:[%s2 + $0xb8] sm:$0xff]
  %v196 = vld [vmem:[%s2 + $0xc0] sm:$0xff]
  %v197 = vld [vmem:[%s2 + $0xc8] sm:$0xff]
  %v198 = vld [vmem:[%s2 + $0xd0] sm:$0xff]
  %v199 = vld [vmem:[%s2 + $0xd8] sm:$0xff]
  %v200 = vld [vmem:[%s2 + $0xe0] sm:$0xff]
  %v201 = vld [vmem:[%s2 + $0xe8] sm:$0xff]
  %v202 = vld [vmem:[%s2 + $0xf0] sm:$0xff]
  %v203 = vld [vmem:[%s2 + $0xf8] sm:$0xff]
  %v204 = vld [vmem:[%s2 + $0x100] sm:$0xff]
  %v205 = vld [vmem:[%s2 + $0x108] sm:$0xff]
  %v206 = vld [vmem:[%s2 + $0x110] sm:$0xff]
  %v207 = vld [vmem:[%s2 + $0x118] sm:$0xff]
  %v208 = vld [vmem:[%s2 + $0x120] sm:$0xff]
  %v209 = vld [vmem:[%s2 + $0x128] sm:$0xff]
  %v210 = vld [vmem:[%s2 + $0x130] sm:$0xff]
  %v211 = vld [vmem:[%s2 + $0x138] sm:$0xff]
  %v212 = vld [vmem:[%s2 + $0x140] sm:$0xff]
  %v213 = vld [vmem:[%s2 + $0x148] sm:$0xff]
  %v214 = vld [vmem:[%s2 + $0x150] sm:$0xff]
  %v215 = vld [vmem:[%s2 + $0x158] sm:$0xff]
  %v216 = vld [vmem:[%s2 + $0x160] sm:$0xff]
  %v217 = vld [vmem:[%s2 + $0x168] sm:$0xff]
  %v218 = vld [vmem:[%s2 + $0x170] sm:$0xff]
  %v219 = vld [vmem:[%s2 + $0x178] sm:$0xff]
  %v220 = vld [vmem:[%s2 + $0x180] sm:$0xff]
  %v221 = vld [vmem:[%s2 + $0x188] sm:$0xff]
  %v222 = vld [vmem:[%s2 + $0x190] sm:$0xff]
  %v223 = vld [vmem:[%s2 + $0x198] sm:$0xff]
  %v224 = vld [vmem:[%s2 + $0x1a0] sm:$0xff]
  %v225 = vld [vmem:[%s2 + $0x1a8] sm:$0xff]
  %v226 = vld [vmem:[%s2 + $0x1b0] sm:$0xff]
  %v227 = vld [vmem:[%s2 + $0x1b8] sm:$0xff]
  %v228 = vld [vmem:[%s2 + $0x1c0] sm:$0xff]
  %v229 = vld [vmem:[%s2 + $0x1c8] sm:$0xff]
  %v230 = vld [vmem:[%s2 + $0x1d0] sm:$0xff]
  %v231 = vld [vmem:[%s2 + $0x1d8] sm:$0xff]
  %v232 = vld [vmem:[%s2 + $0x1e0] sm:$0xff]
  %v233 = vld [vmem:[%s2 + $0x1e8] sm:$0xff]
  %v234 = vld [vmem:[%s2 + $0x1f0] sm:$0xff]
  %v235 = vld [vmem:[%s2 + $0x1f8] sm:$0xff]
  %v236 = vld [vmem:[%s2 + $0x200] sm:$0xff]
  %v237 = vld [vmem:[%s2 + $0x208] sm:$0xff]
  %v238 = vld [vmem:[%s2 + $0x210] sm:$0xff]
  %v239 = vld [vmem:[%s2 + $0x218] sm:$0xff]
  %v240 = vld [vmem:[%s2 + $0x220] sm:$0xff]
  %v241 = vld [vmem:[%s2 + $0x228] sm:$0xff]
  %v242 = vld [vmem:[%s2 + $0x230] sm:$0xff]
  %v243 = vld [vmem:[%s2 + $0x238] sm:$0xff]
  %v244 = vld [vmem:[%s2 + $0x240] sm:$0xff]
  %v245 = vld [vmem:[%s2 + $0x248] sm:$0xff]
  %v246 = vld [vmem:[%s2 + $0x250] sm:$0xff]
  %v247 = vld [vmem:[%s2 + $0x258] sm:$0xff]
  %v248 = vld [vmem:[%s2 + $0x260] sm:$0xff]
  %v249 = vld [vmem:[%s2 + $0x268] sm:$0xff]
  %v250 = vld [vmem:[%s2 + $0x270] sm:$0xff]
  %v251 = vld [vmem:[%s2 + $0x278] sm:$0xff]
  %v252 = vld [vmem:[%s2 + $0x280] sm:$0xff]
  %v253 = vld [vmem:[%s2 + $0x288] sm:$0xff]
  %v254 = vld [vmem:[%s2 + $0x290] sm:$0xff]
  %v255 = vld [vmem:[%s2 + $0x298] sm:$0xff]
  %v256 = vld [vmem:[%s2 + $0x2a0] sm:$0xff]
  %v257 = vld [vmem:[%s2 + $0x2a8] sm:$0xff]
  %v258 = vld [vmem:[%s2 + $0x2b0] sm:$0xff]
  %v259 = vld [vmem:[%s2 + $0x2b8] sm:$0xff]
  %v260 = vld [vmem:[%s2 + $0x2c0] sm:$0xff]
  %v261 = vld [vmem:[%s2 + $0x2c8] sm:$0xff]
  %v262 = vld [vmem:[%s2 + $0x2d0] sm:$0xff]
  %v263 = vld [vmem:[%s2 + $0x2d8] sm:$0xff]
  %v264 = vld [vmem:[%s2 + $0x2e0] sm:$0xff]
  %v265 = vld [vmem:[%s2 + $0x2e8] sm:$0xff]
  %v266 = vld [vmem:[%s2 + $0x2f0] sm:$0xff]
  %v267 = vld [vmem:[%s2 + $0x2f8] sm:$0xff]
  %v268 = vld [vmem:[%s3] sm:$0x3]
  %v270 = vperm.slane %v268, 0
  %v271 = vperm.slane %v268, 1
  %v370 = vunpack.c.l.b16 %v172
  %v371 = vunpack.c.h.b16 %v172
  %v372 = vunpack.c.l.b16 %v173
  %v373 = vunpack.c.h.b16 %v173
  %v374 = vunpack.c.l.b16 %v174
  %v375 = vunpack.c.h.b16 %v174
  %v376 = vunpack.c.l.b16 %v175
  %v377 = vunpack.c.h.b16 %v175
  %v378 = vunpack.c.l.b16 %v176
  %v379 = vunpack.c.h.b16 %v176
  %v380 = vunpack.c.l.b16 %v177
  %v381 = vunpack.c.h.b16 %v177
  %v382 = vunpack.c.l.b16 %v178
  %v383 = vunpack.c.h.b16 %v178
  %v384 = vunpack.c.l.b16 %v179
  %v385 = vunpack.c.h.b16 %v179
  %v386 = vunpack.c.l.b16 %v180
  %v387 = vunpack.c.h.b16 %v180
  %v388 = vunpack.c.l.b16 %v181
  %v389 = vunpack.c.h.b16 %v181
  %v390 = vunpack.c.l.b16 %v182
  %v391 = vunpack.c.h.b16 %v182
  %v392 = vunpack.c.l.b16 %v183
  %v393 = vunpack.c.h.b16 %v183
  %v394 = vunpack.c.l.b16 %v184
  %v395 = vunpack.c.h.b16 %v184
  %v396 = vunpack.c.l.b16 %v185
  %v397 = vunpack.c.h.b16 %v185
  %v398 = vunpack.c.l.b16 %v186
  %v399 = vunpack.c.h.b16 %v186
  %v400 = vunpack.c.l.b16 %v187
  %v401 = vunpack.c.h.b16 %v187
  %v402 = vunpack.c.l.b16 %v188
  %v403 = vunpack.c.h.b16 %v188
  %v404 = vunpack.c.l.b16 %v189
  %v405 = vunpack.c.h.b16 %v189
  %v406 = vunpack.c.l.b16 %v190
  %v407 = vunpack.c.h.b16 %v190
  %v408 = vunpack.c.l.b16 %v191
  %v409 = vunpack.c.h.b16 %v191
  %v410 = vunpack.c.l.b16 %v192
  %v411 = vunpack.c.h.b16 %v192
  %v412 = vunpack.c.l.b16 %v193
  %v413 = vunpack.c.h.b16 %v193
  %v414 = vunpack.c.l.b16 %v194
  %v415 = vunpack.c.h.b16 %v194
  %v416 = vunpack.c.l.b16 %v195
  %v417 = vunpack.c.h.b16 %v195
  %v418 = vunpack.c.l.b16 %v196
  %v419 = vunpack.c.h.b16 %v196
  %v420 = vunpack.c.l.b16 %v197
  %v421 = vunpack.c.h.b16 %v197
  %v422 = vunpack.c.l.b16 %v198
  %v423 = vunpack.c.h.b16 %v198
  %v424 = vunpack.c.l.b16 %v199
  %v425 = vunpack.c.h.b16 %v199
  %v426 = vunpack.c.l.b16 %v200
  %v427 = vunpack.c.h.b16 %v200
  %v428 = vunpack.c.l.b16 %v201
  %v429 = vunpack.c.h.b16 %v201
  %v430 = vunpack.c.l.b16 %v202
  %v431 = vunpack.c.h.b16 %v202
  %v432 = vunpack.c.l.b16 %v203
  %v433 = vunpack.c.h.b16 %v203
  %v434 = vunpack.c.l.b16 %v204
  %v435 = vunpack.c.h.b16 %v204
  %v436 = vunpack.c.l.b16 %v205
  %v437 = vunpack.c.h.b16 %v205
  %v438 = vunpack.c.l.b16 %v206
  %v439 = vunpack.c.h.b16 %v206
  %v440 = vunpack.c.l.b16 %v207
  %v441 = vunpack.c.h.b16 %v207
  %v442 = vunpack.c.l.b16 %v208
  %v443 = vunpack.c.h.b16 %v208
  %v444 = vunpack.c.l.b16 %v209
  %v445 = vunpack.c.h.b16 %v209
  %v446 = vunpack.c.l.b16 %v210
  %v447 = vunpack.c.h.b16 %v210
  %v448 = vunpack.c.l.b16 %v211
  %v449 = vunpack.c.h.b16 %v211
  %v450 = vunpack.c.l.b16 %v212
  %v451 = vunpack.c.h.b16 %v212
  %v452 = vunpack.c.l.b16 %v213
  %v453 = vunpack.c.h.b16 %v213
  %v454 = vunpack.c.l.b16 %v214
  %v455 = vunpack.c.h.b16 %v214
  %v456 = vunpack.c.l.b16 %v215
  %v457 = vunpack.c.h.b16 %v215
  %v458 = vunpack.c.l.b16 %v216
  %v459 = vunpack.c.h.b16 %v216
  %v460 = vunpack.c.l.b16 %v217
  %v461 = vunpack.c.h.b16 %v217
  %v462 = vunpack.c.l.b16 %v218
  %v463 = vunpack.c.h.b16 %v218
  %v464 = vunpack.c.l.b16 %v219
  %v465 = vunpack.c.h.b16 %v219
  %v466 = vunpack.c.l.b16 %v220
  %v467 = vunpack.c.h.b16 %v220
  %v468 = vunpack.c.l.b16 %v221
  %v469 = vunpack.c.h.b16 %v221
  %v470 = vunpack.c.l.b16 %v222
  %v471 = vunpack.c.h.b16 %v222
  %v472 = vunpack.c.l.b16 %v223
  %v473 = vunpack.c.h.b16 %v223
  %v474 = vunpack.c.l.b16 %v224
  %v475 = vunpack.c.h.b16 %v224
  %v476 = vunpack.c.l.b16 %v225
  %v477 = vunpack.c.h.b16 %v225
  %v478 = vunpack.c.l.b16 %v226
  %v479 = vunpack.c.h.b16 %v226
  %v480 = vunpack.c.l.b16 %v227
  %v481 = vunpack.c.h.b16 %v227
  %v482 = vunpack.c.l.b16 %v228
  %v483 = vunpack.c.h.b16 %v228
  %v484 = vunpack.c.l.b16 %v229
  %v485 = vunpack.c.h.b16 %v229
  %v486 = vunpack.c.l.b16 %v230
  %v487 = vunpack.c.h.b16 %v230
  %v488 = vunpack.c.l.b16 %v231
  %v489 = vunpack.c.h.b16 %v231
  %v490 = vunpack.c.l.b16 %v232
  %v491 = vunpack.c.h.b16 %v232
  %v492 = vunpack.c.l.b16 %v233
  %v493 = vunpack.c.h.b16 %v233
  %v494 = vunpack.c.l.b16 %v234
  %v495 = vunpack.c.h.b16 %v234
  %v496 = vunpack.c.l.b16 %v235
  %v497 = vunpack.c.h.b16 %v235
  %v498 = vunpack.c.l.b16 %v236
  %v499 = vunpack.c.h.b16 %v236
  %v500 = vunpack.c.l.b16 %v237
  %v501 = vunpack.c.h.b16 %v237
  %v502 = vunpack.c.l.b16 %v238
  %v503 = vunpack.c.h.b16 %v238
  %v504 = vunpack.c.l.b16 %v239
  %v505 = vunpack.c.h.b16 %v239
  %v506 = vunpack.c.l.b16 %v240
  %v507 = vunpack.c.h.b16 %v240
  %v508 = vunpack.c.l.b16 %v241
  %v509 = vunpack.c.h.b16 %v241
  %v510 = vunpack.c.l.b16 %v242
  %v511 = vunpack.c.h.b16 %v242
  %v512 = vunpack.c.l.b16 %v243
  %v513 = vunpack.c.h.b16 %v243
  %v514 = vunpack.c.l.b16 %v244
  %v515 = vunpack.c.h.b16 %v244
  %v516 = vunpack.c.l.b16 %v245
  %v517 = vunpack.c.h.b16 %v245
  %v518 = vunpack.c.l.b16 %v246
  %v519 = vunpack.c.h.b16 %v246
  %v520 = vunpack.c.l.b16 %v247
  %v521 = vunpack.c.h.b16 %v247
  %v522 = vunpack.c.l.b16 %v248
  %v523 = vunpack.c.h.b16 %v248
  %v524 = vunpack.c.l.b16 %v249
  %v525 = vunpack.c.h.b16 %v249
  %v526 = vunpack.c.l.b16 %v250
  %v527 = vunpack.c.h.b16 %v250
  %v528 = vunpack.c.l.b16 %v251
  %v529 = vunpack.c.h.b16 %v251
  %v530 = vunpack.c.l.b16 %v252
  %v531 = vunpack.c.h.b16 %v252
  %v532 = vunpack.c.l.b16 %v253
  %v533 = vunpack.c.h.b16 %v253
  %v534 = vunpack.c.l.b16 %v254
  %v535 = vunpack.c.h.b16 %v254
  %v536 = vunpack.c.l.b16 %v255
  %v537 = vunpack.c.h.b16 %v255
  %v538 = vunpack.c.l.b16 %v256
  %v539 = vunpack.c.h.b16 %v256
  %v540 = vunpack.c.l.b16 %v257
  %v541 = vunpack.c.h.b16 %v257
  %v542 = vunpack.c.l.b16 %v258
  %v543 = vunpack.c.h.b16 %v258
  %v544 = vunpack.c.l.b16 %v259
  %v545 = vunpack.c.h.b16 %v259
  %v546 = vunpack.c.l.b16 %v260
  %v547 = vunpack.c.h.b16 %v260
  %v548 = vunpack.c.l.b16 %v261
  %v549 = vunpack.c.h.b16 %v261
  %v550 = vunpack.c.l.b16 %v262
  %v551 = vunpack.c.h.b16 %v262
  %v552 = vunpack.c.l.b16 %v263
  %v553 = vunpack.c.h.b16 %v263
  %v554 = vunpack.c.l.b16 %v264
  %v555 = vunpack.c.h.b16 %v264
  %v556 = vunpack.c.l.b16 %v265
  %v557 = vunpack.c.h.b16 %v265
  %v558 = vunpack.c.l.b16 %v266
  %v559 = vunpack.c.h.b16 %v266
  %v560 = vunpack.c.l.b16 %v267
  %v561 = vunpack.c.h.b16 %v267
  %v562 = vpack.c.b16 %v372, %v370
  %v563 = vpack.c.b16 %v373, %v371
  %v564 = vpack.c.b16 %v376, %v374
  %v565 = vpack.c.b16 %v377, %v375
  %v566 = vpack.c.b16 %v380, %v378
  %v567 = vpack.c.b16 %v381, %v379
  %v568 = vpack.c.b16 %v384, %v382
  %v569 = vpack.c.b16 %v385, %v383
  %v570 = vpack.c.b16 %v388, %v386
  %v571 = vpack.c.b16 %v389, %v387
  %v572 = vpack.c.b16 %v392, %v390
  %v573 = vpack.c.b16 %v393, %v391
  %v574 = vpack.c.b16 %v396, %v394
  %v575 = vpack.c.b16 %v397, %v395
  %v576 = vpack.c.b16 %v400, %v398
  %v577 = vpack.c.b16 %v401, %v399
  %v578 = vpack.c.b16 %v404, %v402
  %v579 = vpack.c.b16 %v405, %v403
  %v580 = vpack.c.b16 %v408, %v406
  %v581 = vpack.c.b16 %v409, %v407
  %v582 = vpack.c.b16 %v412, %v410
  %v583 = vpack.c.b16 %v413, %v411
  %v584 = vpack.c.b16 %v416, %v414
  %v585 = vpack.c.b16 %v417, %v415
  %v586 = vpack.c.b16 %v420, %v418
  %v587 = vpack.c.b16 %v421, %v419
  %v588 = vpack.c.b16 %v424, %v422
  %v589 = vpack.c.b16 %v425, %v423
  %v590 = vpack.c.b16 %v428, %v426
  %v591 = vpack.c.b16 %v429, %v427
  %v592 = vpack.c.b16 %v432, %v430
  %v593 = vpack.c.b16 %v433, %v431
  %v594 = vpack.c.b16 %v436, %v434
  %v595 = vpack.c.b16 %v437, %v435
  %v596 = vpack.c.b16 %v440, %v438
  %v597 = vpack.c.b16 %v441, %v439
  %v598 = vpack.c.b16 %v444, %v442
  %v599 = vpack.c.b16 %v445, %v443
  %v600 = vpack.c.b16 %v448, %v446
  %v601 = vpack.c.b16 %v449, %v447
  %v602 = vpack.c.b16 %v452, %v450
  %v603 = vpack.c.b16 %v453, %v451
  %v604 = vpack.c.b16 %v456, %v454
  %v605 = vpack.c.b16 %v457, %v455
  %v606 = vpack.c.b16 %v460, %v458
  %v607 = vpack.c.b16 %v461, %v459
  %v608 = vpack.c.b16 %v464, %v462
  %v609 = vpack.c.b16 %v465, %v463
  %v610 = vpack.c.b16 %v468, %v466
  %v611 = vpack.c.b16 %v469, %v467
  %v612 = vpack.c.b16 %v472, %v470
  %v613 = vpack.c.b16 %v473, %v471
  %v614 = vpack.c.b16 %v476, %v474
  %v615 = vpack.c.b16 %v477, %v475
  %v616 = vpack.c.b16 %v480, %v478
  %v617 = vpack.c.b16 %v481, %v479
  %v618 = vpack.c.b16 %v484, %v482
  %v619 = vpack.c.b16 %v485, %v483
  %v620 = vpack.c.b16 %v488, %v486
  %v621 = vpack.c.b16 %v489, %v487
  %v622 = vpack.c.b16 %v492, %v490
  %v623 = vpack.c.b16 %v493, %v491
  %v624 = vpack.c.b16 %v496, %v494
  %v625 = vpack.c.b16 %v497, %v495
  %v626 = vpack.c.b16 %v500, %v498
  %v627 = vpack.c.b16 %v501, %v499
  %v628 = vpack.c.b16 %v504, %v502
  %v629 = vpack.c.b16 %v505, %v503
  %v630 = vpack.c.b16 %v508, %v506
  %v631 = vpack.c.b16 %v509, %v507
  %v632 = vpack.c.b16 %v512, %v510
  %v633 = vpack.c.b16 %v513, %v511
  %v634 = vpack.c.b16 %v516, %v514
  %v635 = vpack.c.b16 %v517, %v515
  %v636 = vpack.c.b16 %v520, %v518
  %v637 = vpack.c.b16 %v521, %v519
  %v638 = vpack.c.b16 %v524, %v522
  %v639 = vpack.c.b16 %v525, %v523
  %v640 = vpack.c.b16 %v528, %v526
  %v641 = vpack.c.b16 %v529, %v527
  %v642 = vpack.c.b16 %v532, %v530
  %v643 = vpack.c.b16 %v533, %v531
  %v644 = vpack.c.b16 %v536, %v534
  %v645 = vpack.c.b16 %v537, %v535
  %v646 = vpack.c.b16 %v540, %v538
  %v647 = vpack.c.b16 %v541, %v539
  %v648 = vpack.c.b16 %v544, %v542
  %v649 = vpack.c.b16 %v545, %v543
  %v650 = vpack.c.b16 %v548, %v546
  %v651 = vpack.c.b16 %v549, %v547
  %v652 = vpack.c.b16 %v552, %v550
  %v653 = vpack.c.b16 %v553, %v551
  %v654 = vpack.c.b16 %v556, %v554
  %v655 = vpack.c.b16 %v557, %v555
  %v656 = vpack.c.b16 %v560, %v558
  %v657 = vpack.c.b16 %v561, %v559
  %754 = vmatpush.bf16.msra.mxu0 %v576
  %755 = vmatpush.bf16.msra.mxu0 %v574
  %756 = vmatpush.bf16.msra.mxu0 %v572
  %757 = vmatpush.bf16.msra.mxu0 %v570
  %758 = vmatpush.bf16.msra.mxu0 %v568
  %759 = vmatpush.bf16.msra.mxu0 %v566
  %760 = vmatpush.bf16.msra.mxu0 %v564
  %761 = vmatpush.bf16.msra.mxu0 %v562
  %762 = vmatmul.bf16.gmra.mxu0 %v160
  %v763 = vpop.f32.mrf.mxu0
  %v764 = vadd.f32 %v270, %v763
  %v765 = vpop.f32.mrf.mxu0
  %v766 = vadd.f32 %v270, %v765
  %767 = vmatmul.bf16.gmra.mxu0 %v166
  %v768 = vpop.f32.mrf.mxu0
  %v769 = vadd.f32 %v270, %v768
  %v770 = vpop.f32.mrf.mxu0
  %v771 = vadd.f32 %v270, %v770
  %772 = vdwg.mxu0
  %773 = vmatpush.bf16.msra.mxu0 %v592
  %774 = vmatpush.bf16.msra.mxu0 %v590
  %775 = vmatpush.bf16.msra.mxu0 %v588
  %776 = vmatpush.bf16.msra.mxu0 %v586
  %777 = vmatpush.bf16.msra.mxu0 %v584
  %778 = vmatpush.bf16.msra.mxu0 %v582
  %779 = vmatpush.bf16.msra.mxu0 %v580
  %780 = vmatpush.bf16.msra.mxu0 %v578
  %781 = vmatmul.bf16.gmra.mxu0 %v161
  %v782 = vpop.f32.mrf.mxu0
  %v783 = vadd.f32 %v764, %v782
  %v784 = vpop.f32.mrf.mxu0
  %v785 = vadd.f32 %v766, %v784
  %786 = vmatmul.bf16.gmra.mxu0 %v167
  %v787 = vpop.f32.mrf.mxu0
  %v788 = vadd.f32 %v769, %v787
  %v789 = vpop.f32.mrf.mxu0
  %v790 = vadd.f32 %v771, %v789
  %791 = vdwg.mxu0
  %792 = vmatpush.bf16.msra.mxu0 %v608
  %793 = vmatpush.bf16.msra.mxu0 %v606
  %794 = vmatpush.bf16.msra.mxu0 %v604
  %795 = vmatpush.bf16.msra.mxu0 %v602
  %796 = vmatpush.bf16.msra.mxu0 %v600
  %797 = vmatpush.bf16.msra.mxu0 %v598
  %798 = vmatpush.bf16.msra.mxu0 %v596
  %799 = vmatpush.bf16.msra.mxu0 %v594
  %800 = vmatmul.bf16.gmra.mxu0 %v162
  %v801 = vpop.f32.mrf.mxu0
  %v802 = vadd.f32 %v783, %v801
  %v803 = vpop.f32.mrf.mxu0
  %v804 = vadd.f32 %v785, %v803
  %805 = vmatmul.bf16.gmra.mxu0 %v168
  %v806 = vpop.f32.mrf.mxu0
  %v807 = vadd.f32 %v788, %v806
  %v808 = vpop.f32.mrf.mxu0
  %v809 = vadd.f32 %v790, %v808
  %810 = vdwg.mxu0
  %811 = vmatpush.bf16.msra.mxu0 %v624
  %812 = vmatpush.bf16.msra.mxu0 %v622
  %813 = vmatpush.bf16.msra.mxu0 %v620
  %814 = vmatpush.bf16.msra.mxu0 %v618
  %815 = vmatpush.bf16.msra.mxu0 %v616
  %816 = vmatpush.bf16.msra.mxu0 %v614
  %817 = vmatpush.bf16.msra.mxu0 %v612
  %818 = vmatpush.bf16.msra.mxu0 %v610
  %819 = vmatmul.bf16.gmra.mxu0 %v163
  %v820 = vpop.f32.mrf.mxu0
  %v821 = vadd.f32 %v802, %v820
  %v822 = vpop.f32.mrf.mxu0
  %v823 = vadd.f32 %v804, %v822
  %824 = vmatmul.bf16.gmra.mxu0 %v169
  %v825 = vpop.f32.mrf.mxu0
  %v826 = vadd.f32 %v807, %v825
  %v827 = vpop.f32.mrf.mxu0
  %v828 = vadd.f32 %v809, %v827
  %829 = vdwg.mxu0
  %830 = vmatpush.bf16.msra.mxu0 %v640
  %831 = vmatpush.bf16.msra.mxu0 %v638
  %832 = vmatpush.bf16.msra.mxu0 %v636
  %833 = vmatpush.bf16.msra.mxu0 %v634
  %834 = vmatpush.bf16.msra.mxu0 %v632
  %835 = vmatpush.bf16.msra.mxu0 %v630
  %836 = vmatpush.bf16.msra.mxu0 %v628
  %837 = vmatpush.bf16.msra.mxu0 %v626
  %838 = vmatmul.bf16.gmra.mxu0 %v164
  %v839 = vpop.f32.mrf.mxu0
  %v840 = vadd.f32 %v821, %v839
  %v841 = vpop.f32.mrf.mxu0
  %v842 = vadd.f32 %v823, %v841
  %843 = vmatmul.bf16.gmra.mxu0 %v170
  %v844 = vpop.f32.mrf.mxu0
  %v845 = vadd.f32 %v826, %v844
  %v846 = vpop.f32.mrf.mxu0
  %v847 = vadd.f32 %v828, %v846
  %848 = vdwg.mxu0
  %849 = vmatpush.bf16.msra.mxu0 %v656
  %850 = vmatpush.bf16.msra.mxu0 %v654
  %851 = vmatpush.bf16.msra.mxu0 %v652
  %852 = vmatpush.bf16.msra.mxu0 %v650
  %853 = vmatpush.bf16.msra.mxu0 %v648
  %854 = vmatpush.bf16.msra.mxu0 %v646
  %855 = vmatpush.bf16.msra.mxu0 %v644
  %856 = vmatpush.bf16.msra.mxu0 %v642
  %857 = vmatmul.bf16.gmra.mxu0 %v165
  %v858 = vpop.f32.mrf.mxu0
  %v859 = vadd.f32 %v840, %v858
  %v860 = vpop.f32.mrf.mxu0
  %v861 = vadd.f32 %v842, %v860
  %862 = vmatmul.bf16.gmra.mxu0 %v171
  %v863 = vpop.f32.mrf.mxu0
  %v864 = vadd.f32 %v845, %v863
  %v865 = vpop.f32.mrf.mxu0
  %v866 = vadd.f32 %v847, %v865
  %867 = vdwg.mxu0
  %868 = vmatpush.bf16.msra.mxu0 %v577
  %869 = vmatpush.bf16.msra.mxu0 %v575
  %870 = vmatpush.bf16.msra.mxu0 %v573
  %871 = vmatpush.bf16.msra.mxu0 %v571
  %872 = vmatpush.bf16.msra.mxu0 %v569
  %873 = vmatpush.bf16.msra.mxu0 %v567
  %874 = vmatpush.bf16.msra.mxu0 %v565
  %875 = vmatpush.bf16.msra.mxu0 %v563
  %876 = vmatmul.bf16.gmra.mxu0 %v160
  %v877 = vpop.f32.mrf.mxu0
  %v878 = vadd.f32 %v271, %v877
  %v879 = vpop.f32.mrf.mxu0
  %v880 = vadd.f32 %v271, %v879
  %881 = vmatmul.bf16.gmra.mxu0 %v166
  %v882 = vpop.f32.mrf.mxu0
  %v883 = vadd.f32 %v271, %v882
  %v884 = vpop.f32.mrf.mxu0
  %v885 = vadd.f32 %v271, %v884
  %886 = vdwg.mxu0
  %887 = vmatpush.bf16.msra.mxu0 %v593
  %888 = vmatpush.bf16.msra.mxu0 %v591
  %889 = vmatpush.bf16.msra.mxu0 %v589
  %890 = vmatpush.bf16.msra.mxu0 %v587
  %891 = vmatpush.bf16.msra.mxu0 %v585
  %892 = vmatpush.bf16.msra.mxu0 %v583
  %893 = vmatpush.bf16.msra.mxu0 %v581
  %894 = vmatpush.bf16.msra.mxu0 %v579
  %895 = vmatmul.bf16.gmra.mxu0 %v161
  %v896 = vpop.f32.mrf.mxu0
  %v897 = vadd.f32 %v878, %v896
  %v898 = vpop.f32.mrf.mxu0
  %v899 = vadd.f32 %v880, %v898
  %900 = vmatmul.bf16.gmra.mxu0 %v167
  %v901 = vpop.f32.mrf.mxu0
  %v902 = vadd.f32 %v883, %v901
  %v903 = vpop.f32.mrf.mxu0
  %v904 = vadd.f32 %v885, %v903
  %905 = vdwg.mxu0
  %906 = vmatpush.bf16.msra.mxu0 %v609
  %907 = vmatpush.bf16.msra.mxu0 %v607
  %908 = vmatpush.bf16.msra.mxu0 %v605
  %909 = vmatpush.bf16.msra.mxu0 %v603
  %910 = vmatpush.bf16.msra.mxu0 %v601
  %911 = vmatpush.bf16.msra.mxu0 %v599
  %912 = vmatpush.bf16.msra.mxu0 %v597
  %913 = vmatpush.bf16.msra.mxu0 %v595
  %914 = vmatmul.bf16.gmra.mxu0 %v162
  %v915 = vpop.f32.mrf.mxu0
  %v916 = vadd.f32 %v897, %v915
  %v917 = vpop.f32.mrf.mxu0
  %v918 = vadd.f32 %v899, %v917
  %919 = vmatmul.bf16.gmra.mxu0 %v168
  %v920 = vpop.f32.mrf.mxu0
  %v921 = vadd.f32 %v902, %v920
  %v922 = vpop.f32.mrf.mxu0
  %v923 = vadd.f32 %v904, %v922
  %924 = vdwg.mxu0
  %925 = vmatpush.bf16.msra.mxu0 %v625
  %926 = vmatpush.bf16.msra.mxu0 %v623
  %927 = vmatpush.bf16.msra.mxu0 %v621
  %928 = vmatpush.bf16.msra.mxu0 %v619
  %929 = vmatpush.bf16.msra.mxu0 %v617
  %930 = vmatpush.bf16.msra.mxu0 %v615
  %931 = vmatpush.bf16.msra.mxu0 %v613
  %932 = vmatpush.bf16.msra.mxu0 %v611
  %933 = vmatmul.bf16.gmra.mxu0 %v163
  %v934 = vpop.f32.mrf.mxu0
  %v935 = vadd.f32 %v916, %v934
  %v936 = vpop.f32.mrf.mxu0
  %v937 = vadd.f32 %v918, %v936
  %938 = vmatmul.bf16.gmra.mxu0 %v169
  %v939 = vpop.f32.mrf.mxu0
  %v940 = vadd.f32 %v921, %v939
  %v941 = vpop.f32.mrf.mxu0
  %v942 = vadd.f32 %v923, %v941
  %943 = vdwg.mxu0
  %944 = vmatpush.bf16.msra.mxu0 %v641
  %945 = vmatpush.bf16.msra.mxu0 %v639
  %946 = vmatpush.bf16.msra.mxu0 %v637
  %947 = vmatpush.bf16.msra.mxu0 %v635
  %948 = vmatpush.bf16.msra.mxu0 %v633
  %949 = vmatpush.bf16.msra.mxu0 %v631
  %950 = vmatpush.bf16.msra.mxu0 %v629
  %951 = vmatpush.bf16.msra.mxu0 %v627
  %952 = vmatmul.bf16.gmra.mxu0 %v164
  %v953 = vpop.f32.mrf.mxu0
  %v954 = vadd.f32 %v935, %v953
  %v955 = vpop.f32.mrf.mxu0
  %v956 = vadd.f32 %v937, %v955
  %957 = vmatmul.bf16.gmra.mxu0 %v170
  %v958 = vpop.f32.mrf.mxu0
  %v959 = vadd.f32 %v940, %v958
  %v960 = vpop.f32.mrf.mxu0
  %v961 = vadd.f32 %v942, %v960
  %962 = vdwg.mxu0
  %963 = vmatpush.bf16.msra.mxu0 %v657
  %964 = vmatpush.bf16.msra.mxu0 %v655
  %965 = vmatpush.bf16.msra.mxu0 %v653
  %966 = vmatpush.bf16.msra.mxu0 %v651
  %967 = vmatpush.bf16.msra.mxu0 %v649
  %968 = vmatpush.bf16.msra.mxu0 %v647
  %969 = vmatpush.bf16.msra.mxu0 %v645
  %970 = vmatpush.bf16.msra.mxu0 %v643
  %971 = vmatmul.bf16.gmra.mxu0 %v165
  %v972 = vpop.f32.mrf.mxu0
  %v973 = vadd.f32 %v954, %v972
  %v974 = vpop.f32.mrf.mxu0
  %v975 = vadd.f32 %v956, %v974
  %976 = vmatmul.bf16.gmra.mxu0 %v171
  %v977 = vpop.f32.mrf.mxu0
  %v978 = vadd.f32 %v959, %v977
  %v979 = vpop.f32.mrf.mxu0
  %v980 = vadd.f32 %v961, %v979
  %981 = vdwg.mxu0
  %v982 = vpack.c.bf16 %v973, %v859
  %v983 = vpack.c.bf16 %v975, %v861
  %v984 = vpack.c.bf16 %v978, %v864
  %v985 = vpack.c.bf16 %v980, %v866
  %v986 = vpack.c.bf16 %v39, %v38
  %v987 = vpack.c.bf16 %v41, %v40
  %v988 = vpack.c.bf16 %v43, %v42
  %v989 = vpack.c.bf16 %v45, %v44
  %v994 = vunpack.c.l.b16 %v982
  %v995 = vunpack.c.h.b16 %v982
  %v996 = vunpack.c.l.b16 %v983
  %v997 = vunpack.c.h.b16 %v983
  %v998 = vunpack.c.l.b16 %v984
  %v999 = vunpack.c.h.b16 %v984
  %v1000 = vunpack.c.l.b16 %v985
  %v1001 = vunpack.c.h.b16 %v985
  %v1002 = vpack.c.b16 %v996, %v994
  %v1003 = vpack.c.b16 %v997, %v995
  %v1004 = vpack.c.b16 %v1000, %v998
  %v1005 = vpack.c.b16 %v1001, %v999
  %v1014 = vunpack.c.l.b16 %v986
  %v1015 = vunpack.c.h.b16 %v986
  %v1016 = vunpack.c.l.b16 %v987
  %v1017 = vunpack.c.h.b16 %v987
  %v1018 = vunpack.c.l.b16 %v988
  %v1019 = vunpack.c.h.b16 %v988
  %v1020 = vunpack.c.l.b16 %v989
  %v1021 = vunpack.c.h.b16 %v989
  %v1022 = vpack.c.b16 %v1016, %v1014
  %v1023 = vpack.c.b16 %v1017, %v1015
  %v1024 = vpack.c.b16 %v1020, %v1018
  %v1025 = vpack.c.b16 %v1021, %v1019
  %v1030 = vld [vmem:[%s4] sm:$0xff]
  %v1031 = vld [vmem:[%s4 + $0x8] sm:$0xff]
  %v1032 = vld [vmem:[%s4 + $0x10] sm:$0xff]
  %v1033 = vld [vmem:[%s4 + $0x18] sm:$0xff]
  %v1034 = vld [vmem:[%s4 + $0x20] sm:$0xff]
  %v1035 = vld [vmem:[%s4 + $0x28] sm:$0xff]
  %v1036 = vld [vmem:[%s4 + $0x30] sm:$0xff]
  %v1037 = vld [vmem:[%s4 + $0x38] sm:$0xff]
  %v1038 = vld [vmem:[%s4 + $0x40] sm:$0xff]
  %v1039 = vld [vmem:[%s4 + $0x48] sm:$0xff]
  %v1040 = vld [vmem:[%s4 + $0x50] sm:$0xff]
  %v1041 = vld [vmem:[%s4 + $0x58] sm:$0xff]
  %v1042 = vld [vmem:[%s4 + $0x60] sm:$0xff]
  %v1043 = vld [vmem:[%s4 + $0x68] sm:$0xff]
  %v1044 = vld [vmem:[%s4 + $0x70] sm:$0xff]
  %v1045 = vld [vmem:[%s4 + $0x78] sm:$0xff]
  %v1046 = vld [vmem:[%s4 + $0x80] sm:$0xff]
  %v1047 = vld [vmem:[%s4 + $0x88] sm:$0xff]
  %v1048 = vld [vmem:[%s4 + $0x90] sm:$0xff]
  %v1049 = vld [vmem:[%s4 + $0x98] sm:$0xff]
  %v1050 = vld [vmem:[%s4 + $0xa0] sm:$0xff]
  %v1051 = vld [vmem:[%s4 + $0xa8] sm:$0xff]
  %v1052 = vld [vmem:[%s4 + $0xb0] sm:$0xff]
  %v1053 = vld [vmem:[%s4 + $0xb8] sm:$0xff]
  %v1054 = vld [vmem:[%s4 + $0xc0] sm:$0xff]
  %v1055 = vld [vmem:[%s4 + $0xc8] sm:$0xff]
  %v1056 = vld [vmem:[%s4 + $0xd0] sm:$0xff]
  %v1057 = vld [vmem:[%s4 + $0xd8] sm:$0xff]
  %v1058 = vld [vmem:[%s4 + $0xe0] sm:$0xff]
  %v1059 = vld [vmem:[%s4 + $0xe8] sm:$0xff]
  %v1060 = vld [vmem:[%s4 + $0xf0] sm:$0xff]
  %v1061 = vld [vmem:[%s4 + $0xf8] sm:$0xff]
  %v1062 = vld [vmem:[%s4 + $0x100] sm:$0xff]
  %v1063 = vld [vmem:[%s4 + $0x108] sm:$0xff]
  %v1064 = vld [vmem:[%s4 + $0x110] sm:$0xff]
  %v1065 = vld [vmem:[%s4 + $0x118] sm:$0xff]
  %v1066 = vld [vmem:[%s4 + $0x120] sm:$0xff]
  %v1067 = vld [vmem:[%s4 + $0x128] sm:$0xff]
  %v1068 = vld [vmem:[%s4 + $0x130] sm:$0xff]
  %v1069 = vld [vmem:[%s4 + $0x138] sm:$0xff]
  %v1070 = vld [vmem:[%s4 + $0x140] sm:$0xff]
  %v1071 = vld [vmem:[%s4 + $0x148] sm:$0xff]
  %v1072 = vld [vmem:[%s4 + $0x150] sm:$0xff]
  %v1073 = vld [vmem:[%s4 + $0x158] sm:$0xff]
  %v1074 = vld [vmem:[%s4 + $0x160] sm:$0xff]
  %v1075 = vld [vmem:[%s4 + $0x168] sm:$0xff]
  %v1076 = vld [vmem:[%s4 + $0x170] sm:$0xff]
  %v1077 = vld [vmem:[%s4 + $0x178] sm:$0xff]
  %v1078 = vld [vmem:[%s4 + $0x180] sm:$0xff]
  %v1079 = vld [vmem:[%s4 + $0x188] sm:$0xff]
  %v1080 = vld [vmem:[%s4 + $0x190] sm:$0xff]
  %v1081 = vld [vmem:[%s4 + $0x198] sm:$0xff]
  %v1082 = vld [vmem:[%s4 + $0x1a0] sm:$0xff]
  %v1083 = vld [vmem:[%s4 + $0x1a8] sm:$0xff]
  %v1084 = vld [vmem:[%s4 + $0x1b0] sm:$0xff]
  %v1085 = vld [vmem:[%s4 + $0x1b8] sm:$0xff]
  %v1086 = vld [vmem:[%s4 + $0x1c0] sm:$0xff]
  %v1087 = vld [vmem:[%s4 + $0x1c8] sm:$0xff]
  %v1088 = vld [vmem:[%s4 + $0x1d0] sm:$0xff]
  %v1089 = vld [vmem:[%s4 + $0x1d8] sm:$0xff]
  %v1090 = vld [vmem:[%s4 + $0x1e0] sm:$0xff]
  %v1091 = vld [vmem:[%s4 + $0x1e8] sm:$0xff]
  %v1092 = vld [vmem:[%s4 + $0x1f0] sm:$0xff]
  %v1093 = vld [vmem:[%s4 + $0x1f8] sm:$0xff]
  %v1158 = vunpack.c.l.b16 %v1030
  %v1159 = vunpack.c.h.b16 %v1030
  %v1160 = vunpack.c.l.b16 %v1031
  %v1161 = vunpack.c.h.b16 %v1031
  %v1162 = vunpack.c.l.b16 %v1032
  %v1163 = vunpack.c.h.b16 %v1032
  %v1164 = vunpack.c.l.b16 %v1033
  %v1165 = vunpack.c.h.b16 %v1033
  %v1166 = vunpack.c.l.b16 %v1034
  %v1167 = vunpack.c.h.b16 %v1034
  %v1168 = vunpack.c.l.b16 %v1035
  %v1169 = vunpack.c.h.b16 %v1035
  %v1170 = vunpack.c.l.b16 %v1036
  %v1171 = vunpack.c.h.b16 %v1036
  %v1172 = vunpack.c.l.b16 %v1037
  %v1173 = vunpack.c.h.b16 %v1037
  %v1174 = vunpack.c.l.b16 %v1038
  %v1175 = vunpack.c.h.b16 %v1038
  %v1176 = vunpack.c.l.b16 %v1039
  %v1177 = vunpack.c.h.b16 %v1039
  %v1178 = vunpack.c.l.b16 %v1040
  %v1179 = vunpack.c.h.b16 %v1040
  %v1180 = vunpack.c.l.b16 %v1041
  %v1181 = vunpack.c.h.b16 %v1041
  %v1182 = vunpack.c.l.b16 %v1042
  %v1183 = vunpack.c.h.b16 %v1042
  %v1184 = vunpack.c.l.b16 %v1043
  %v1185 = vunpack.c.h.b16 %v1043
  %v1186 = vunpack.c.l.b16 %v1044
  %v1187 = vunpack.c.h.b16 %v1044
  %v1188 = vunpack.c.l.b16 %v1045
  %v1189 = vunpack.c.h.b16 %v1045
  %v1190 = vunpack.c.l.b16 %v1046
  %v1191 = vunpack.c.h.b16 %v1046
  %v1192 = vunpack.c.l.b16 %v1047
  %v1193 = vunpack.c.h.b16 %v1047
  %v1194 = vunpack.c.l.b16 %v1048
  %v1195 = vunpack.c.h.b16 %v1048
  %v1196 = vunpack.c.l.b16 %v1049
  %v1197 = vunpack.c.h.b16 %v1049
  %v1198 = vunpack.c.l.b16 %v1050
  %v1199 = vunpack.c.h.b16 %v1050
  %v1200 = vunpack.c.l.b16 %v1051
  %v1201 = vunpack.c.h.b16 %v1051
  %v1202 = vunpack.c.l.b16 %v1052
  %v1203 = vunpack.c.h.b16 %v1052
  %v1204 = vunpack.c.l.b16 %v1053
  %v1205 = vunpack.c.h.b16 %v1053
  %v1206 = vunpack.c.l.b16 %v1054
  %v1207 = vunpack.c.h.b16 %v1054
  %v1208 = vunpack.c.l.b16 %v1055
  %v1209 = vunpack.c.h.b16 %v1055
  %v1210 = vunpack.c.l.b16 %v1056
  %v1211 = vunpack.c.h.b16 %v1056
  %v1212 = vunpack.c.l.b16 %v1057
  %v1213 = vunpack.c.h.b16 %v1057
  %v1214 = vunpack.c.l.b16 %v1058
  %v1215 = vunpack.c.h.b16 %v1058
  %v1216 = vunpack.c.l.b16 %v1059
  %v1217 = vunpack.c.h.b16 %v1059
  %v1218 = vunpack.c.l.b16 %v1060
  %v1219 = vunpack.c.h.b16 %v1060
  %v1220 = vunpack.c.l.b16 %v1061
  %v1221 = vunpack.c.h.b16 %v1061
  %v1222 = vunpack.c.l.b16 %v1062
  %v1223 = vunpack.c.h.b16 %v1062
  %v1224 = vunpack.c.l.b16 %v1063
  %v1225 = vunpack.c.h.b16 %v1063
  %v1226 = vunpack.c.l.b16 %v1064
  %v1227 = vunpack.c.h.b16 %v1064
  %v1228 = vunpack.c.l.b16 %v1065
  %v1229 = vunpack.c.h.b16 %v1065
  %v1230 = vunpack.c.l.b16 %v1066
  %v1231 = vunpack.c.h.b16 %v1066
  %v1232 = vunpack.c.l.b16 %v1067
  %v1233 = vunpack.c.h.b16 %v1067
  %v1234 = vunpack.c.l.b16 %v1068
  %v1235 = vunpack.c.h.b16 %v1068
  %v1236 = vunpack.c.l.b16 %v1069
  %v1237 = vunpack.c.h.b16 %v1069
  %v1238 = vunpack.c.l.b16 %v1070
  %v1239 = vunpack.c.h.b16 %v1070
  %v1240 = vunpack.c.l.b16 %v1071
  %v1241 = vunpack.c.h.b16 %v1071
  %v1242 = vunpack.c.l.b16 %v1072
  %v1243 = vunpack.c.h.b16 %v1072
  %v1244 = vunpack.c.l.b16 %v1073
  %v1245 = vunpack.c.h.b16 %v1073
  %v1246 = vunpack.c.l.b16 %v1074
  %v1247 = vunpack.c.h.b16 %v1074
  %v1248 = vunpack.c.l.b16 %v1075
  %v1249 = vunpack.c.h.b16 %v1075
  %v1250 = vunpack.c.l.b16 %v1076
  %v1251 = vunpack.c.h.b16 %v1076
  %v1252 = vunpack.c.l.b16 %v1077
  %v1253 = vunpack.c.h.b16 %v1077
  %v1254 = vunpack.c.l.b16 %v1078
  %v1255 = vunpack.c.h.b16 %v1078
  %v1256 = vunpack.c.l.b16 %v1079
  %v1257 = vunpack.c.h.b16 %v1079
  %v1258 = vunpack.c.l.b16 %v1080
  %v1259 = vunpack.c.h.b16 %v1080
  %v1260 = vunpack.c.l.b16 %v1081
  %v1261 = vunpack.c.h.b16 %v1081
  %v1262 = vunpack.c.l.b16 %v1082
  %v1263 = vunpack.c.h.b16 %v1082
  %v1264 = vunpack.c.l.b16 %v1083
  %v1265 = vunpack.c.h.b16 %v1083
  %v1266 = vunpack.c.l.b16 %v1084
  %v1267 = vunpack.c.h.b16 %v1084
  %v1268 = vunpack.c.l.b16 %v1085
  %v1269 = vunpack.c.h.b16 %v1085
  %v1270 = vunpack.c.l.b16 %v1086
  %v1271 = vunpack.c.h.b16 %v1086
  %v1272 = vunpack.c.l.b16 %v1087
  %v1273 = vunpack.c.h.b16 %v1087
  %v1274 = vunpack.c.l.b16 %v1088
  %v1275 = vunpack.c.h.b16 %v1088
  %v1276 = vunpack.c.l.b16 %v1089
  %v1277 = vunpack.c.h.b16 %v1089
  %v1278 = vunpack.c.l.b16 %v1090
  %v1279 = vunpack.c.h.b16 %v1090
  %v1280 = vunpack.c.l.b16 %v1091
  %v1281 = vunpack.c.h.b16 %v1091
  %v1282 = vunpack.c.l.b16 %v1092
  %v1283 = vunpack.c.h.b16 %v1092
  %v1284 = vunpack.c.l.b16 %v1093
  %v1285 = vunpack.c.h.b16 %v1093
  %v1286 = vpack.c.b16 %v1160, %v1158
  %v1287 = vpack.c.b16 %v1161, %v1159
  %v1288 = vpack.c.b16 %v1164, %v1162
  %v1289 = vpack.c.b16 %v1165, %v1163
  %v1290 = vpack.c.b16 %v1168, %v1166
  %v1291 = vpack.c.b16 %v1169, %v1167
  %v1292 = vpack.c.b16 %v1172, %v1170
  %v1293 = vpack.c.b16 %v1173, %v1171
  %v1294 = vpack.c.b16 %v1176, %v1174
  %v1295 = vpack.c.b16 %v1177, %v1175
  %v1296 = vpack.c.b16 %v1180, %v1178
  %v1297 = vpack.c.b16 %v1181, %v1179
  %v1298 = vpack.c.b16 %v1184, %v1182
  %v1299 = vpack.c.b16 %v1185, %v1183
  %v1300 = vpack.c.b16 %v1188, %v1186
  %v1301 = vpack.c.b16 %v1189, %v1187
  %v1302 = vpack.c.b16 %v1192, %v1190
  %v1303 = vpack.c.b16 %v1193, %v1191
  %v1304 = vpack.c.b16 %v1196, %v1194
  %v1305 = vpack.c.b16 %v1197, %v1195
  %v1306 = vpack.c.b16 %v1200, %v1198
  %v1307 = vpack.c.b16 %v1201, %v1199
  %v1308 = vpack.c.b16 %v1204, %v1202
  %v1309 = vpack.c.b16 %v1205, %v1203
  %v1310 = vpack.c.b16 %v1208, %v1206
  %v1311 = vpack.c.b16 %v1209, %v1207
  %v1312 = vpack.c.b16 %v1212, %v1210
  %v1313 = vpack.c.b16 %v1213, %v1211
  %v1314 = vpack.c.b16 %v1216, %v1214
  %v1315 = vpack.c.b16 %v1217, %v1215
  %v1316 = vpack.c.b16 %v1220, %v1218
  %v1317 = vpack.c.b16 %v1221, %v1219
  %v1318 = vpack.c.b16 %v1224, %v1222
  %v1319 = vpack.c.b16 %v1225, %v1223
  %v1320 = vpack.c.b16 %v1228, %v1226
  %v1321 = vpack.c.b16 %v1229, %v1227
  %v1322 = vpack.c.b16 %v1232, %v1230
  %v1323 = vpack.c.b16 %v1233, %v1231
  %v1324 = vpack.c.b16 %v1236, %v1234
  %v1325 = vpack.c.b16 %v1237, %v1235
  %v1326 = vpack.c.b16 %v1240, %v1238
  %v1327 = vpack.c.b16 %v1241, %v1239
  %v1328 = vpack.c.b16 %v1244, %v1242
  %v1329 = vpack.c.b16 %v1245, %v1243
  %v1330 = vpack.c.b16 %v1248, %v1246
  %v1331 = vpack.c.b16 %v1249, %v1247
  %v1332 = vpack.c.b16 %v1252, %v1250
  %v1333 = vpack.c.b16 %v1253, %v1251
  %v1334 = vpack.c.b16 %v1256, %v1254
  %v1335 = vpack.c.b16 %v1257, %v1255
  %v1336 = vpack.c.b16 %v1260, %v1258
  %v1337 = vpack.c.b16 %v1261, %v1259
  %v1338 = vpack.c.b16 %v1264, %v1262
  %v1339 = vpack.c.b16 %v1265, %v1263
  %v1340 = vpack.c.b16 %v1268, %v1266
  %v1341 = vpack.c.b16 %v1269, %v1267
  %v1342 = vpack.c.b16 %v1272, %v1270
  %v1343 = vpack.c.b16 %v1273, %v1271
  %v1344 = vpack.c.b16 %v1276, %v1274
  %v1345 = vpack.c.b16 %v1277, %v1275
  %v1346 = vpack.c.b16 %v1280, %v1278
  %v1347 = vpack.c.b16 %v1281, %v1279
  %v1348 = vpack.c.b16 %v1284, %v1282
  %v1349 = vpack.c.b16 %v1285, %v1283
  %1414 = vmatpush.bf16.msra.mxu0 %v1300
  %1415 = vmatpush.bf16.msra.mxu0 %v1298
  %1416 = vmatpush.bf16.msra.mxu0 %v1296
  %1417 = vmatpush.bf16.msra.mxu0 %v1294
  %1418 = vmatpush.bf16.msra.mxu0 %v1292
  %1419 = vmatpush.bf16.msra.mxu0 %v1290
  %1420 = vmatpush.bf16.msra.mxu0 %v1288
  %1421 = vmatpush.bf16.msra.mxu0 %v1286
  %1422 = vmatmul.bf16.gmra.mxu0 %v1002
  %v1423 = vpop.f32.mrf.mxu0
  %v1424 = vadd.f32 0.0, %v1423
  %v1425 = vpop.f32.mrf.mxu0
  %v1426 = vadd.f32 0.0, %v1425
  %1427 = vmatmul.bf16.gmra.mxu0 %v1004
  %v1428 = vpop.f32.mrf.mxu0
  %v1429 = vadd.f32 0.0, %v1428
  %v1430 = vpop.f32.mrf.mxu0
  %v1431 = vadd.f32 0.0, %v1430
  %1432 = vdwg.mxu0
  %1433 = vmatpush.bf16.msra.mxu0 %v1316
  %1434 = vmatpush.bf16.msra.mxu0 %v1314
  %1435 = vmatpush.bf16.msra.mxu0 %v1312
  %1436 = vmatpush.bf16.msra.mxu0 %v1310
  %1437 = vmatpush.bf16.msra.mxu0 %v1308
  %1438 = vmatpush.bf16.msra.mxu0 %v1306
  %1439 = vmatpush.bf16.msra.mxu0 %v1304
  %1440 = vmatpush.bf16.msra.mxu0 %v1302
  %1441 = vmatmul.bf16.gmra.mxu0 %v1003
  %v1442 = vpop.f32.mrf.mxu0
  %v1443 = vadd.f32 %v1424, %v1442
  %v1444 = vpop.f32.mrf.mxu0
  %v1445 = vadd.f32 %v1426, %v1444
  %1446 = vmatmul.bf16.gmra.mxu0 %v1005
  %v1447 = vpop.f32.mrf.mxu0
  %v1448 = vadd.f32 %v1429, %v1447
  %v1449 = vpop.f32.mrf.mxu0
  %v1450 = vadd.f32 %v1431, %v1449
  %1451 = vdwg.mxu0
  %1452 = vmatpush.bf16.msra.mxu0 %v1332
  %1453 = vmatpush.bf16.msra.mxu0 %v1330
  %1454 = vmatpush.bf16.msra.mxu0 %v1328
  %1455 = vmatpush.bf16.msra.mxu0 %v1326
  %1456 = vmatpush.bf16.msra.mxu0 %v1324
  %1457 = vmatpush.bf16.msra.mxu0 %v1322
  %1458 = vmatpush.bf16.msra.mxu0 %v1320
  %1459 = vmatpush.bf16.msra.mxu0 %v1318
  %1460 = vmatmul.bf16.gmra.mxu0 %v1022
  %v1461 = vpop.f32.mrf.mxu0
  %v1462 = vadd.f32 %v1443, %v1461
  %v1463 = vpop.f32.mrf.mxu0
  %v1464 = vadd.f32 %v1445, %v1463
  %1465 = vmatmul.bf16.gmra.mxu0 %v1024
  %v1466 = vpop.f32.mrf.mxu0
  %v1467 = vadd.f32 %v1448, %v1466
  %v1468 = vpop.f32.mrf.mxu0
  %v1469 = vadd.f32 %v1450, %v1468
  %1470 = vdwg.mxu0
  %1471 = vmatpush.bf16.msra.mxu0 %v1348
  %1472 = vmatpush.bf16.msra.mxu0 %v1346
  %1473 = vmatpush.bf16.msra.mxu0 %v1344
  %1474 = vmatpush.bf16.msra.mxu0 %v1342
  %1475 = vmatpush.bf16.msra.mxu0 %v1340
  %1476 = vmatpush.bf16.msra.mxu0 %v1338
  %1477 = vmatpush.bf16.msra.mxu0 %v1336
  %1478 = vmatpush.bf16.msra.mxu0 %v1334
  %1479 = vmatmul.bf16.gmra.mxu0 %v1023
  %v1480 = vpop.f32.mrf.mxu0
  %v1481 = vadd.f32 %v1462, %v1480
  %v1482 = vpop.f32.mrf.mxu0
  %v1483 = vadd.f32 %v1464, %v1482
  %1484 = vmatmul.bf16.gmra.mxu0 %v1025
  %v1485 = vpop.f32.mrf.mxu0
  %v1486 = vadd.f32 %v1467, %v1485
  %v1487 = vpop.f32.mrf.mxu0
  %v1488 = vadd.f32 %v1469, %v1487
  %1489 = vdwg.mxu0
  %1490 = vmatpush.bf16.msra.mxu0 %v1301
  %1491 = vmatpush.bf16.msra.mxu0 %v1299
  %1492 = vmatpush.bf16.msra.mxu0 %v1297
  %1493 = vmatpush.bf16.msra.mxu0 %v1295
  %1494 = vmatpush.bf16.msra.mxu0 %v1293
  %1495 = vmatpush.bf16.msra.mxu0 %v1291
  %1496 = vmatpush.bf16.msra.mxu0 %v1289
  %1497 = vmatpush.bf16.msra.mxu0 %v1287
  %1498 = vmatmul.bf16.gmra.mxu0 %v1002
  %v1499 = vpop.f32.mrf.mxu0
  %v1500 = vadd.f32 0.0, %v1499
  %v1501 = vpop.f32.mrf.mxu0
  %v1502 = vadd.f32 0.0, %v1501
  %1503 = vmatmul.bf16.gmra.mxu0 %v1004
  %v1504 = vpop.f32.mrf.mxu0
  %v1505 = vadd.f32 0.0, %v1504
  %v1506 = vpop.f32.mrf.mxu0
  %v1507 = vadd.f32 0.0, %v1506
  %1508 = vdwg.mxu0
  %1509 = vmatpush.bf16.msra.mxu0 %v1317
  %1510 = vmatpush.bf16.msra.mxu0 %v1315
  %1511 = vmatpush.bf16.msra.mxu0 %v1313
  %1512 = vmatpush.bf16.msra.mxu0 %v1311
  %1513 = vmatpush.bf16.msra.mxu0 %v1309
  %1514 = vmatpush.bf16.msra.mxu0 %v1307
  %1515 = vmatpush.bf16.msra.mxu0 %v1305
  %1516 = vmatpush.bf16.msra.mxu0 %v1303
  %1517 = vmatmul.bf16.gmra.mxu0 %v1003
  %v1518 = vpop.f32.mrf.mxu0
  %v1519 = vadd.f32 %v1500, %v1518
  %v1520 = vpop.f32.mrf.mxu0
  %v1521 = vadd.f32 %v1502, %v1520
  %1522 = vmatmul.bf16.gmra.mxu0 %v1005
  %v1523 = vpop.f32.mrf.mxu0
  %v1524 = vadd.f32 %v1505, %v1523
  %v1525 = vpop.f32.mrf.mxu0
  %v1526 = vadd.f32 %v1507, %v1525
  %1527 = vdwg.mxu0
  %1528 = vmatpush.bf16.msra.mxu0 %v1333
  %1529 = vmatpush.bf16.msra.mxu0 %v1331
  %1530 = vmatpush.bf16.msra.mxu0 %v1329
  %1531 = vmatpush.bf16.msra.mxu0 %v1327
  %1532 = vmatpush.bf16.msra.mxu0 %v1325
  %1533 = vmatpush.bf16.msra.mxu0 %v1323
  %1534 = vmatpush.bf16.msra.mxu0 %v1321
  %1535 = vmatpush.bf16.msra.mxu0 %v1319
  %1536 = vmatmul.bf16.gmra.mxu0 %v1022
  %v1537 = vpop.f32.mrf.mxu0
  %v1538 = vadd.f32 %v1519, %v1537
  %v1539 = vpop.f32.mrf.mxu0
  %v1540 = vadd.f32 %v1521, %v1539
  %1541 = vmatmul.bf16.gmra.mxu0 %v1024
  %v1542 = vpop.f32.mrf.mxu0
  %v1543 = vadd.f32 %v1524, %v1542
  %v1544 = vpop.f32.mrf.mxu0
  %v1545 = vadd.f32 %v1526, %v1544
  %1546 = vdwg.mxu0
  %1547 = vmatpush.bf16.msra.mxu0 %v1349
  %1548 = vmatpush.bf16.msra.mxu0 %v1347
  %1549 = vmatpush.bf16.msra.mxu0 %v1345
  %1550 = vmatpush.bf16.msra.mxu0 %v1343
  %1551 = vmatpush.bf16.msra.mxu0 %v1341
  %1552 = vmatpush.bf16.msra.mxu0 %v1339
  %1553 = vmatpush.bf16.msra.mxu0 %v1337
  %1554 = vmatpush.bf16.msra.mxu0 %v1335
  %1555 = vmatmul.bf16.gmra.mxu0 %v1023
  %v1556 = vpop.f32.mrf.mxu0
  %v1557 = vadd.f32 %v1538, %v1556
  %v1558 = vpop.f32.mrf.mxu0
  %v1559 = vadd.f32 %v1540, %v1558
  %1560 = vmatmul.bf16.gmra.mxu0 %v1025
  %v1561 = vpop.f32.mrf.mxu0
  %v1562 = vadd.f32 %v1543, %v1561
  %v1563 = vpop.f32.mrf.mxu0
  %v1564 = vadd.f32 %v1545, %v1563
  %1565 = vdwg.mxu0
  %v1566 = vpack.c.bf16 %v1557, %v1481
  %v1567 = vpack.c.bf16 %v1559, %v1483
  %v1568 = vpack.c.bf16 %v1562, %v1486
  %v1569 = vpack.c.bf16 %v1564, %v1488
  %1570 = vst [vmem:[%s5] sm:$0xff] %v1566
  %1571 = vst [vmem:[%s5 + $0x8] sm:$0xff] %v1567
  %1572 = vst [vmem:[%s5 + $0x10] sm:$0xff] %v1568
  %1573 = vst [vmem:[%s5 + $0x18] sm:$0xff] %v1569
  %v1574 = vadd.f32 %v1481, %v1483
  %v1575 = vrot.slane %v1574, 4
  %v1576 = vadd.f32 %v1574, %v1575
  %v1577 = vrot.slane %v1576, 2
  %v1578 = vadd.f32 %v1576, %v1577
  %v1579 = vrot.slane %v1578, 1
  %v1580 = vadd.f32 %v1578, %v1579
  %v1581 = vadd.f32 %v1557, %v1559
  %v1582 = vrot.slane %v1581, 4
  %v1583 = vadd.f32 %v1581, %v1582
  %v1584 = vrot.slane %v1583, 2
  %v1585 = vadd.f32 %v1583, %v1584
  %v1586 = vrot.slane %v1585, 1
  %v1587 = vadd.f32 %v1585, %v1586
  %v1588 = vadd.f32 %v1486, %v1488
  %v1589 = vrot.slane %v1588, 4
  %v1590 = vadd.f32 %v1588, %v1589
  %v1591 = vrot.slane %v1590, 2
  %v1592 = vadd.f32 %v1590, %v1591
  %v1593 = vrot.slane %v1592, 1
  %v1594 = vadd.f32 %v1592, %v1593
  %v1595 = vadd.f32 %v1562, %v1564
  %v1596 = vrot.slane %v1595, 4
  %v1597 = vadd.f32 %v1595, %v1596
  %v1598 = vrot.slane %v1597, 2
  %v1599 = vadd.f32 %v1597, %v1598
  %v1600 = vrot.slane %v1599, 1
  %v1601 = vadd.f32 %v1599, %v1600
  %v1606 = vrot.slane %v1587, 7
  %v1607 = vrot.slane %v1601, 7
  %v1608 = vsel %vm66, %v1580, %v1606
  %v1609 = vsel %vm66, %v1594, %v1607
  %1612 = vst.msk [vmem:[%s6] sm:$0x3] %vm26, %v1608
  %1613 = vst.msk [vmem:[%s6 + $0x2] sm:$0x3] %vm26, %v1609
  %v1614 = vmul.f32 %v1481, %v1481
  %v1615 = vmul.f32 %v1557, %v1557
  %v1616 = vmul.f32 %v1483, %v1483
  %v1617 = vmul.f32 %v1559, %v1559
  %v1618 = vmul.f32 %v1486, %v1486
  %v1619 = vmul.f32 %v1562, %v1562
  %v1620 = vmul.f32 %v1488, %v1488
  %v1621 = vmul.f32 %v1564, %v1564
  %v1622 = vadd.f32 %v1614, %v1616
  %v1623 = vrot.slane %v1622, 4
  %v1624 = vadd.f32 %v1622, %v1623
  %v1625 = vrot.slane %v1624, 2
  %v1626 = vadd.f32 %v1624, %v1625
  %v1627 = vrot.slane %v1626, 1
  %v1628 = vadd.f32 %v1626, %v1627
  %v1629 = vadd.f32 %v1615, %v1617
  %v1630 = vrot.slane %v1629, 4
  %v1631 = vadd.f32 %v1629, %v1630
  %v1632 = vrot.slane %v1631, 2
  %v1633 = vadd.f32 %v1631, %v1632
  %v1634 = vrot.slane %v1633, 1
  %v1635 = vadd.f32 %v1633, %v1634
  %v1636 = vadd.f32 %v1618, %v1620
  %v1637 = vrot.slane %v1636, 4
  %v1638 = vadd.f32 %v1636, %v1637
  %v1639 = vrot.slane %v1638, 2
  %v1640 = vadd.f32 %v1638, %v1639
  %v1641 = vrot.slane %v1640, 1
  %v1642 = vadd.f32 %v1640, %v1641
  %v1643 = vadd.f32 %v1619, %v1621
  %v1644 = vrot.slane %v1643, 4
  %v1645 = vadd.f32 %v1643, %v1644
  %v1646 = vrot.slane %v1645, 2
  %v1647 = vadd.f32 %v1645, %v1646
  %v1648 = vrot.slane %v1647, 1
  %v1649 = vadd.f32 %v1647, %v1648
  %v1654 = vrot.slane %v1635, 7
  %v1655 = vrot.slane %v1649, 7
  %v1656 = vsel %vm66, %v1628, %v1654
  %v1657 = vsel %vm66, %v1642, %v1655
  %1660 = vst.msk [vmem:[%s7] sm:$0x3] %vm26, %v1656
  %1661 = vst.msk [vmem:[%s7 + $0x2] sm:$0x3] %vm26, %v1657
  // Predicated region
  $region22: #{gmm_forward.2} parent=0 // pred_check
    _
  $region23: #{gmm_forward.2} parent=0 // pred_check_branch
    %1663 = sbr.rel (0) target = $region25
  $region24: #{gmm_forward.2} parent=0 // pred_region
    _
  $region25: #{gmm_forward.2} parent=0 // pred_fallthru
    _
  // Predicated region
  $region26: #{gmm_forward.2} parent=0 // pred_check
    _
  $region27: #{gmm_forward.2} parent=0 // pred_check_branch
    %1665 = sbr.rel (0) target = $region29
  $region28: #{gmm_forward.2} parent=0 // pred_region
    _
  $region29: #{gmm_forward.2} parent=0 // pred_fallthru
    _
  // Predicated region
  $region30: #{gmm_forward.2} parent=0 // pred_check
    _
  $region31: #{gmm_forward.2} parent=0 // pred_check_branch
    %1667 = sbr.rel (0) target = $region33
  $region32: #{gmm_forward.2} parent=0 // pred_region
    _
  $region33: #{gmm_forward.2} parent=0 // pred_fallthru
    _
  // Predicated region
  $region34: #{gmm_forward.2} parent=0 // pred_check
    _
  $region35: #{gmm_forward.2} parent=0 // pred_check_branch
    %1669 = sbr.rel (0) target = $region37
  $region36: #{gmm_forward.2} parent=0 // pred_region
    _
  $region37: #{gmm_forward.2} parent=0 // pred_fallthru
    _
  // Predicated region
  $region38: #{gmm_forward.2} parent=0 // pred_check
    _
  $region39: #{gmm_forward.2} parent=0 // pred_check_branch
    %1671 = sbr.rel (0) target = $region41
  $region40: #{gmm_forward.2} parent=0 // pred_region
    _
  $region41: #{gmm_forward.2} parent=0 // pred_fallthru
    _
  // Predicated region
  $region42: #{gmm_forward.2} parent=0 // pred_check
    _
  $region43: #{gmm_forward.2} parent=0 // pred_check_branch
    %1673 = sbr.rel (0) target = $region45
  $region44: #{gmm_forward.2} parent=0 // pred_region
    _
  $region45: #{gmm_forward.2} parent=0 // pred_fallthru
    _

// kernel: gmm_forward.3
$region0: #{gmm_forward.3}
  #allocation0 [shape = 'u32[]', space=smem, size = 0x4, offset = 0x4, fixed_abs, tag = 'smem constant byte address 0x4 - core index']
  #allocation1 [shape = 'u32[72,128]{1,0:T(1,128)}', space=vmem, size = 0x9000, scoped, tag = 'internal scratch']
  #allocation2 [shape = 'f32[2,18,256]{2,1,0:T(8,128)}', space=vmem, size = 0xc000, scoped, tag = 'scratch operand']
  %s0 = inlined_call_operand.vmem [shape: bf16[2,16,256], index: 0, kind: input, shape index: {}]
  %s1 = inlined_call_operand.vmem [shape: f32[2,16,256], index: 1, kind: input, shape index: {}]
  %s2 = inlined_call_operand.vmem [shape: f32[1,256], index: 2, kind: input, shape index: {}]
  %s3 = inlined_call_operand.vmem [shape: f32[1,256], index: 3, kind: input, shape index: {}]
  %s4 = inlined_call_operand.vmem [shape: f32[16,256], index: 4, kind: input, shape index: {}]
  %s5 = inlined_call_operand.vmem [shape: bf16[768,256], index: 5, kind: input, shape index: {}]
  %s6 = inlined_call_operand.vmem [shape: f32[1,256], index: 6, kind: input, shape index: {}]
  %s7 = inlined_call_operand.vmem [shape: bf16[512,256], index: 7, kind: input, shape index: {}]
  %s8 = inlined_call_operand.vmem [shape: f32[2,16,256], index: 8, kind: output, shape index: {}]
  %s9 = sld [smem:[#allocation0]]
  $region42: #{gmm_forward.3} parent=0
    _
  %s11 = ssub.s32 1, %s9
  %s12 = scalar_select 0, %s11, %s9
  // Predicated region
  $region2: #{gmm_forward.3} parent=0 // pred_check
    _
  $region3: #{gmm_forward.3} parent=0 // pred_check_branch
    %14 = sbr.rel (0) target = $region5
  $region4: #{gmm_forward.3} parent=0 // pred_region
    _
  $region5: #{gmm_forward.3} parent=0 // pred_fallthru
    _
  // Predicated region
  $region6: #{gmm_forward.3} parent=0 // pred_check
    _
  $region7: #{gmm_forward.3} parent=0 // pred_check_branch
    %16 = sbr.rel (0) target = $region9
  $region8: #{gmm_forward.3} parent=0 // pred_region
    _
  $region9: #{gmm_forward.3} parent=0 // pred_fallthru
    _
  // Predicated region
  $region10: #{gmm_forward.3} parent=0 // pred_check
    _
  $region11: #{gmm_forward.3} parent=0 // pred_check_branch
    %18 = sbr.rel (0) target = $region13
  $region12: #{gmm_forward.3} parent=0 // pred_region
    _
  $region13: #{gmm_forward.3} parent=0 // pred_fallthru
    _
  // Predicated region
  $region14: #{gmm_forward.3} parent=0 // pred_check
    _
  $region15: #{gmm_forward.3} parent=0 // pred_check_branch
    %20 = sbr.rel (0) target = $region17
  $region16: #{gmm_forward.3} parent=0 // pred_region
    _
  $region17: #{gmm_forward.3} parent=0 // pred_fallthru
    _
  // Predicated region
  $region18: #{gmm_forward.3} parent=0 // pred_check
    _
  $region19: #{gmm_forward.3} parent=0 // pred_check_branch
    %22 = sbr.rel (0) target = $region21
  $region20: #{gmm_forward.3} parent=0 // pred_region
    _
  $region21: #{gmm_forward.3} parent=0 // pred_fallthru
    _
  // Predicated region
  $region22: #{gmm_forward.3} parent=0 // pred_check
    _
  $region23: #{gmm_forward.3} parent=0 // pred_check_branch
    %24 = sbr.rel (0) target = $region25
  $region24: #{gmm_forward.3} parent=0 // pred_region
    _
  $region25: #{gmm_forward.3} parent=0 // pred_fallthru
    _
  // Predicated region
  $region26: #{gmm_forward.3} parent=0 // pred_check
    _
  $region27: #{gmm_forward.3} parent=0 // pred_check_branch
    %26 = sbr.rel (0) target = $region29
  $region28: #{gmm_forward.3} parent=0 // pred_region
    _
  $region29: #{gmm_forward.3} parent=0 // pred_fallthru
    _
  // Predicated region
  $region30: #{gmm_forward.3} parent=0 // pred_check
    _
  $region31: #{gmm_forward.3} parent=0 // pred_check_branch
    %28 = sbr.rel (0) target = $region33
  $region32: #{gmm_forward.3} parent=0 // pred_region
    _
  $region33: #{gmm_forward.3} parent=0 // pred_fallthru
    _
  %v29 = vlaneseq
  %vm30 = vcmp.ge.s32.totalorder %v29, 0
  %vm31 = vcmp.lt.s32.totalorder %v29, 256
  %vm32 = vmand %vm30, %vm31
  %33 = vst.msk [vmem:[#allocation2] ss:$8 sm:$0x3] %vm32, 0.0
  %34 = vst.msk [vmem:[#allocation2] ss:$8 sm:$0x0] %vm32, 0.0
  %s35 = scalar_lea.vmem [#allocation2], 48
  %36 = vst.msk [vmem:[%s35] ss:$8 sm:$0x3] %vm32, 0.0
  %37 = vst.msk [vmem:[%s35] ss:$8 sm:$0x0] %vm32, 0.0
  %s38 = scalar_lea.vmem [#allocation2], 33
  %39 = vst.msk [vmem:[%s38] ss:$8 sm:$0x3] %vm32, 0.0
  %40 = vst.msk [vmem:[%s38] ss:$8 sm:$0x0] %vm32, 0.0
  %s41 = scalar_lea.vmem [#allocation2], 81
  %42 = vst.msk [vmem:[%s41] ss:$8 sm:$0x3] %vm32, 0.0
  %43 = vst.msk [vmem:[%s41] ss:$8 sm:$0x0] %vm32, 0.0
  %v44 = vld [vmem:[%s0] sm:$0xff]
  %v45 = vld [vmem:[%s0 + $0x8] sm:$0xff]
  %v46 = vld [vmem:[%s0 + $0x10] sm:$0xff]
  %v47 = vld [vmem:[%s0 + $0x18] sm:$0xff]
  %v48 = vunpack.c.l.bf16 %v44
  %v49 = vunpack.c.h.bf16 %v44
  %v50 = vunpack.c.l.bf16 %v45
  %v51 = vunpack.c.h.bf16 %v45
  %v52 = vunpack.c.l.bf16 %v46
  %v53 = vunpack.c.h.bf16 %v46
  %v54 = vunpack.c.l.bf16 %v47
  %v55 = vunpack.c.h.bf16 %v47
  %v56 = vld [vmem:[%s2] sm:$0x3]
  %v58 = vperm.slane %v56, 0
  %v59 = vperm.slane %v56, 1
  %v62 = vmul.f32 %v48, %v58
  %v63 = vmul.f32 %v49, %v59
  %v64 = vmul.f32 %v50, %v58
  %v65 = vmul.f32 %v51, %v59
  %v66 = vmul.f32 %v52, %v58
  %v67 = vmul.f32 %v53, %v59
  %v68 = vmul.f32 %v54, %v58
  %v69 = vmul.f32 %v55, %v59
  %v70 = vld [vmem:[%s3] sm:$0x3]
  %v72 = vperm.slane %v70, 0
  %v73 = vperm.slane %v70, 1
  %v76 = vadd.f32 %v62, %v72
  %v77 = vadd.f32 %v63, %v73
  %v78 = vadd.f32 %v64, %v72
  %v79 = vadd.f32 %v65, %v73
  %v80 = vadd.f32 %v66, %v72
  %v81 = vadd.f32 %v67, %v73
  %v82 = vadd.f32 %v68, %v72
  %v83 = vadd.f32 %v69, %v73
  %v84 = vmul.f32 %v76, 0.5
  %v85 = vmul.f32 %v77, 0.5
  %v86 = vmul.f32 %v78, 0.5
  %v87 = vmul.f32 %v79, 0.5
  %v88 = vmul.f32 %v80, 0.5
  %v89 = vmul.f32 %v81, 0.5
  %v90 = vmul.f32 %v82, 0.5
  %v91 = vmul.f32 %v83, 0.5
  %v92 = vmul.f32 %v76, 0.70710677
  %v93 = vmul.f32 %v77, 0.70710677
  %v94 = vmul.f32 %v78, 0.70710677
  %v95 = vmul.f32 %v79, 0.70710677
  %v96 = vmul.f32 %v80, 0.70710677
  %v97 = vmul.f32 %v81, 0.70710677
  %v98 = vmul.f32 %v82, 0.70710677
  %v99 = vmul.f32 %v83, 0.70710677
  %v100 = vmul.f32 %v92, %v92
  %v101 = vmin.f32 16.0, %v100
  %v102 = vmul.f32 %v101, 2.1237322e-06
  %v103 = vadd.f32 %v102, 0.00028619796
  %v104 = vmul.f32 %v101, %v103
  %v105 = vadd.f32 %v104, 0.0036580483
  %v106 = vmul.f32 %v101, %v105
  %v107 = vadd.f32 %v106, 0.05243302
  %v108 = vmul.f32 %v101, %v107
  %v109 = vadd.f32 %v108, 0.18741608
  %v110 = vmul.f32 %v101, %v109
  %v111 = vadd.f32 %v110, 1.1283791
  %v112 = vmul.f32 %v92, %v111
  %v113 = vmul.f32 %v101, 3.8918573e-05
  %v114 = vadd.f32 %v113, 0.001143296
  %v115 = vmul.f32 %v101, %v114
  %v116 = vadd.f32 %v115, 0.014752088
  %v117 = vmul.f32 %v101, %v116
  %v118 = vadd.f32 %v117, 0.112945676
  %v119 = vmul.f32 %v101, %v118
  %v120 = vadd.f32 %v119, 0.4994258
  %v121 = vmul.f32 %v101, %v120
  %v122 = vadd.f32 %v121, 1.0
  %v123 = vrcp.pop %v122
  %v124 = vmul.f32 %v122, %v123
  %v125 = vsub.f32 1.0, %v124
  %v126 = vmul.f32 %v123, %v125
  %v127 = vadd.f32 %v123, %v126
  %vm128 = vweird.f32 %v122
  %vm129 = vweird.f32 %v123
  %vm130 = vmor %vm128, %vm129
  %v131 = vsel %vm130, %v123, %v127
  %v132 = vand.u32 2147483647, %v122
  %vm133 = vcmp.eq.f32.partialorder %v132, 8.507059e+37
  %v134 = vand.u32 %v122, 2147483648
  %v135 = vor.u32 1.1754944e-38, %v134
  %v136 = vsel %vm133, %v135, %v131
  %v137 = vmul.f32 %v112, %v136
  %v138 = vmin.f32 %v137, 1.0
  %v139 = vmax.f32 %v138, -1.0
  %v140 = vmul.f32 %v93, %v93
  %v141 = vmin.f32 16.0, %v140
  %v142 = vmul.f32 %v141, 2.1237322e-06
  %v143 = vadd.f32 %v142, 0.00028619796
  %v144 = vmul.f32 %v141, %v143
  %v145 = vadd.f32 %v144, 0.0036580483
  %v146 = vmul.f32 %v141, %v145
  %v147 = vadd.f32 %v146, 0.05243302
  %v148 = vmul.f32 %v141, %v147
  %v149 = vadd.f32 %v148, 0.18741608
  %v150 = vmul.f32 %v141, %v149
  %v151 = vadd.f32 %v150, 1.1283791
  %v152 = vmul.f32 %v93, %v151
  %v153 = vmul.f32 %v141, 3.8918573e-05
  %v154 = vadd.f32 %v153, 0.001143296
  %v155 = vmul.f32 %v141, %v154
  %v156 = vadd.f32 %v155, 0.014752088
  %v157 = vmul.f32 %v141, %v156
  %v158 = vadd.f32 %v157, 0.112945676
  %v159 = vmul.f32 %v141, %v158
  %v160 = vadd.f32 %v159, 0.4994258
  %v161 = vmul.f32 %v141, %v160
  %v162 = vadd.f32 %v161, 1.0
  %v163 = vrcp.pop %v162
  %v164 = vmul.f32 %v162, %v163
  %v165 = vsub.f32 1.0, %v164
  %v166 = vmul.f32 %v163, %v165
  %v167 = vadd.f32 %v163, %v166
  %vm168 = vweird.f32 %v162
  %vm169 = vweird.f32 %v163
  %vm170 = vmor %vm168, %vm169
  %v171 = vsel %vm170, %v163, %v167
  %v172 = vand.u32 2147483647, %v162
  %vm173 = vcmp.eq.f32.partialorder %v172, 8.507059e+37
  %v174 = vand.u32 %v162, 2147483648
  %v175 = vor.u32 1.1754944e-38, %v174
  %v176 = vsel %vm173, %v175, %v171
  %v177 = vmul.f32 %v152, %v176
  %v178 = vmin.f32 %v177, 1.0
  %v179 = vmax.f32 %v178, -1.0
  %v180 = vmul.f32 %v94, %v94
  %v181 = vmin.f32 16.0, %v180
  %v182 = vmul.f32 %v181, 2.1237322e-06
  %v183 = vadd.f32 %v182, 0.00028619796
  %v184 = vmul.f32 %v181, %v183
  %v185 = vadd.f32 %v184, 0.0036580483
  %v186 = vmul.f32 %v181, %v185
  %v187 = vadd.f32 %v186, 0.05243302
  %v188 = vmul.f32 %v181, %v187
  %v189 = vadd.f32 %v188, 0.18741608
  %v190 = vmul.f32 %v181, %v189
  %v191 = vadd.f32 %v190, 1.1283791
  %v192 = vmul.f32 %v94, %v191
  %v193 = vmul.f32 %v181, 3.8918573e-05
  %v194 = vadd.f32 %v193, 0.001143296
  %v195 = vmul.f32 %v181, %v194
  %v196 = vadd.f32 %v195, 0.014752088
  %v197 = vmul.f32 %v181, %v196
  %v198 = vadd.f32 %v197, 0.112945676
  %v199 = vmul.f32 %v181, %v198
  %v200 = vadd.f32 %v199, 0.4994258
  %v201 = vmul.f32 %v181, %v200
  %v202 = vadd.f32 %v201, 1.0
  %v203 = vrcp.pop %v202
  %v204 = vmul.f32 %v202, %v203
  %v205 = vsub.f32 1.0, %v204
  %v206 = vmul.f32 %v203, %v205
  %v207 = vadd.f32 %v203, %v206
  %vm208 = vweird.f32 %v202
  %vm209 = vweird.f32 %v203
  %vm210 = vmor %vm208, %vm209
  %v211 = vsel %vm210, %v203, %v207
  %v212 = vand.u32 2147483647, %v202
  %vm213 = vcmp.eq.f32.partialorder %v212, 8.507059e+37
  %v214 = vand.u32 %v202, 2147483648
  %v215 = vor.u32 1.1754944e-38, %v214
  %v216 = vsel %vm213, %v215, %v211
  %v217 = vmul.f32 %v192, %v216
  %v218 = vmin.f32 %v217, 1.0
  %v219 = vmax.f32 %v218, -1.0
  %v220 = vmul.f32 %v95, %v95
  %v221 = vmin.f32 16.0, %v220
  %v222 = vmul.f32 %v221, 2.1237322e-06
  %v223 = vadd.f32 %v222, 0.00028619796
  %v224 = vmul.f32 %v221, %v223
  %v225 = vadd.f32 %v224, 0.0036580483
  %v226 = vmul.f32 %v221, %v225
  %v227 = vadd.f32 %v226, 0.05243302
  %v228 = vmul.f32 %v221, %v227
  %v229 = vadd.f32 %v228, 0.18741608
  %v230 = vmul.f32 %v221, %v229
  %v231 = vadd.f32 %v230, 1.1283791
  %v232 = vmul.f32 %v95, %v231
  %v233 = vmul.f32 %v221, 3.8918573e-05
  %v234 = vadd.f32 %v233, 0.001143296
  %v235 = vmul.f32 %v221, %v234
  %v236 = vadd.f32 %v235, 0.014752088
  %v237 = vmul.f32 %v221, %v236
  %v238 = vadd.f32 %v237, 0.112945676
  %v239 = vmul.f32 %v221, %v238
  %v240 = vadd.f32 %v239, 0.4994258
  %v241 = vmul.f32 %v221, %v240
  %v242 = vadd.f32 %v241, 1.0
  %v243 = vrcp.pop %v242
  %v244 = vmul.f32 %v242, %v243
  %v245 = vsub.f32 1.0, %v244
  %v246 = vmul.f32 %v243, %v245
  %v247 = vadd.f32 %v243, %v246
  %vm248 = vweird.f32 %v242
  %vm249 = vweird.f32 %v243
  %vm250 = vmor %vm248, %vm249
  %v251 = vsel %vm250, %v243, %v247
  %v252 = vand.u32 2147483647, %v242
  %vm253 = vcmp.eq.f32.partialorder %v252, 8.507059e+37
  %v254 = vand.u32 %v242, 2147483648
  %v255 = vor.u32 1.1754944e-38, %v254
  %v256 = vsel %vm253, %v255, %v251
  %v257 = vmul.f32 %v232, %v256
  %v258 = vmin.f32 %v257, 1.0
  %v259 = vmax.f32 %v258, -1.0
  %v260 = vmul.f32 %v96, %v96
  %v261 = vmin.f32 16.0, %v260
  %v262 = vmul.f32 %v261, 2.1237322e-06
  %v263 = vadd.f32 %v262, 0.00028619796
  %v264 = vmul.f32 %v261, %v263
  %v265 = vadd.f32 %v264, 0.0036580483
  %v266 = vmul.f32 %v261, %v265
  %v267 = vadd.f32 %v266, 0.05243302
  %v268 = vmul.f32 %v261, %v267
  %v269 = vadd.f32 %v268, 0.18741608
  %v270 = vmul.f32 %v261, %v269
  %v271 = vadd.f32 %v270, 1.1283791
  %v272 = vmul.f32 %v96, %v271
  %v273 = vmul.f32 %v261, 3.8918573e-05
  %v274 = vadd.f32 %v273, 0.001143296
  %v275 = vmul.f32 %v261, %v274
  %v276 = vadd.f32 %v275, 0.014752088
  %v277 = vmul.f32 %v261, %v276
  %v278 = vadd.f32 %v277, 0.112945676
  %v279 = vmul.f32 %v261, %v278
  %v280 = vadd.f32 %v279, 0.4994258
  %v281 = vmul.f32 %v261, %v280
  %v282 = vadd.f32 %v281, 1.0
  %v283 = vrcp.pop %v282
  %v284 = vmul.f32 %v282, %v283
  %v285 = vsub.f32 1.0, %v284
  %v286 = vmul.f32 %v283, %v285
  %v287 = vadd.f32 %v283, %v286
  %vm288 = vweird.f32 %v282
  %vm289 = vweird.f32 %v283
  %vm290 = vmor %vm288, %vm289
  %v291 = vsel %vm290, %v283, %v287
  %v292 = vand.u32 2147483647, %v282
  %vm293 = vcmp.eq.f32.partialorder %v292, 8.507059e+37
  %v294 = vand.u32 %v282, 2147483648
  %v295 = vor.u32 1.1754944e-38, %v294
  %v296 = vsel %vm293, %v295, %v291
  %v297 = vmul.f32 %v272, %v296
  %v298 = vmin.f32 %v297, 1.0
  %v299 = vmax.f32 %v298, -1.0
  %v300 = vmul.f32 %v97, %v97
  %v301 = vmin.f32 16.0, %v300
  %v302 = vmul.f32 %v301, 2.1237322e-06
  %v303 = vadd.f32 %v302, 0.00028619796
  %v304 = vmul.f32 %v301, %v303
  %v305 = vadd.f32 %v304, 0.0036580483
  %v306 = vmul.f32 %v301, %v305
  %v307 = vadd.f32 %v306, 0.05243302
  %v308 = vmul.f32 %v301, %v307
  %v309 = vadd.f32 %v308, 0.18741608
  %v310 = vmul.f32 %v301, %v309
  %v311 = vadd.f32 %v310, 1.1283791
  %v312 = vmul.f32 %v97, %v311
  %v313 = vmul.f32 %v301, 3.8918573e-05
  %v314 = vadd.f32 %v313, 0.001143296
  %v315 = vmul.f32 %v301, %v314
  %v316 = vadd.f32 %v315, 0.014752088
  %v317 = vmul.f32 %v301, %v316
  %v318 = vadd.f32 %v317, 0.112945676
  %v319 = vmul.f32 %v301, %v318
  %v320 = vadd.f32 %v319, 0.4994258
  %v321 = vmul.f32 %v301, %v320
  %v322 = vadd.f32 %v321, 1.0
  %v323 = vrcp.pop %v322
  %v324 = vmul.f32 %v322, %v323
  %v325 = vsub.f32 1.0, %v324
  %v326 = vmul.f32 %v323, %v325
  %v327 = vadd.f32 %v323, %v326
  %vm328 = vweird.f32 %v322
  %vm329 = vweird.f32 %v323
  %vm330 = vmor %vm328, %vm329
  %v331 = vsel %vm330, %v323, %v327
  %v332 = vand.u32 2147483647, %v322
  %vm333 = vcmp.eq.f32.partialorder %v332, 8.507059e+37
  %v334 = vand.u32 %v322, 2147483648
  %v335 = vor.u32 1.1754944e-38, %v334
  %v336 = vsel %vm333, %v335, %v331
  %v337 = vmul.f32 %v312, %v336
  %v338 = vmin.f32 %v337, 1.0
  %v339 = vmax.f32 %v338, -1.0
  %v340 = vmul.f32 %v98, %v98
  %v341 = vmin.f32 16.0, %v340
  %v342 = vmul.f32 %v341, 2.1237322e-06
  %v343 = vadd.f32 %v342, 0.00028619796
  %v344 = vmul.f32 %v341, %v343
  %v345 = vadd.f32 %v344, 0.0036580483
  %v346 = vmul.f32 %v341, %v345
  %v347 = vadd.f32 %v346, 0.05243302
  %v348 = vmul.f32 %v341, %v347
  %v349 = vadd.f32 %v348, 0.18741608
  %v350 = vmul.f32 %v341, %v349
  %v351 = vadd.f32 %v350, 1.1283791
  %v352 = vmul.f32 %v98, %v351
  %v353 = vmul.f32 %v341, 3.8918573e-05
  %v354 = vadd.f32 %v353, 0.001143296
  %v355 = vmul.f32 %v341, %v354
  %v356 = vadd.f32 %v355, 0.014752088
  %v357 = vmul.f32 %v341, %v356
  %v358 = vadd.f32 %v357, 0.112945676
  %v359 = vmul.f32 %v341, %v358
  %v360 = vadd.f32 %v359, 0.4994258
  %v361 = vmul.f32 %v341, %v360
  %v362 = vadd.f32 %v361, 1.0
  %v363 = vrcp.pop %v362
  %v364 = vmul.f32 %v362, %v363
  %v365 = vsub.f32 1.0, %v364
  %v366 = vmul.f32 %v363, %v365
  %v367 = vadd.f32 %v363, %v366
  %vm368 = vweird.f32 %v362
  %vm369 = vweird.f32 %v363
  %vm370 = vmor %vm368, %vm369
  %v371 = vsel %vm370, %v363, %v367
  %v372 = vand.u32 2147483647, %v362
  %vm373 = vcmp.eq.f32.partialorder %v372, 8.507059e+37
  %v374 = vand.u32 %v362, 2147483648
  %v375 = vor.u32 1.1754944e-38, %v374
  %v376 = vsel %vm373, %v375, %v371
  %v377 = vmul.f32 %v352, %v376
  %v378 = vmin.f32 %v377, 1.0
  %v379 = vmax.f32 %v378, -1.0
  %v380 = vmul.f32 %v99, %v99
  %v381 = vmin.f32 16.0, %v380
  %v382 = vmul.f32 %v381, 2.1237322e-06
  %v383 = vadd.f32 %v382, 0.00028619796
  %v384 = vmul.f32 %v381, %v383
  %v385 = vadd.f32 %v384, 0.0036580483
  %v386 = vmul.f32 %v381, %v385
  %v387 = vadd.f32 %v386, 0.05243302
  %v388 = vmul.f32 %v381, %v387
  %v389 = vadd.f32 %v388, 0.18741608
  %v390 = vmul.f32 %v381, %v389
  %v391 = vadd.f32 %v390, 1.1283791
  %v392 = vmul.f32 %v99, %v391
  %v393 = vmul.f32 %v381, 3.8918573e-05
  %v394 = vadd.f32 %v393, 0.001143296
  %v395 = vmul.f32 %v381, %v394
  %v396 = vadd.f32 %v395, 0.014752088
  %v397 = vmul.f32 %v381, %v396
  %v398 = vadd.f32 %v397, 0.112945676
  %v399 = vmul.f32 %v381, %v398
  %v400 = vadd.f32 %v399, 0.4994258
  %v401 = vmul.f32 %v381, %v400
  %v402 = vadd.f32 %v401, 1.0
  %v403 = vrcp.pop %v402
  %v404 = vmul.f32 %v402, %v403
  %v405 = vsub.f32 1.0, %v404
  %v406 = vmul.f32 %v403, %v405
  %v407 = vadd.f32 %v403, %v406
  %vm408 = vweird.f32 %v402
  %vm409 = vweird.f32 %v403
  %vm410 = vmor %vm408, %vm409
  %v411 = vsel %vm410, %v403, %v407
  %v412 = vand.u32 2147483647, %v402
  %vm413 = vcmp.eq.f32.partialorder %v412, 8.507059e+37
  %v414 = vand.u32 %v402, 2147483648
  %v415 = vor.u32 1.1754944e-38, %v414
  %v416 = vsel %vm413, %v415, %v411
  %v417 = vmul.f32 %v392, %v416
  %v418 = vmin.f32 %v417, 1.0
  %v419 = vmax.f32 %v418, -1.0
  %v420 = vadd.f32 %v139, 1.0
  %v421 = vadd.f32 %v179, 1.0
  %v422 = vadd.f32 %v219, 1.0
  %v423 = vadd.f32 %v259, 1.0
  %v424 = vadd.f32 %v299, 1.0
  %v425 = vadd.f32 %v339, 1.0
  %v426 = vadd.f32 %v379, 1.0
  %v427 = vadd.f32 %v419, 1.0
  %v428 = vmul.f32 %v84, %v420
  %v429 = vmul.f32 %v85, %v421
  %v430 = vmul.f32 %v86, %v422
  %v431 = vmul.f32 %v87, %v423
  %v432 = vmul.f32 %v88, %v424
  %v433 = vmul.f32 %v89, %v425
  %v434 = vmul.f32 %v90, %v426
  %v435 = vmul.f32 %v91, %v427
  %v436 = vld [vmem:[%s4] sm:$0xff]
  %v437 = vld [vmem:[%s4 + $0x8] sm:$0xff]
  %v438 = vld [vmem:[%s4 + $0x10] sm:$0xff]
  %v439 = vld [vmem:[%s4 + $0x18] sm:$0xff]
  %v440 = vadd.f32 %v428, %v436
  %v441 = vadd.f32 %v429, %v437
  %v442 = vadd.f32 %v430, %v438
  %v443 = vadd.f32 %v431, %v439
  %v444 = vadd.f32 %v432, %v436
  %v445 = vadd.f32 %v433, %v437
  %v446 = vadd.f32 %v434, %v438
  %v447 = vadd.f32 %v435, %v439
  %vm456 = vcmask 1040384
  %v457 = vrot.slane %v440, 7
  %v458 = vrot.slane %v441, 7
  %v459 = vrot.slane %v442, 7
  %v460 = vsel %vm456, %v457, %v459
  %v461 = vrot.slane %v443, 7
  %v462 = vsel %vm456, %v458, %v461
  %v463 = vrot.slane %v444, 7
  %v464 = vrot.slane %v445, 7
  %v465 = vrot.slane %v446, 7
  %v466 = vsel %vm456, %v463, %v465
  %v467 = vrot.slane %v447, 7
  %v468 = vsel %vm456, %v464, %v467
  %481 = vst [vmem:[#allocation2] sm:$0xfe] %v457
  %482 = vst [vmem:[#allocation2 + $0x8] sm:$0xfe] %v458
  %483 = vst [vmem:[#allocation2 + $0x10] sm:$0xff] %v460
  %484 = vst [vmem:[#allocation2 + $0x18] sm:$0xff] %v462
  %485 = vst [vmem:[#allocation2 + $0x20] sm:$0x1] %v459
  %486 = vst [vmem:[#allocation2 + $0x28] sm:$0x1] %v461
  %487 = vst [vmem:[#allocation2 + $0x30] sm:$0xfe] %v463
  %488 = vst [vmem:[#allocation2 + $0x38] sm:$0xfe] %v464
  %489 = vst [vmem:[#allocation2 + $0x40] sm:$0xff] %v466
  %490 = vst [vmem:[#allocation2 + $0x48] sm:$0xff] %v468
  %491 = vst [vmem:[#allocation2 + $0x50] sm:$0x1] %v465
  %492 = vst [vmem:[#allocation2 + $0x58] sm:$0x1] %v467
  %v493 = vld [vmem:[#allocation2] sm:$0xff]
  %v494 = vld [vmem:[#allocation2 + $0x8] sm:$0xff]
  %v495 = vld [vmem:[#allocation2 + $0x10] sm:$0xff]
  %v496 = vld [vmem:[#allocation2 + $0x18] sm:$0xff]
  %v497 = vld [vmem:[#allocation2 + $0x30] sm:$0xff]
  %v498 = vld [vmem:[#allocation2 + $0x38] sm:$0xff]
  %v499 = vld [vmem:[#allocation2 + $0x40] sm:$0xff]
  %v500 = vld [vmem:[#allocation2 + $0x48] sm:$0xff]
  %v501 = vld [vmem:[#allocation2] sm:$0xfc]
  %v502 = vld [vmem:[#allocation2 + $0x8] sm:$0xfc]
  %v503 = vld [vmem:[#allocation2 + $0x20] sm:$0x3]
  %v504 = vld [vmem:[#allocation2 + $0x28] sm:$0x3]
  %v505 = vld [vmem:[#allocation2 + $0x30] sm:$0xfc]
  %v506 = vld [vmem:[#allocation2 + $0x38] sm:$0xfc]
  %v507 = vld [vmem:[#allocation2 + $0x50] sm:$0x3]
  %v508 = vld [vmem:[#allocation2 + $0x58] sm:$0x3]
  %vm521 = vcmask 1045504
  %v522 = vrot.slane %v501, 2
  %v523 = vrot.slane %v495, 2
  %v524 = vsel %vm521, %v522, %v523
  %v525 = vrot.slane %v502, 2
  %v526 = vrot.slane %v496, 2
  %v527 = vsel %vm521, %v525, %v526
  %v528 = vrot.slane %v503, 2
  %v529 = vsel %vm521, %v523, %v528
  %v530 = vrot.slane %v504, 2
  %v531 = vsel %vm521, %v526, %v530
  %v532 = vrot.slane %v505, 2
  %v533 = vrot.slane %v499, 2
  %v534 = vsel %vm521, %v532, %v533
  %v535 = vrot.slane %v506, 2
  %v536 = vrot.slane %v500, 2
  %v537 = vsel %vm521, %v535, %v536
  %v538 = vrot.slane %v507, 2
  %v539 = vsel %vm521, %v533, %v538
  %v540 = vrot.slane %v508, 2
  %v541 = vsel %vm521, %v536, %v540
  %v550 = vpack.c.bf16 %v495, %v493
  %v551 = vpack.c.bf16 %v496, %v494
  %v552 = vpack.c.bf16 %v442, %v440
  %v553 = vpack.c.bf16 %v443, %v441
  %v554 = vpack.c.bf16 %v529, %v524
  %v555 = vpack.c.bf16 %v531, %v527
  %v556 = vpack.c.bf16 %v499, %v497
  %v557 = vpack.c.bf16 %v500, %v498
  %v558 = vpack.c.bf16 %v446, %v444
  %v559 = vpack.c.bf16 %v447, %v445
  %v560 = vpack.c.bf16 %v539, %v534
  %v561 = vpack.c.bf16 %v541, %v537
  %v562 = vld [vmem:[%s5] sm:$0xff]
  %v563 = vld [vmem:[%s5 + $0x8] sm:$0xff]
  %v564 = vld [vmem:[%s5 + $0x10] sm:$0xff]
  %v565 = vld [vmem:[%s5 + $0x18] sm:$0xff]
  %v566 = vld [vmem:[%s5 + $0x20] sm:$0xff]
  %v567 = vld [vmem:[%s5 + $0x28] sm:$0xff]
  %v568 = vld [vmem:[%s5 + $0x30] sm:$0xff]
  %v569 = vld [vmem:[%s5 + $0x38] sm:$0xff]
  %v570 = vld [vmem:[%s5 + $0x40] sm:$0xff]
  %v571 = vld [vmem:[%s5 + $0x48] sm:$0xff]
  %v572 = vld [vmem:[%s5 + $0x50] sm:$0xff]
  %v573 = vld [vmem:[%s5 + $0x58] sm:$0xff]
  %v574 = vld [vmem:[%s5 + $0x60] sm:$0xff]
  %v575 = vld [vmem:[%s5 + $0x68] sm:$0xff]
  %v576 = vld [vmem:[%s5 + $0x70] sm:$0xff]
  %v577 = vld [vmem:[%s5 + $0x78] sm:$0xff]
  %v578 = vld [vmem:[%s5 + $0x80] sm:$0xff]
  %v579 = vld [vmem:[%s5 + $0x88] sm:$0xff]
  %v580 = vld [vmem:[%s5 + $0x90] sm:$0xff]
  %v581 = vld [vmem:[%s5 + $0x98] sm:$0xff]
  %v582 = vld [vmem:[%s5 + $0xa0] sm:$0xff]
  %v583 = vld [vmem:[%s5 + $0xa8] sm:$0xff]
  %v584 = vld [vmem:[%s5 + $0xb0] sm:$0xff]
  %v585 = vld [vmem:[%s5 + $0xb8] sm:$0xff]
  %v586 = vld [vmem:[%s5 + $0xc0] sm:$0xff]
  %v587 = vld [vmem:[%s5 + $0xc8] sm:$0xff]
  %v588 = vld [vmem:[%s5 + $0xd0] sm:$0xff]
  %v589 = vld [vmem:[%s5 + $0xd8] sm:$0xff]
  %v590 = vld [vmem:[%s5 + $0xe0] sm:$0xff]
  %v591 = vld [vmem:[%s5 + $0xe8] sm:$0xff]
  %v592 = vld [vmem:[%s5 + $0xf0] sm:$0xff]
  %v593 = vld [vmem:[%s5 + $0xf8] sm:$0xff]
  %v594 = vld [vmem:[%s5 + $0x100] sm:$0xff]
  %v595 = vld [vmem:[%s5 + $0x108] sm:$0xff]
  %v596 = vld [vmem:[%s5 + $0x110] sm:$0xff]
  %v597 = vld [vmem:[%s5 + $0x118] sm:$0xff]
  %v598 = vld [vmem:[%s5 + $0x120] sm:$0xff]
  %v599 = vld [vmem:[%s5 + $0x128] sm:$0xff]
  %v600 = vld [vmem:[%s5 + $0x130] sm:$0xff]
  %v601 = vld [vmem:[%s5 + $0x138] sm:$0xff]
  %v602 = vld [vmem:[%s5 + $0x140] sm:$0xff]
  %v603 = vld [vmem:[%s5 + $0x148] sm:$0xff]
  %v604 = vld [vmem:[%s5 + $0x150] sm:$0xff]
  %v605 = vld [vmem:[%s5 + $0x158] sm:$0xff]
  %v606 = vld [vmem:[%s5 + $0x160] sm:$0xff]
  %v607 = vld [vmem:[%s5 + $0x168] sm:$0xff]
  %v608 = vld [vmem:[%s5 + $0x170] sm:$0xff]
  %v609 = vld [vmem:[%s5 + $0x178] sm:$0xff]
  %v610 = vld [vmem:[%s5 + $0x180] sm:$0xff]
  %v611 = vld [vmem:[%s5 + $0x188] sm:$0xff]
  %v612 = vld [vmem:[%s5 + $0x190] sm:$0xff]
  %v613 = vld [vmem:[%s5 + $0x198] sm:$0xff]
  %v614 = vld [vmem:[%s5 + $0x1a0] sm:$0xff]
  %v615 = vld [vmem:[%s5 + $0x1a8] sm:$0xff]
  %v616 = vld [vmem:[%s5 + $0x1b0] sm:$0xff]
  %v617 = vld [vmem:[%s5 + $0x1b8] sm:$0xff]
  %v618 = vld [vmem:[%s5 + $0x1c0] sm:$0xff]
  %v619 = vld [vmem:[%s5 + $0x1c8] sm:$0xff]
  %v620 = vld [vmem:[%s5 + $0x1d0] sm:$0xff]
  %v621 = vld [vmem:[%s5 + $0x1d8] sm:$0xff]
  %v622 = vld [vmem:[%s5 + $0x1e0] sm:$0xff]
  %v623 = vld [vmem:[%s5 + $0x1e8] sm:$0xff]
  %v624 = vld [vmem:[%s5 + $0x1f0] sm:$0xff]
  %v625 = vld [vmem:[%s5 + $0x1f8] sm:$0xff]
  %v626 = vld [vmem:[%s5 + $0x200] sm:$0xff]
  %v627 = vld [vmem:[%s5 + $0x208] sm:$0xff]
  %v628 = vld [vmem:[%s5 + $0x210] sm:$0xff]
  %v629 = vld [vmem:[%s5 + $0x218] sm:$0xff]
  %v630 = vld [vmem:[%s5 + $0x220] sm:$0xff]
  %v631 = vld [vmem:[%s5 + $0x228] sm:$0xff]
  %v632 = vld [vmem:[%s5 + $0x230] sm:$0xff]
  %v633 = vld [vmem:[%s5 + $0x238] sm:$0xff]
  %v634 = vld [vmem:[%s5 + $0x240] sm:$0xff]
  %v635 = vld [vmem:[%s5 + $0x248] sm:$0xff]
  %v636 = vld [vmem:[%s5 + $0x250] sm:$0xff]
  %v637 = vld [vmem:[%s5 + $0x258] sm:$0xff]
  %v638 = vld [vmem:[%s5 + $0x260] sm:$0xff]
  %v639 = vld [vmem:[%s5 + $0x268] sm:$0xff]
  %v640 = vld [vmem:[%s5 + $0x270] sm:$0xff]
  %v641 = vld [vmem:[%s5 + $0x278] sm:$0xff]
  %v642 = vld [vmem:[%s5 + $0x280] sm:$0xff]
  %v643 = vld [vmem:[%s5 + $0x288] sm:$0xff]
  %v644 = vld [vmem:[%s5 + $0x290] sm:$0xff]
  %v645 = vld [vmem:[%s5 + $0x298] sm:$0xff]
  %v646 = vld [vmem:[%s5 + $0x2a0] sm:$0xff]
  %v647 = vld [vmem:[%s5 + $0x2a8] sm:$0xff]
  %v648 = vld [vmem:[%s5 + $0x2b0] sm:$0xff]
  %v649 = vld [vmem:[%s5 + $0x2b8] sm:$0xff]
  %v650 = vld [vmem:[%s5 + $0x2c0] sm:$0xff]
  %v651 = vld [vmem:[%s5 + $0x2c8] sm:$0xff]
  %v652 = vld [vmem:[%s5 + $0x2d0] sm:$0xff]
  %v653 = vld [vmem:[%s5 + $0x2d8] sm:$0xff]
  %v654 = vld [vmem:[%s5 + $0x2e0] sm:$0xff]
  %v655 = vld [vmem:[%s5 + $0x2e8] sm:$0xff]
  %v656 = vld [vmem:[%s5 + $0x2f0] sm:$0xff]
  %v657 = vld [vmem:[%s5 + $0x2f8] sm:$0xff]
  %v658 = vld [vmem:[%s6] sm:$0x3]
  %v660 = vperm.slane %v658, 0
  %v661 = vperm.slane %v658, 1
  %v760 = vunpack.c.l.b16 %v562
  %v761 = vunpack.c.h.b16 %v562
  %v762 = vunpack.c.l.b16 %v563
  %v763 = vunpack.c.h.b16 %v563
  %v764 = vunpack.c.l.b16 %v564
  %v765 = vunpack.c.h.b16 %v564
  %v766 = vunpack.c.l.b16 %v565
  %v767 = vunpack.c.h.b16 %v565
  %v768 = vunpack.c.l.b16 %v566
  %v769 = vunpack.c.h.b16 %v566
  %v770 = vunpack.c.l.b16 %v567
  %v771 = vunpack.c.h.b16 %v567
  %v772 = vunpack.c.l.b16 %v568
  %v773 = vunpack.c.h.b16 %v568
  %v774 = vunpack.c.l.b16 %v569
  %v775 = vunpack.c.h.b16 %v569
  %v776 = vunpack.c.l.b16 %v570
  %v777 = vunpack.c.h.b16 %v570
  %v778 = vunpack.c.l.b16 %v571
  %v779 = vunpack.c.h.b16 %v571
  %v780 = vunpack.c.l.b16 %v572
  %v781 = vunpack.c.h.b16 %v572
  %v782 = vunpack.c.l.b16 %v573
  %v783 = vunpack.c.h.b16 %v573
  %v784 = vunpack.c.l.b16 %v574
  %v785 = vunpack.c.h.b16 %v574
  %v786 = vunpack.c.l.b16 %v575
  %v787 = vunpack.c.h.b16 %v575
  %v788 = vunpack.c.l.b16 %v576
  %v789 = vunpack.c.h.b16 %v576
  %v790 = vunpack.c.l.b16 %v577
  %v791 = vunpack.c.h.b16 %v577
  %v792 = vunpack.c.l.b16 %v578
  %v793 = vunpack.c.h.b16 %v578
  %v794 = vunpack.c.l.b16 %v579
  %v795 = vunpack.c.h.b16 %v579
  %v796 = vunpack.c.l.b16 %v580
  %v797 = vunpack.c.h.b16 %v580
  %v798 = vunpack.c.l.b16 %v581
  %v799 = vunpack.c.h.b16 %v581
  %v800 = vunpack.c.l.b16 %v582
  %v801 = vunpack.c.h.b16 %v582
  %v802 = vunpack.c.l.b16 %v583
  %v803 = vunpack.c.h.b16 %v583
  %v804 = vunpack.c.l.b16 %v584
  %v805 = vunpack.c.h.b16 %v584
  %v806 = vunpack.c.l.b16 %v585
  %v807 = vunpack.c.h.b16 %v585
  %v808 = vunpack.c.l.b16 %v586
  %v809 = vunpack.c.h.b16 %v586
  %v810 = vunpack.c.l.b16 %v587
  %v811 = vunpack.c.h.b16 %v587
  %v812 = vunpack.c.l.b16 %v588
  %v813 = vunpack.c.h.b16 %v588
  %v814 = vunpack.c.l.b16 %v589
  %v815 = vunpack.c.h.b16 %v589
  %v816 = vunpack.c.l.b16 %v590
  %v817 = vunpack.c.h.b16 %v590
  %v818 = vunpack.c.l.b16 %v591
  %v819 = vunpack.c.h.b16 %v591
  %v820 = vunpack.c.l.b16 %v592
  %v821 = vunpack.c.h.b16 %v592
  %v822 = vunpack.c.l.b16 %v593
  %v823 = vunpack.c.h.b16 %v593
  %v824 = vunpack.c.l.b16 %v594
  %v825 = vunpack.c.h.b16 %v594
  %v826 = vunpack.c.l.b16 %v595
  %v827 = vunpack.c.h.b16 %v595
  %v828 = vunpack.c.l.b16 %v596
  %v829 = vunpack.c.h.b16 %v596
  %v830 = vunpack.c.l.b16 %v597
  %v831 = vunpack.c.h.b16 %v597
  %v832 = vunpack.c.l.b16 %v598
  %v833 = vunpack.c.h.b16 %v598
  %v834 = vunpack.c.l.b16 %v599
  %v835 = vunpack.c.h.b16 %v599
  %v836 = vunpack.c.l.b16 %v600
  %v837 = vunpack.c.h.b16 %v600
  %v838 = vunpack.c.l.b16 %v601
  %v839 = vunpack.c.h.b16 %v601
  %v840 = vunpack.c.l.b16 %v602
  %v841 = vunpack.c.h.b16 %v602
  %v842 = vunpack.c.l.b16 %v603
  %v843 = vunpack.c.h.b16 %v603
  %v844 = vunpack.c.l.b16 %v604
  %v845 = vunpack.c.h.b16 %v604
  %v846 = vunpack.c.l.b16 %v605
  %v847 = vunpack.c.h.b16 %v605
  %v848 = vunpack.c.l.b16 %v606
  %v849 = vunpack.c.h.b16 %v606
  %v850 = vunpack.c.l.b16 %v607
  %v851 = vunpack.c.h.b16 %v607
  %v852 = vunpack.c.l.b16 %v608
  %v853 = vunpack.c.h.b16 %v608
  %v854 = vunpack.c.l.b16 %v609
  %v855 = vunpack.c.h.b16 %v609
  %v856 = vunpack.c.l.b16 %v610
  %v857 = vunpack.c.h.b16 %v610
  %v858 = vunpack.c.l.b16 %v611
  %v859 = vunpack.c.h.b16 %v611
  %v860 = vunpack.c.l.b16 %v612
  %v861 = vunpack.c.h.b16 %v612
  %v862 = vunpack.c.l.b16 %v613
  %v863 = vunpack.c.h.b16 %v613
  %v864 = vunpack.c.l.b16 %v614
  %v865 = vunpack.c.h.b16 %v614
  %v866 = vunpack.c.l.b16 %v615
  %v867 = vunpack.c.h.b16 %v615
  %v868 = vunpack.c.l.b16 %v616
  %v869 = vunpack.c.h.b16 %v616
  %v870 = vunpack.c.l.b16 %v617
  %v871 = vunpack.c.h.b16 %v617
  %v872 = vunpack.c.l.b16 %v618
  %v873 = vunpack.c.h.b16 %v618
  %v874 = vunpack.c.l.b16 %v619
  %v875 = vunpack.c.h.b16 %v619
  %v876 = vunpack.c.l.b16 %v620
  %v877 = vunpack.c.h.b16 %v620
  %v878 = vunpack.c.l.b16 %v621
  %v879 = vunpack.c.h.b16 %v621
  %v880 = vunpack.c.l.b16 %v622
  %v881 = vunpack.c.h.b16 %v622
  %v882 = vunpack.c.l.b16 %v623
  %v883 = vunpack.c.h.b16 %v623
  %v884 = vunpack.c.l.b16 %v624
  %v885 = vunpack.c.h.b16 %v624
  %v886 = vunpack.c.l.b16 %v625
  %v887 = vunpack.c.h.b16 %v625
  %v888 = vunpack.c.l.b16 %v626
  %v889 = vunpack.c.h.b16 %v626
  %v890 = vunpack.c.l.b16 %v627
  %v891 = vunpack.c.h.b16 %v627
  %v892 = vunpack.c.l.b16 %v628
  %v893 = vunpack.c.h.b16 %v628
  %v894 = vunpack.c.l.b16 %v629
  %v895 = vunpack.c.h.b16 %v629
  %v896 = vunpack.c.l.b16 %v630
  %v897 = vunpack.c.h.b16 %v630
  %v898 = vunpack.c.l.b16 %v631
  %v899 = vunpack.c.h.b16 %v631
  %v900 = vunpack.c.l.b16 %v632
  %v901 = vunpack.c.h.b16 %v632
  %v902 = vunpack.c.l.b16 %v633
  %v903 = vunpack.c.h.b16 %v633
  %v904 = vunpack.c.l.b16 %v634
  %v905 = vunpack.c.h.b16 %v634
  %v906 = vunpack.c.l.b16 %v635
  %v907 = vunpack.c.h.b16 %v635
  %v908 = vunpack.c.l.b16 %v636
  %v909 = vunpack.c.h.b16 %v636
  %v910 = vunpack.c.l.b16 %v637
  %v911 = vunpack.c.h.b16 %v637
  %v912 = vunpack.c.l.b16 %v638
  %v913 = vunpack.c.h.b16 %v638
  %v914 = vunpack.c.l.b16 %v639
  %v915 = vunpack.c.h.b16 %v639
  %v916 = vunpack.c.l.b16 %v640
  %v917 = vunpack.c.h.b16 %v640
  %v918 = vunpack.c.l.b16 %v641
  %v919 = vunpack.c.h.b16 %v641
  %v920 = vunpack.c.l.b16 %v642
  %v921 = vunpack.c.h.b16 %v642
  %v922 = vunpack.c.l.b16 %v643
  %v923 = vunpack.c.h.b16 %v643
  %v924 = vunpack.c.l.b16 %v644
  %v925 = vunpack.c.h.b16 %v644
  %v926 = vunpack.c.l.b16 %v645
  %v927 = vunpack.c.h.b16 %v645
  %v928 = vunpack.c.l.b16 %v646
  %v929 = vunpack.c.h.b16 %v646
  %v930 = vunpack.c.l.b16 %v647
  %v931 = vunpack.c.h.b16 %v647
  %v932 = vunpack.c.l.b16 %v648
  %v933 = vunpack.c.h.b16 %v648
  %v934 = vunpack.c.l.b16 %v649
  %v935 = vunpack.c.h.b16 %v649
  %v936 = vunpack.c.l.b16 %v650
  %v937 = vunpack.c.h.b16 %v650
  %v938 = vunpack.c.l.b16 %v651
  %v939 = vunpack.c.h.b16 %v651
  %v940 = vunpack.c.l.b16 %v652
  %v941 = vunpack.c.h.b16 %v652
  %v942 = vunpack.c.l.b16 %v653
  %v943 = vunpack.c.h.b16 %v653
  %v944 = vunpack.c.l.b16 %v654
  %v945 = vunpack.c.h.b16 %v654
  %v946 = vunpack.c.l.b16 %v655
  %v947 = vunpack.c.h.b16 %v655
  %v948 = vunpack.c.l.b16 %v656
  %v949 = vunpack.c.h.b16 %v656
  %v950 = vunpack.c.l.b16 %v657
  %v951 = vunpack.c.h.b16 %v657
  %v952 = vpack.c.b16 %v762, %v760
  %v953 = vpack.c.b16 %v763, %v761
  %v954 = vpack.c.b16 %v766, %v764
  %v955 = vpack.c.b16 %v767, %v765
  %v956 = vpack.c.b16 %v770, %v768
  %v957 = vpack.c.b16 %v771, %v769
  %v958 = vpack.c.b16 %v774, %v772
  %v959 = vpack.c.b16 %v775, %v773
  %v960 = vpack.c.b16 %v778, %v776
  %v961 = vpack.c.b16 %v779, %v777
  %v962 = vpack.c.b16 %v782, %v780
  %v963 = vpack.c.b16 %v783, %v781
  %v964 = vpack.c.b16 %v786, %v784
  %v965 = vpack.c.b16 %v787, %v785
  %v966 = vpack.c.b16 %v790, %v788
  %v967 = vpack.c.b16 %v791, %v789
  %v968 = vpack.c.b16 %v794, %v792
  %v969 = vpack.c.b16 %v795, %v793
  %v970 = vpack.c.b16 %v798, %v796
  %v971 = vpack.c.b16 %v799, %v797
  %v972 = vpack.c.b16 %v802, %v800
  %v973 = vpack.c.b16 %v803, %v801
  %v974 = vpack.c.b16 %v806, %v804
  %v975 = vpack.c.b16 %v807, %v805
  %v976 = vpack.c.b16 %v810, %v808
  %v977 = vpack.c.b16 %v811, %v809
  %v978 = vpack.c.b16 %v814, %v812
  %v979 = vpack.c.b16 %v815, %v813
  %v980 = vpack.c.b16 %v818, %v816
  %v981 = vpack.c.b16 %v819, %v817
  %v982 = vpack.c.b16 %v822, %v820
  %v983 = vpack.c.b16 %v823, %v821
  %v984 = vpack.c.b16 %v826, %v824
  %v985 = vpack.c.b16 %v827, %v825
  %v986 = vpack.c.b16 %v830, %v828
  %v987 = vpack.c.b16 %v831, %v829
  %v988 = vpack.c.b16 %v834, %v832
  %v989 = vpack.c.b16 %v835, %v833
  %v990 = vpack.c.b16 %v838, %v836
  %v991 = vpack.c.b16 %v839, %v837
  %v992 = vpack.c.b16 %v842, %v840
  %v993 = vpack.c.b16 %v843, %v841
  %v994 = vpack.c.b16 %v846, %v844
  %v995 = vpack.c.b16 %v847, %v845
  %v996 = vpack.c.b16 %v850, %v848
  %v997 = vpack.c.b16 %v851, %v849
  %v998 = vpack.c.b16 %v854, %v852
  %v999 = vpack.c.b16 %v855, %v853
  %v1000 = vpack.c.b16 %v858, %v856
  %v1001 = vpack.c.b16 %v859, %v857
  %v1002 = vpack.c.b16 %v862, %v860
  %v1003 = vpack.c.b16 %v863, %v861
  %v1004 = vpack.c.b16 %v866, %v864
  %v1005 = vpack.c.b16 %v867, %v865
  %v1006 = vpack.c.b16 %v870, %v868
  %v1007 = vpack.c.b16 %v871, %v869
  %v1008 = vpack.c.b16 %v874, %v872
  %v1009 = vpack.c.b16 %v875, %v873
  %v1010 = vpack.c.b16 %v878, %v876
  %v1011 = vpack.c.b16 %v879, %v877
  %v1012 = vpack.c.b16 %v882, %v880
  %v1013 = vpack.c.b16 %v883, %v881
  %v1014 = vpack.c.b16 %v886, %v884
  %v1015 = vpack.c.b16 %v887, %v885
  %v1016 = vpack.c.b16 %v890, %v888
  %v1017 = vpack.c.b16 %v891, %v889
  %v1018 = vpack.c.b16 %v894, %v892
  %v1019 = vpack.c.b16 %v895, %v893
  %v1020 = vpack.c.b16 %v898, %v896
  %v1021 = vpack.c.b16 %v899, %v897
  %v1022 = vpack.c.b16 %v902, %v900
  %v1023 = vpack.c.b16 %v903, %v901
  %v1024 = vpack.c.b16 %v906, %v904
  %v1025 = vpack.c.b16 %v907, %v905
  %v1026 = vpack.c.b16 %v910, %v908
  %v1027 = vpack.c.b16 %v911, %v909
  %v1028 = vpack.c.b16 %v914, %v912
  %v1029 = vpack.c.b16 %v915, %v913
  %v1030 = vpack.c.b16 %v918, %v916
  %v1031 = vpack.c.b16 %v919, %v917
  %v1032 = vpack.c.b16 %v922, %v920
  %v1033 = vpack.c.b16 %v923, %v921
  %v1034 = vpack.c.b16 %v926, %v924
  %v1035 = vpack.c.b16 %v927, %v925
  %v1036 = vpack.c.b16 %v930, %v928
  %v1037 = vpack.c.b16 %v931, %v929
  %v1038 = vpack.c.b16 %v934, %v932
  %v1039 = vpack.c.b16 %v935, %v933
  %v1040 = vpack.c.b16 %v938, %v936
  %v1041 = vpack.c.b16 %v939, %v937
  %v1042 = vpack.c.b16 %v942, %v940
  %v1043 = vpack.c.b16 %v943, %v941
  %v1044 = vpack.c.b16 %v946, %v944
  %v1045 = vpack.c.b16 %v947, %v945
  %v1046 = vpack.c.b16 %v950, %v948
  %v1047 = vpack.c.b16 %v951, %v949
  %1144 = vmatpush.bf16.msra.mxu0 %v966
  %1145 = vmatpush.bf16.msra.mxu0 %v964
  %1146 = vmatpush.bf16.msra.mxu0 %v962
  %1147 = vmatpush.bf16.msra.mxu0 %v960
  %1148 = vmatpush.bf16.msra.mxu0 %v958
  %1149 = vmatpush.bf16.msra.mxu0 %v956
  %1150 = vmatpush.bf16.msra.mxu0 %v954
  %1151 = vmatpush.bf16.msra.mxu0 %v952
  %1152 = vmatmul.bf16.gmra.mxu0 %v550
  %v1153 = vpop.f32.mrf.mxu0
  %v1154 = vadd.f32 %v660, %v1153
  %v1155 = vpop.f32.mrf.mxu0
  %v1156 = vadd.f32 %v660, %v1155
  %1157 = vmatmul.bf16.gmra.mxu0 %v556
  %v1158 = vpop.f32.mrf.mxu0
  %v1159 = vadd.f32 %v660, %v1158
  %v1160 = vpop.f32.mrf.mxu0
  %v1161 = vadd.f32 %v660, %v1160
  %1162 = vdwg.mxu0
  %1163 = vmatpush.bf16.msra.mxu0 %v982
  %1164 = vmatpush.bf16.msra.mxu0 %v980
  %1165 = vmatpush.bf16.msra.mxu0 %v978
  %1166 = vmatpush.bf16.msra.mxu0 %v976
  %1167 = vmatpush.bf16.msra.mxu0 %v974
  %1168 = vmatpush.bf16.msra.mxu0 %v972
  %1169 = vmatpush.bf16.msra.mxu0 %v970
  %1170 = vmatpush.bf16.msra.mxu0 %v968
  %1171 = vmatmul.bf16.gmra.mxu0 %v551
  %v1172 = vpop.f32.mrf.mxu0
  %v1173 = vadd.f32 %v1154, %v1172
  %v1174 = vpop.f32.mrf.mxu0
  %v1175 = vadd.f32 %v1156, %v1174
  %1176 = vmatmul.bf16.gmra.mxu0 %v557
  %v1177 = vpop.f32.mrf.mxu0
  %v1178 = vadd.f32 %v1159, %v1177
  %v1179 = vpop.f32.mrf.mxu0
  %v1180 = vadd.f32 %v1161, %v1179
  %1181 = vdwg.mxu0
  %1182 = vmatpush.bf16.msra.mxu0 %v998
  %1183 = vmatpush.bf16.msra.mxu0 %v996
  %1184 = vmatpush.bf16.msra.mxu0 %v994
  %1185 = vmatpush.bf16.msra.mxu0 %v992
  %1186 = vmatpush.bf16.msra.mxu0 %v990
  %1187 = vmatpush.bf16.msra.mxu0 %v988
  %1188 = vmatpush.bf16.msra.mxu0 %v986
  %1189 = vmatpush.bf16.msra.mxu0 %v984
  %1190 = vmatmul.bf16.gmra.mxu0 %v552
  %v1191 = vpop.f32.mrf.mxu0
  %v1192 = vadd.f32 %v1173, %v1191
  %v1193 = vpop.f32.mrf.mxu0
  %v1194 = vadd.f32 %v1175, %v1193
  %1195 = vmatmul.bf16.gmra.mxu0 %v558
  %v1196 = vpop.f32.mrf.mxu0
  %v1197 = vadd.f32 %v1178, %v1196
  %v1198 = vpop.f32.mrf.mxu0
  %v1199 = vadd.f32 %v1180, %v1198
  %1200 = vdwg.mxu0
  %1201 = vmatpush.bf16.msra.mxu0 %v1014
  %1202 = vmatpush.bf16.msra.mxu0 %v1012
  %1203 = vmatpush.bf16.msra.mxu0 %v1010
  %1204 = vmatpush.bf16.msra.mxu0 %v1008
  %1205 = vmatpush.bf16.msra.mxu0 %v1006
  %1206 = vmatpush.bf16.msra.mxu0 %v1004
  %1207 = vmatpush.bf16.msra.mxu0 %v1002
  %1208 = vmatpush.bf16.msra.mxu0 %v1000
  %1209 = vmatmul.bf16.gmra.mxu0 %v553
  %v1210 = vpop.f32.mrf.mxu0
  %v1211 = vadd.f32 %v1192, %v1210
  %v1212 = vpop.f32.mrf.mxu0
  %v1213 = vadd.f32 %v1194, %v1212
  %1214 = vmatmul.bf16.gmra.mxu0 %v559
  %v1215 = vpop.f32.mrf.mxu0
  %v1216 = vadd.f32 %v1197, %v1215
  %v1217 = vpop.f32.mrf.mxu0
  %v1218 = vadd.f32 %v1199, %v1217
  %1219 = vdwg.mxu0
  %1220 = vmatpush.bf16.msra.mxu0 %v1030
  %1221 = vmatpush.bf16.msra.mxu0 %v1028
  %1222 = vmatpush.bf16.msra.mxu0 %v1026
  %1223 = vmatpush.bf16.msra.mxu0 %v1024
  %1224 = vmatpush.bf16.msra.mxu0 %v1022
  %1225 = vmatpush.bf16.msra.mxu0 %v1020
  %1226 = vmatpush.bf16.msra.mxu0 %v1018
  %1227 = vmatpush.bf16.msra.mxu0 %v1016
  %1228 = vmatmul.bf16.gmra.mxu0 %v554
  %v1229 = vpop.f32.mrf.mxu0
  %v1230 = vadd.f32 %v1211, %v1229
  %v1231 = vpop.f32.mrf.mxu0
  %v1232 = vadd.f32 %v1213, %v1231
  %1233 = vmatmul.bf16.gmra.mxu0 %v560
  %v1234 = vpop.f32.mrf.mxu0
  %v1235 = vadd.f32 %v1216, %v1234
  %v1236 = vpop.f32.mrf.mxu0
  %v1237 = vadd.f32 %v1218, %v1236
  %1238 = vdwg.mxu0
  %1239 = vmatpush.bf16.msra.mxu0 %v1046
  %1240 = vmatpush.bf16.msra.mxu0 %v1044
  %1241 = vmatpush.bf16.msra.mxu0 %v1042
  %1242 = vmatpush.bf16.msra.mxu0 %v1040
  %1243 = vmatpush.bf16.msra.mxu0 %v1038
  %1244 = vmatpush.bf16.msra.mxu0 %v1036
  %1245 = vmatpush.bf16.msra.mxu0 %v1034
  %1246 = vmatpush.bf16.msra.mxu0 %v1032
  %1247 = vmatmul.bf16.gmra.mxu0 %v555
  %v1248 = vpop.f32.mrf.mxu0
  %v1249 = vadd.f32 %v1230, %v1248
  %v1250 = vpop.f32.mrf.mxu0
  %v1251 = vadd.f32 %v1232, %v1250
  %1252 = vmatmul.bf16.gmra.mxu0 %v561
  %v1253 = vpop.f32.mrf.mxu0
  %v1254 = vadd.f32 %v1235, %v1253
  %v1255 = vpop.f32.mrf.mxu0
  %v1256 = vadd.f32 %v1237, %v1255
  %1257 = vdwg.mxu0
  %1258 = vmatpush.bf16.msra.mxu0 %v967
  %1259 = vmatpush.bf16.msra.mxu0 %v965
  %1260 = vmatpush.bf16.msra.mxu0 %v963
  %1261 = vmatpush.bf16.msra.mxu0 %v961
  %1262 = vmatpush.bf16.msra.mxu0 %v959
  %1263 = vmatpush.bf16.msra.mxu0 %v957
  %1264 = vmatpush.bf16.msra.mxu0 %v955
  %1265 = vmatpush.bf16.msra.mxu0 %v953
  %1266 = vmatmul.bf16.gmra.mxu0 %v550
  %v1267 = vpop.f32.mrf.mxu0
  %v1268 = vadd.f32 %v661, %v1267
  %v1269 = vpop.f32.mrf.mxu0
  %v1270 = vadd.f32 %v661, %v1269
  %1271 = vmatmul.bf16.gmra.mxu0 %v556
  %v1272 = vpop.f32.mrf.mxu0
  %v1273 = vadd.f32 %v661, %v1272
  %v1274 = vpop.f32.mrf.mxu0
  %v1275 = vadd.f32 %v661, %v1274
  %1276 = vdwg.mxu0
  %1277 = vmatpush.bf16.msra.mxu0 %v983
  %1278 = vmatpush.bf16.msra.mxu0 %v981
  %1279 = vmatpush.bf16.msra.mxu0 %v979
  %1280 = vmatpush.bf16.msra.mxu0 %v977
  %1281 = vmatpush.bf16.msra.mxu0 %v975
  %1282 = vmatpush.bf16.msra.mxu0 %v973
  %1283 = vmatpush.bf16.msra.mxu0 %v971
  %1284 = vmatpush.bf16.msra.mxu0 %v969
  %1285 = vmatmul.bf16.gmra.mxu0 %v551
  %v1286 = vpop.f32.mrf.mxu0
  %v1287 = vadd.f32 %v1268, %v1286
  %v1288 = vpop.f32.mrf.mxu0
  %v1289 = vadd.f32 %v1270, %v1288
  %1290 = vmatmul.bf16.gmra.mxu0 %v557
  %v1291 = vpop.f32.mrf.mxu0
  %v1292 = vadd.f32 %v1273, %v1291
  %v1293 = vpop.f32.mrf.mxu0
  %v1294 = vadd.f32 %v1275, %v1293
  %1295 = vdwg.mxu0
  %1296 = vmatpush.bf16.msra.mxu0 %v999
  %1297 = vmatpush.bf16.msra.mxu0 %v997
  %1298 = vmatpush.bf16.msra.mxu0 %v995
  %1299 = vmatpush.bf16.msra.mxu0 %v993
  %1300 = vmatpush.bf16.msra.mxu0 %v991
  %1301 = vmatpush.bf16.msra.mxu0 %v989
  %1302 = vmatpush.bf16.msra.mxu0 %v987
  %1303 = vmatpush.bf16.msra.mxu0 %v985
  %1304 = vmatmul.bf16.gmra.mxu0 %v552
  %v1305 = vpop.f32.mrf.mxu0
  %v1306 = vadd.f32 %v1287, %v1305
  %v1307 = vpop.f32.mrf.mxu0
  %v1308 = vadd.f32 %v1289, %v1307
  %1309 = vmatmul.bf16.gmra.mxu0 %v558
  %v1310 = vpop.f32.mrf.mxu0
  %v1311 = vadd.f32 %v1292, %v1310
  %v1312 = vpop.f32.mrf.mxu0
  %v1313 = vadd.f32 %v1294, %v1312
  %1314 = vdwg.mxu0
  %1315 = vmatpush.bf16.msra.mxu0 %v1015
  %1316 = vmatpush.bf16.msra.mxu0 %v1013
  %1317 = vmatpush.bf16.msra.mxu0 %v1011
  %1318 = vmatpush.bf16.msra.mxu0 %v1009
  %1319 = vmatpush.bf16.msra.mxu0 %v1007
  %1320 = vmatpush.bf16.msra.mxu0 %v1005
  %1321 = vmatpush.bf16.msra.mxu0 %v1003
  %1322 = vmatpush.bf16.msra.mxu0 %v1001
  %1323 = vmatmul.bf16.gmra.mxu0 %v553
  %v1324 = vpop.f32.mrf.mxu0
  %v1325 = vadd.f32 %v1306, %v1324
  %v1326 = vpop.f32.mrf.mxu0
  %v1327 = vadd.f32 %v1308, %v1326
  %1328 = vmatmul.bf16.gmra.mxu0 %v559
  %v1329 = vpop.f32.mrf.mxu0
  %v1330 = vadd.f32 %v1311, %v1329
  %v1331 = vpop.f32.mrf.mxu0
  %v1332 = vadd.f32 %v1313, %v1331
  %1333 = vdwg.mxu0
  %1334 = vmatpush.bf16.msra.mxu0 %v1031
  %1335 = vmatpush.bf16.msra.mxu0 %v1029
  %1336 = vmatpush.bf16.msra.mxu0 %v1027
  %1337 = vmatpush.bf16.msra.mxu0 %v1025
  %1338 = vmatpush.bf16.msra.mxu0 %v1023
  %1339 = vmatpush.bf16.msra.mxu0 %v1021
  %1340 = vmatpush.bf16.msra.mxu0 %v1019
  %1341 = vmatpush.bf16.msra.mxu0 %v1017
  %1342 = vmatmul.bf16.gmra.mxu0 %v554
  %v1343 = vpop.f32.mrf.mxu0
  %v1344 = vadd.f32 %v1325, %v1343
  %v1345 = vpop.f32.mrf.mxu0
  %v1346 = vadd.f32 %v1327, %v1345
  %1347 = vmatmul.bf16.gmra.mxu0 %v560
  %v1348 = vpop.f32.mrf.mxu0
  %v1349 = vadd.f32 %v1330, %v1348
  %v1350 = vpop.f32.mrf.mxu0
  %v1351 = vadd.f32 %v1332, %v1350
  %1352 = vdwg.mxu0
  %1353 = vmatpush.bf16.msra.mxu0 %v1047
  %1354 = vmatpush.bf16.msra.mxu0 %v1045
  %1355 = vmatpush.bf16.msra.mxu0 %v1043
  %1356 = vmatpush.bf16.msra.mxu0 %v1041
  %1357 = vmatpush.bf16.msra.mxu0 %v1039
  %1358 = vmatpush.bf16.msra.mxu0 %v1037
  %1359 = vmatpush.bf16.msra.mxu0 %v1035
  %1360 = vmatpush.bf16.msra.mxu0 %v1033
  %1361 = vmatmul.bf16.gmra.mxu0 %v555
  %v1362 = vpop.f32.mrf.mxu0
  %v1363 = vadd.f32 %v1344, %v1362
  %v1364 = vpop.f32.mrf.mxu0
  %v1365 = vadd.f32 %v1346, %v1364
  %1366 = vmatmul.bf16.gmra.mxu0 %v561
  %v1367 = vpop.f32.mrf.mxu0
  %v1368 = vadd.f32 %v1349, %v1367
  %v1369 = vpop.f32.mrf.mxu0
  %v1370 = vadd.f32 %v1351, %v1369
  %1371 = vdwg.mxu0
  %v1372 = vld [vmem:[%s1] sm:$0xff]
  %v1373 = vld [vmem:[%s1 + $0x8] sm:$0xff]
  %v1374 = vld [vmem:[%s1 + $0x10] sm:$0xff]
  %v1375 = vld [vmem:[%s1 + $0x18] sm:$0xff]
  %v1376 = vld [vmem:[%s1 + $0x20] sm:$0xff]
  %v1377 = vld [vmem:[%s1 + $0x28] sm:$0xff]
  %v1378 = vld [vmem:[%s1 + $0x30] sm:$0xff]
  %v1379 = vld [vmem:[%s1 + $0x38] sm:$0xff]
  %v1380 = vpack.c.bf16 %v1373, %v1372
  %v1381 = vpack.c.bf16 %v1375, %v1374
  %v1382 = vpack.c.bf16 %v1377, %v1376
  %v1383 = vpack.c.bf16 %v1379, %v1378
  %v1384 = vpack.c.bf16 %v1363, %v1249
  %v1385 = vpack.c.bf16 %v1365, %v1251
  %v1386 = vpack.c.bf16 %v1368, %v1254
  %v1387 = vpack.c.bf16 %v1370, %v1256
  %v1392 = vunpack.c.l.b16 %v1380
  %v1393 = vunpack.c.h.b16 %v1380
  %v1394 = vunpack.c.l.b16 %v1381
  %v1395 = vunpack.c.h.b16 %v1381
  %v1396 = vunpack.c.l.b16 %v1382
  %v1397 = vunpack.c.h.b16 %v1382
  %v1398 = vunpack.c.l.b16 %v1383
  %v1399 = vunpack.c.h.b16 %v1383
  %v1400 = vpack.c.b16 %v1394, %v1392
  %v1401 = vpack.c.b16 %v1395, %v1393
  %v1402 = vpack.c.b16 %v1398, %v1396
  %v1403 = vpack.c.b16 %v1399, %v1397
  %v1412 = vunpack.c.l.b16 %v1384
  %v1413 = vunpack.c.h.b16 %v1384
  %v1414 = vunpack.c.l.b16 %v1385
  %v1415 = vunpack.c.h.b16 %v1385
  %v1416 = vunpack.c.l.b16 %v1386
  %v1417 = vunpack.c.h.b16 %v1386
  %v1418 = vunpack.c.l.b16 %v1387
  %v1419 = vunpack.c.h.b16 %v1387
  %v1420 = vpack.c.b16 %v1414, %v1412
  %v1421 = vpack.c.b16 %v1415, %v1413
  %v1422 = vpack.c.b16 %v1418, %v1416
  %v1423 = vpack.c.b16 %v1419, %v1417
  %v1428 = vld [vmem:[%s7] sm:$0xff]
  %v1429 = vld [vmem:[%s7 + $0x8] sm:$0xff]
  %v1430 = vld [vmem:[%s7 + $0x10] sm:$0xff]
  %v1431 = vld [vmem:[%s7 + $0x18] sm:$0xff]
  %v1432 = vld [vmem:[%s7 + $0x20] sm:$0xff]
  %v1433 = vld [vmem:[%s7 + $0x28] sm:$0xff]
  %v1434 = vld [vmem:[%s7 + $0x30] sm:$0xff]
  %v1435 = vld [vmem:[%s7 + $0x38] sm:$0xff]
  %v1436 = vld [vmem:[%s7 + $0x40] sm:$0xff]
  %v1437 = vld [vmem:[%s7 + $0x48] sm:$0xff]
  %v1438 = vld [vmem:[%s7 + $0x50] sm:$0xff]
  %v1439 = vld [vmem:[%s7 + $0x58] sm:$0xff]
  %v1440 = vld [vmem:[%s7 + $0x60] sm:$0xff]
  %v1441 = vld [vmem:[%s7 + $0x68] sm:$0xff]
  %v1442 = vld [vmem:[%s7 + $0x70] sm:$0xff]
  %v1443 = vld [vmem:[%s7 + $0x78] sm:$0xff]
  %v1444 = vld [vmem:[%s7 + $0x80] sm:$0xff]
  %v1445 = vld [vmem:[%s7 + $0x88] sm:$0xff]
  %v1446 = vld [vmem:[%s7 + $0x90] sm:$0xff]
  %v1447 = vld [vmem:[%s7 + $0x98] sm:$0xff]
  %v1448 = vld [vmem:[%s7 + $0xa0] sm:$0xff]
  %v1449 = vld [vmem:[%s7 + $0xa8] sm:$0xff]
  %v1450 = vld [vmem:[%s7 + $0xb0] sm:$0xff]
  %v1451 = vld [vmem:[%s7 + $0xb8] sm:$0xff]
  %v1452 = vld [vmem:[%s7 + $0xc0] sm:$0xff]
  %v1453 = vld [vmem:[%s7 + $0xc8] sm:$0xff]
  %v1454 = vld [vmem:[%s7 + $0xd0] sm:$0xff]
  %v1455 = vld [vmem:[%s7 + $0xd8] sm:$0xff]
  %v1456 = vld [vmem:[%s7 + $0xe0] sm:$0xff]
  %v1457 = vld [vmem:[%s7 + $0xe8] sm:$0xff]
  %v1458 = vld [vmem:[%s7 + $0xf0] sm:$0xff]
  %v1459 = vld [vmem:[%s7 + $0xf8] sm:$0xff]
  %v1460 = vld [vmem:[%s7 + $0x100] sm:$0xff]
  %v1461 = vld [vmem:[%s7 + $0x108] sm:$0xff]
  %v1462 = vld [vmem:[%s7 + $0x110] sm:$0xff]
  %v1463 = vld [vmem:[%s7 + $0x118] sm:$0xff]
  %v1464 = vld [vmem:[%s7 + $0x120] sm:$0xff]
  %v1465 = vld [vmem:[%s7 + $0x128] sm:$0xff]
  %v1466 = vld [vmem:[%s7 + $0x130] sm:$0xff]
  %v1467 = vld [vmem:[%s7 + $0x138] sm:$0xff]
  %v1468 = vld [vmem:[%s7 + $0x140] sm:$0xff]
  %v1469 = vld [vmem:[%s7 + $0x148] sm:$0xff]
  %v1470 = vld [vmem:[%s7 + $0x150] sm:$0xff]
  %v1471 = vld [vmem:[%s7 + $0x158] sm:$0xff]
  %v1472 = vld [vmem:[%s7 + $0x160] sm:$0xff]
  %v1473 = vld [vmem:[%s7 + $0x168] sm:$0xff]
  %v1474 = vld [vmem:[%s7 + $0x170] sm:$0xff]
  %v1475 = vld [vmem:[%s7 + $0x178] sm:$0xff]
  %v1476 = vld [vmem:[%s7 + $0x180] sm:$0xff]
  %v1477 = vld [vmem:[%s7 + $0x188] sm:$0xff]
  %v1478 = vld [vmem:[%s7 + $0x190] sm:$0xff]
  %v1479 = vld [vmem:[%s7 + $0x198] sm:$0xff]
  %v1480 = vld [vmem:[%s7 + $0x1a0] sm:$0xff]
  %v1481 = vld [vmem:[%s7 + $0x1a8] sm:$0xff]
  %v1482 = vld [vmem:[%s7 + $0x1b0] sm:$0xff]
  %v1483 = vld [vmem:[%s7 + $0x1b8] sm:$0xff]
  %v1484 = vld [vmem:[%s7 + $0x1c0] sm:$0xff]
  %v1485 = vld [vmem:[%s7 + $0x1c8] sm:$0xff]
  %v1486 = vld [vmem:[%s7 + $0x1d0] sm:$0xff]
  %v1487 = vld [vmem:[%s7 + $0x1d8] sm:$0xff]
  %v1488 = vld [vmem:[%s7 + $0x1e0] sm:$0xff]
  %v1489 = vld [vmem:[%s7 + $0x1e8] sm:$0xff]
  %v1490 = vld [vmem:[%s7 + $0x1f0] sm:$0xff]
  %v1491 = vld [vmem:[%s7 + $0x1f8] sm:$0xff]
  %v1556 = vunpack.c.l.b16 %v1428
  %v1557 = vunpack.c.h.b16 %v1428
  %v1558 = vunpack.c.l.b16 %v1429
  %v1559 = vunpack.c.h.b16 %v1429
  %v1560 = vunpack.c.l.b16 %v1430
  %v1561 = vunpack.c.h.b16 %v1430
  %v1562 = vunpack.c.l.b16 %v1431
  %v1563 = vunpack.c.h.b16 %v1431
  %v1564 = vunpack.c.l.b16 %v1432
  %v1565 = vunpack.c.h.b16 %v1432
  %v1566 = vunpack.c.l.b16 %v1433
  %v1567 = vunpack.c.h.b16 %v1433
  %v1568 = vunpack.c.l.b16 %v1434
  %v1569 = vunpack.c.h.b16 %v1434
  %v1570 = vunpack.c.l.b16 %v1435
  %v1571 = vunpack.c.h.b16 %v1435
  %v1572 = vunpack.c.l.b16 %v1436
  %v1573 = vunpack.c.h.b16 %v1436
  %v1574 = vunpack.c.l.b16 %v1437
  %v1575 = vunpack.c.h.b16 %v1437
  %v1576 = vunpack.c.l.b16 %v1438
  %v1577 = vunpack.c.h.b16 %v1438
  %v1578 = vunpack.c.l.b16 %v1439
  %v1579 = vunpack.c.h.b16 %v1439
  %v1580 = vunpack.c.l.b16 %v1440
  %v1581 = vunpack.c.h.b16 %v1440
  %v1582 = vunpack.c.l.b16 %v1441
  %v1583 = vunpack.c.h.b16 %v1441
  %v1584 = vunpack.c.l.b16 %v1442
  %v1585 = vunpack.c.h.b16 %v1442
  %v1586 = vunpack.c.l.b16 %v1443
  %v1587 = vunpack.c.h.b16 %v1443
  %v1588 = vunpack.c.l.b16 %v1444
  %v1589 = vunpack.c.h.b16 %v1444
  %v1590 = vunpack.c.l.b16 %v1445
  %v1591 = vunpack.c.h.b16 %v1445
  %v1592 = vunpack.c.l.b16 %v1446
  %v1593 = vunpack.c.h.b16 %v1446
  %v1594 = vunpack.c.l.b16 %v1447
  %v1595 = vunpack.c.h.b16 %v1447
  %v1596 = vunpack.c.l.b16 %v1448
  %v1597 = vunpack.c.h.b16 %v1448
  %v1598 = vunpack.c.l.b16 %v1449
  %v1599 = vunpack.c.h.b16 %v1449
  %v1600 = vunpack.c.l.b16 %v1450
  %v1601 = vunpack.c.h.b16 %v1450
  %v1602 = vunpack.c.l.b16 %v1451
  %v1603 = vunpack.c.h.b16 %v1451
  %v1604 = vunpack.c.l.b16 %v1452
  %v1605 = vunpack.c.h.b16 %v1452
  %v1606 = vunpack.c.l.b16 %v1453
  %v1607 = vunpack.c.h.b16 %v1453
  %v1608 = vunpack.c.l.b16 %v1454
  %v1609 = vunpack.c.h.b16 %v1454
  %v1610 = vunpack.c.l.b16 %v1455
  %v1611 = vunpack.c.h.b16 %v1455
  %v1612 = vunpack.c.l.b16 %v1456
  %v1613 = vunpack.c.h.b16 %v1456
  %v1614 = vunpack.c.l.b16 %v1457
  %v1615 = vunpack.c.h.b16 %v1457
  %v1616 = vunpack.c.l.b16 %v1458
  %v1617 = vunpack.c.h.b16 %v1458
  %v1618 = vunpack.c.l.b16 %v1459
  %v1619 = vunpack.c.h.b16 %v1459
  %v1620 = vunpack.c.l.b16 %v1460
  %v1621 = vunpack.c.h.b16 %v1460
  %v1622 = vunpack.c.l.b16 %v1461
  %v1623 = vunpack.c.h.b16 %v1461
  %v1624 = vunpack.c.l.b16 %v1462
  %v1625 = vunpack.c.h.b16 %v1462
  %v1626 = vunpack.c.l.b16 %v1463
  %v1627 = vunpack.c.h.b16 %v1463
  %v1628 = vunpack.c.l.b16 %v1464
  %v1629 = vunpack.c.h.b16 %v1464
  %v1630 = vunpack.c.l.b16 %v1465
  %v1631 = vunpack.c.h.b16 %v1465
  %v1632 = vunpack.c.l.b16 %v1466
  %v1633 = vunpack.c.h.b16 %v1466
  %v1634 = vunpack.c.l.b16 %v1467
  %v1635 = vunpack.c.h.b16 %v1467
  %v1636 = vunpack.c.l.b16 %v1468
  %v1637 = vunpack.c.h.b16 %v1468
  %v1638 = vunpack.c.l.b16 %v1469
  %v1639 = vunpack.c.h.b16 %v1469
  %v1640 = vunpack.c.l.b16 %v1470
  %v1641 = vunpack.c.h.b16 %v1470
  %v1642 = vunpack.c.l.b16 %v1471
  %v1643 = vunpack.c.h.b16 %v1471
  %v1644 = vunpack.c.l.b16 %v1472
  %v1645 = vunpack.c.h.b16 %v1472
  %v1646 = vunpack.c.l.b16 %v1473
  %v1647 = vunpack.c.h.b16 %v1473
  %v1648 = vunpack.c.l.b16 %v1474
  %v1649 = vunpack.c.h.b16 %v1474
  %v1650 = vunpack.c.l.b16 %v1475
  %v1651 = vunpack.c.h.b16 %v1475
  %v1652 = vunpack.c.l.b16 %v1476
  %v1653 = vunpack.c.h.b16 %v1476
  %v1654 = vunpack.c.l.b16 %v1477
  %v1655 = vunpack.c.h.b16 %v1477
  %v1656 = vunpack.c.l.b16 %v1478
  %v1657 = vunpack.c.h.b16 %v1478
  %v1658 = vunpack.c.l.b16 %v1479
  %v1659 = vunpack.c.h.b16 %v1479
  %v1660 = vunpack.c.l.b16 %v1480
  %v1661 = vunpack.c.h.b16 %v1480
  %v1662 = vunpack.c.l.b16 %v1481
  %v1663 = vunpack.c.h.b16 %v1481
  %v1664 = vunpack.c.l.b16 %v1482
  %v1665 = vunpack.c.h.b16 %v1482
  %v1666 = vunpack.c.l.b16 %v1483
  %v1667 = vunpack.c.h.b16 %v1483
  %v1668 = vunpack.c.l.b16 %v1484
  %v1669 = vunpack.c.h.b16 %v1484
  %v1670 = vunpack.c.l.b16 %v1485
  %v1671 = vunpack.c.h.b16 %v1485
  %v1672 = vunpack.c.l.b16 %v1486
  %v1673 = vunpack.c.h.b16 %v1486
  %v1674 = vunpack.c.l.b16 %v1487
  %v1675 = vunpack.c.h.b16 %v1487
  %v1676 = vunpack.c.l.b16 %v1488
  %v1677 = vunpack.c.h.b16 %v1488
  %v1678 = vunpack.c.l.b16 %v1489
  %v1679 = vunpack.c.h.b16 %v1489
  %v1680 = vunpack.c.l.b16 %v1490
  %v1681 = vunpack.c.h.b16 %v1490
  %v1682 = vunpack.c.l.b16 %v1491
  %v1683 = vunpack.c.h.b16 %v1491
  %v1684 = vpack.c.b16 %v1558, %v1556
  %v1685 = vpack.c.b16 %v1559, %v1557
  %v1686 = vpack.c.b16 %v1562, %v1560
  %v1687 = vpack.c.b16 %v1563, %v1561
  %v1688 = vpack.c.b16 %v1566, %v1564
  %v1689 = vpack.c.b16 %v1567, %v1565
  %v1690 = vpack.c.b16 %v1570, %v1568
  %v1691 = vpack.c.b16 %v1571, %v1569
  %v1692 = vpack.c.b16 %v1574, %v1572
  %v1693 = vpack.c.b16 %v1575, %v1573
  %v1694 = vpack.c.b16 %v1578, %v1576
  %v1695 = vpack.c.b16 %v1579, %v1577
  %v1696 = vpack.c.b16 %v1582, %v1580
  %v1697 = vpack.c.b16 %v1583, %v1581
  %v1698 = vpack.c.b16 %v1586, %v1584
  %v1699 = vpack.c.b16 %v1587, %v1585
  %v1700 = vpack.c.b16 %v1590, %v1588
  %v1701 = vpack.c.b16 %v1591, %v1589
  %v1702 = vpack.c.b16 %v1594, %v1592
  %v1703 = vpack.c.b16 %v1595, %v1593
  %v1704 = vpack.c.b16 %v1598, %v1596
  %v1705 = vpack.c.b16 %v1599, %v1597
  %v1706 = vpack.c.b16 %v1602, %v1600
  %v1707 = vpack.c.b16 %v1603, %v1601
  %v1708 = vpack.c.b16 %v1606, %v1604
  %v1709 = vpack.c.b16 %v1607, %v1605
  %v1710 = vpack.c.b16 %v1610, %v1608
  %v1711 = vpack.c.b16 %v1611, %v1609
  %v1712 = vpack.c.b16 %v1614, %v1612
  %v1713 = vpack.c.b16 %v1615, %v1613
  %v1714 = vpack.c.b16 %v1618, %v1616
  %v1715 = vpack.c.b16 %v1619, %v1617
  %v1716 = vpack.c.b16 %v1622, %v1620
  %v1717 = vpack.c.b16 %v1623, %v1621
  %v1718 = vpack.c.b16 %v1626, %v1624
  %v1719 = vpack.c.b16 %v1627, %v1625
  %v1720 = vpack.c.b16 %v1630, %v1628
  %v1721 = vpack.c.b16 %v1631, %v1629
  %v1722 = vpack.c.b16 %v1634, %v1632
  %v1723 = vpack.c.b16 %v1635, %v1633
  %v1724 = vpack.c.b16 %v1638, %v1636
  %v1725 = vpack.c.b16 %v1639, %v1637
  %v1726 = vpack.c.b16 %v1642, %v1640
  %v1727 = vpack.c.b16 %v1643, %v1641
  %v1728 = vpack.c.b16 %v1646, %v1644
  %v1729 = vpack.c.b16 %v1647, %v1645
  %v1730 = vpack.c.b16 %v1650, %v1648
  %v1731 = vpack.c.b16 %v1651, %v1649
  %v1732 = vpack.c.b16 %v1654, %v1652
  %v1733 = vpack.c.b16 %v1655, %v1653
  %v1734 = vpack.c.b16 %v1658, %v1656
  %v1735 = vpack.c.b16 %v1659, %v1657
  %v1736 = vpack.c.b16 %v1662, %v1660
  %v1737 = vpack.c.b16 %v1663, %v1661
  %v1738 = vpack.c.b16 %v1666, %v1664
  %v1739 = vpack.c.b16 %v1667, %v1665
  %v1740 = vpack.c.b16 %v1670, %v1668
  %v1741 = vpack.c.b16 %v1671, %v1669
  %v1742 = vpack.c.b16 %v1674, %v1672
  %v1743 = vpack.c.b16 %v1675, %v1673
  %v1744 = vpack.c.b16 %v1678, %v1676
  %v1745 = vpack.c.b16 %v1679, %v1677
  %v1746 = vpack.c.b16 %v1682, %v1680
  %v1747 = vpack.c.b16 %v1683, %v1681
  %1812 = vmatpush.bf16.msra.mxu0 %v1698
  %1813 = vmatpush.bf16.msra.mxu0 %v1696
  %1814 = vmatpush.bf16.msra.mxu0 %v1694
  %1815 = vmatpush.bf16.msra.mxu0 %v1692
  %1816 = vmatpush.bf16.msra.mxu0 %v1690
  %1817 = vmatpush.bf16.msra.mxu0 %v1688
  %1818 = vmatpush.bf16.msra.mxu0 %v1686
  %1819 = vmatpush.bf16.msra.mxu0 %v1684
  %1820 = vmatmul.bf16.gmra.mxu0 %v1400
  %v1821 = vpop.f32.mrf.mxu0
  %v1822 = vadd.f32 0.0, %v1821
  %v1823 = vpop.f32.mrf.mxu0
  %v1824 = vadd.f32 0.0, %v1823
  %1825 = vmatmul.bf16.gmra.mxu0 %v1402
  %v1826 = vpop.f32.mrf.mxu0
  %v1827 = vadd.f32 0.0, %v1826
  %v1828 = vpop.f32.mrf.mxu0
  %v1829 = vadd.f32 0.0, %v1828
  %1830 = vdwg.mxu0
  %1831 = vmatpush.bf16.msra.mxu0 %v1714
  %1832 = vmatpush.bf16.msra.mxu0 %v1712
  %1833 = vmatpush.bf16.msra.mxu0 %v1710
  %1834 = vmatpush.bf16.msra.mxu0 %v1708
  %1835 = vmatpush.bf16.msra.mxu0 %v1706
  %1836 = vmatpush.bf16.msra.mxu0 %v1704
  %1837 = vmatpush.bf16.msra.mxu0 %v1702
  %1838 = vmatpush.bf16.msra.mxu0 %v1700
  %1839 = vmatmul.bf16.gmra.mxu0 %v1401
  %v1840 = vpop.f32.mrf.mxu0
  %v1841 = vadd.f32 %v1822, %v1840
  %v1842 = vpop.f32.mrf.mxu0
  %v1843 = vadd.f32 %v1824, %v1842
  %1844 = vmatmul.bf16.gmra.mxu0 %v1403
  %v1845 = vpop.f32.mrf.mxu0
  %v1846 = vadd.f32 %v1827, %v1845
  %v1847 = vpop.f32.mrf.mxu0
  %v1848 = vadd.f32 %v1829, %v1847
  %1849 = vdwg.mxu0
  %1850 = vmatpush.bf16.msra.mxu0 %v1730
  %1851 = vmatpush.bf16.msra.mxu0 %v1728
  %1852 = vmatpush.bf16.msra.mxu0 %v1726
  %1853 = vmatpush.bf16.msra.mxu0 %v1724
  %1854 = vmatpush.bf16.msra.mxu0 %v1722
  %1855 = vmatpush.bf16.msra.mxu0 %v1720
  %1856 = vmatpush.bf16.msra.mxu0 %v1718
  %1857 = vmatpush.bf16.msra.mxu0 %v1716
  %1858 = vmatmul.bf16.gmra.mxu0 %v1420
  %v1859 = vpop.f32.mrf.mxu0
  %v1860 = vadd.f32 %v1841, %v1859
  %v1861 = vpop.f32.mrf.mxu0
  %v1862 = vadd.f32 %v1843, %v1861
  %1863 = vmatmul.bf16.gmra.mxu0 %v1422
  %v1864 = vpop.f32.mrf.mxu0
  %v1865 = vadd.f32 %v1846, %v1864
  %v1866 = vpop.f32.mrf.mxu0
  %v1867 = vadd.f32 %v1848, %v1866
  %1868 = vdwg.mxu0
  %1869 = vmatpush.bf16.msra.mxu0 %v1746
  %1870 = vmatpush.bf16.msra.mxu0 %v1744
  %1871 = vmatpush.bf16.msra.mxu0 %v1742
  %1872 = vmatpush.bf16.msra.mxu0 %v1740
  %1873 = vmatpush.bf16.msra.mxu0 %v1738
  %1874 = vmatpush.bf16.msra.mxu0 %v1736
  %1875 = vmatpush.bf16.msra.mxu0 %v1734
  %1876 = vmatpush.bf16.msra.mxu0 %v1732
  %1877 = vmatmul.bf16.gmra.mxu0 %v1421
  %v1878 = vpop.f32.mrf.mxu0
  %v1879 = vadd.f32 %v1860, %v1878
  %v1880 = vpop.f32.mrf.mxu0
  %v1881 = vadd.f32 %v1862, %v1880
  %1882 = vmatmul.bf16.gmra.mxu0 %v1423
  %v1883 = vpop.f32.mrf.mxu0
  %v1884 = vadd.f32 %v1865, %v1883
  %v1885 = vpop.f32.mrf.mxu0
  %v1886 = vadd.f32 %v1867, %v1885
  %1887 = vdwg.mxu0
  %1888 = vmatpush.bf16.msra.mxu0 %v1699
  %1889 = vmatpush.bf16.msra.mxu0 %v1697
  %1890 = vmatpush.bf16.msra.mxu0 %v1695
  %1891 = vmatpush.bf16.msra.mxu0 %v1693
  %1892 = vmatpush.bf16.msra.mxu0 %v1691
  %1893 = vmatpush.bf16.msra.mxu0 %v1689
  %1894 = vmatpush.bf16.msra.mxu0 %v1687
  %1895 = vmatpush.bf16.msra.mxu0 %v1685
  %1896 = vmatmul.bf16.gmra.mxu0 %v1400
  %v1897 = vpop.f32.mrf.mxu0
  %v1898 = vadd.f32 0.0, %v1897
  %v1899 = vpop.f32.mrf.mxu0
  %v1900 = vadd.f32 0.0, %v1899
  %1901 = vmatmul.bf16.gmra.mxu0 %v1402
  %v1902 = vpop.f32.mrf.mxu0
  %v1903 = vadd.f32 0.0, %v1902
  %v1904 = vpop.f32.mrf.mxu0
  %v1905 = vadd.f32 0.0, %v1904
  %1906 = vdwg.mxu0
  %1907 = vmatpush.bf16.msra.mxu0 %v1715
  %1908 = vmatpush.bf16.msra.mxu0 %v1713
  %1909 = vmatpush.bf16.msra.mxu0 %v1711
  %1910 = vmatpush.bf16.msra.mxu0 %v1709
  %1911 = vmatpush.bf16.msra.mxu0 %v1707
  %1912 = vmatpush.bf16.msra.mxu0 %v1705
  %1913 = vmatpush.bf16.msra.mxu0 %v1703
  %1914 = vmatpush.bf16.msra.mxu0 %v1701
  %1915 = vmatmul.bf16.gmra.mxu0 %v1401
  %v1916 = vpop.f32.mrf.mxu0
  %v1917 = vadd.f32 %v1898, %v1916
  %v1918 = vpop.f32.mrf.mxu0
  %v1919 = vadd.f32 %v1900, %v1918
  %1920 = vmatmul.bf16.gmra.mxu0 %v1403
  %v1921 = vpop.f32.mrf.mxu0
  %v1922 = vadd.f32 %v1903, %v1921
  %v1923 = vpop.f32.mrf.mxu0
  %v1924 = vadd.f32 %v1905, %v1923
  %1925 = vdwg.mxu0
  %1926 = vmatpush.bf16.msra.mxu0 %v1731
  %1927 = vmatpush.bf16.msra.mxu0 %v1729
  %1928 = vmatpush.bf16.msra.mxu0 %v1727
  %1929 = vmatpush.bf16.msra.mxu0 %v1725
  %1930 = vmatpush.bf16.msra.mxu0 %v1723
  %1931 = vmatpush.bf16.msra.mxu0 %v1721
  %1932 = vmatpush.bf16.msra.mxu0 %v1719
  %1933 = vmatpush.bf16.msra.mxu0 %v1717
  %1934 = vmatmul.bf16.gmra.mxu0 %v1420
  %v1935 = vpop.f32.mrf.mxu0
  %v1936 = vadd.f32 %v1917, %v1935
  %v1937 = vpop.f32.mrf.mxu0
  %v1938 = vadd.f32 %v1919, %v1937
  %1939 = vmatmul.bf16.gmra.mxu0 %v1422
  %v1940 = vpop.f32.mrf.mxu0
  %v1941 = vadd.f32 %v1922, %v1940
  %v1942 = vpop.f32.mrf.mxu0
  %v1943 = vadd.f32 %v1924, %v1942
  %1944 = vdwg.mxu0
  %1945 = vmatpush.bf16.msra.mxu0 %v1747
  %1946 = vmatpush.bf16.msra.mxu0 %v1745
  %1947 = vmatpush.bf16.msra.mxu0 %v1743
  %1948 = vmatpush.bf16.msra.mxu0 %v1741
  %1949 = vmatpush.bf16.msra.mxu0 %v1739
  %1950 = vmatpush.bf16.msra.mxu0 %v1737
  %1951 = vmatpush.bf16.msra.mxu0 %v1735
  %1952 = vmatpush.bf16.msra.mxu0 %v1733
  %1953 = vmatmul.bf16.gmra.mxu0 %v1421
  %v1954 = vpop.f32.mrf.mxu0
  %v1955 = vadd.f32 %v1936, %v1954
  %v1956 = vpop.f32.mrf.mxu0
  %v1957 = vadd.f32 %v1938, %v1956
  %1958 = vmatmul.bf16.gmra.mxu0 %v1423
  %v1959 = vpop.f32.mrf.mxu0
  %v1960 = vadd.f32 %v1941, %v1959
  %v1961 = vpop.f32.mrf.mxu0
  %v1962 = vadd.f32 %v1943, %v1961
  %1963 = vdwg.mxu0
  %1964 = vst [vmem:[%s8] sm:$0xff] %v1879
  %1965 = vst [vmem:[%s8 + $0x8] sm:$0xff] %v1955
  %1966 = vst [vmem:[%s8 + $0x10] sm:$0xff] %v1881
  %1967 = vst [vmem:[%s8 + $0x18] sm:$0xff] %v1957
  %1968 = vst [vmem:[%s8 + $0x20] sm:$0xff] %v1884
  %1969 = vst [vmem:[%s8 + $0x28] sm:$0xff] %v1960
  %1970 = vst [vmem:[%s8 + $0x30] sm:$0xff] %v1886
  %1971 = vst [vmem:[%s8 + $0x38] sm:$0xff] %v1962
  // Predicated region
  $region34: #{gmm_forward.3} parent=0 // pred_check
    _
  $region35: #{gmm_forward.3} parent=0 // pred_check_branch
    %1973 = sbr.rel (0) target = $region37
  $region36: #{gmm_forward.3} parent=0 // pred_region
    _
  $region37: #{gmm_forward.3} parent=0 // pred_fallthru
    _
  // Predicated region
  $region38: #{gmm_forward.3} parent=0 // pred_check
    _
  $region39: #{gmm_forward.3} parent=0 // pred_check_branch
    %1975 = sbr.rel (0) target = $region41
  $region40: #{gmm_forward.3} parent=0 // pred_region
    _
  $region41: #{gmm_forward.3} parent=0 // pred_fallthru
    _

</llo_original>
